<compile_context>
chip_gen: v7x
topology: tpu7x:2x2x1
jax: 0.10.0
libtpu: 0.0.40
codegen_flags: <defaults>
</compile_context>

<pallas_src>
import math
from functools import partial

import jax
import jax.numpy as jnp
from jax.experimental import pallas as pl
from jax.experimental.pallas import tpu as pltpu


# ----------------------------------------------------------------------------
# Model configuration (shrunk, deterministic; mirrors ModelArgs field semantics)
# ----------------------------------------------------------------------------
class Args:
    dim = 64
    inter_dim = 128
    moe_inter_dim = 64
    n_heads = 4
    n_routed_experts = 8
    n_shared_experts = 2
    n_activated_experts = 6
    n_expert_groups = 1
    n_limited_groups = 1
    score_func = "softmax"
    route_scale = 1.0
    q_lora_rank = 0
    kv_lora_rank = 16
    qk_nope_head_dim = 16
    qk_rope_head_dim = 16
    v_head_dim = 16
    max_seq_len = 10000
    original_seq_len = 196
    rope_theta = 1000.0
    rope_factor = 40
    mscale = 1.0
    n_dense_layers = 1   # layer_id=1 >= n_dense_layers -> MoE ffn


# ----------------------------------------------------------------------------
# Kernel 1: attn RMSNorm + fused QKV projection + RoPE + kv RMSNorm + wkv_b
# ----------------------------------------------------------------------------
def _qkv_rope_kernel(x_ref, g_attn_ref, wcat_ref, wswap_ref, cos_ref, sin_ref,
                     g_kv_ref, wkvb_ref, rot_ref, kvb_ref, *, eps, q_width, c_width):
    # RMSNorm(x) in f32, cast to bf16 for the MXU.
    x = x_ref[...].astype(jnp.float32)
    var = jnp.mean(x * x, axis=-1, keepdims=True)
    xn = (x * jax.lax.rsqrt(var + eps) * g_attn_ref[...]).astype(jnp.bfloat16)

    # Fused projection: [wq | wkv_a]^T, plus the column-pair-swapped copy so RoPE
    # becomes a pure elementwise op:  y = raw*cos + swap(raw)*sin.
    raw = jnp.dot(xn, wcat_ref[...], preferred_element_type=jnp.float32)
    raw_sw = jnp.dot(xn, wswap_ref[...], preferred_element_type=jnp.float32)
    rot = raw * cos_ref[...] + raw_sw * sin_ref[...]     # identity on non-rope lanes
    rot_ref[...] = rot.astype(rot_ref.dtype)

    # kv_c lanes are identity under the rope tables -> equal to raw wkv_a output.
    kv_c = rot[:, q_width:q_width + c_width]
    var2 = jnp.mean(kv_c * kv_c, axis=-1, keepdims=True)
    kv_n = (kv_c * jax.lax.rsqrt(var2 + eps) * g_kv_ref[...]).astype(jnp.bfloat16)
    kvb_ref[...] = jnp.dot(kv_n, wkvb_ref[...],
                           preferred_element_type=jnp.float32).astype(kvb_ref.dtype)


# ----------------------------------------------------------------------------
# Kernel 2: batched attention + wo projection + residual + ffn RMSNorm + gate
# ----------------------------------------------------------------------------
def _attn_wo_gate_kernel(q_ref, k_ref, v_ref, mask_ref, wo_ref, x_ref,
                         g_ffn_ref, gate_w_ref, h_ref, hn_ref, logits_ref,
                         *, scale, batch, heads, seq, eps):
    # scores over all B*H heads in one batched einsum (bf16 in, f32 accumulate)
    s = jnp.einsum('bqd,bkd->bqk', q_ref[...], k_ref[...],
                   preferred_element_type=jnp.float32) * scale
    s = s + mask_ref[...][None, :, :]
    m = jnp.max(s, axis=-1, keepdims=True)
    e = jnp.exp(s - m)
    p = e * pl.reciprocal(jnp.sum(e, axis=-1, keepdims=True), approx=True)
    o = jnp.einsum('bqk,bkd->bqd', p.astype(v_ref.dtype), v_ref[...],
                   preferred_element_type=jnp.float32)          # (B*H, S, dv) f32

    # Per-head wo projection fused with residual add (avoids any in-kernel
    # head->lane transpose): h[b] = x[b] + sum_h o[b,h] @ wo_h^T
    xr = x_ref[...].astype(jnp.float32)
    rows = []
    for b in range(batch):
        acc = xr[b * seq:(b + 1) * seq]
        for hh in range(heads):
            acc = acc + jnp.dot(o[b * heads + hh].astype(jnp.bfloat16),
                                wo_ref[hh], preferred_element_type=jnp.float32)
        rows.append(acc)
    h = jnp.concatenate(rows, axis=0)                           # (M, D) f32
    h_ref[...] = h

    # ffn RMSNorm + MoE gate logits fused here too.
    var = jnp.mean(h * h, axis=-1, keepdims=True)
    hn = h * jax.lax.rsqrt(var + eps) * g_ffn_ref[...]
    hn_ref[...] = hn.astype(hn_ref.dtype)
    logits_ref[...] = jnp.dot(hn.astype(jnp.bfloat16), gate_w_ref[...],
                              preferred_element_type=jnp.float32)


# ----------------------------------------------------------------------------
# Kernel 3: fused MoE — grid over experts, VMEM accumulator, shared + residual
# ----------------------------------------------------------------------------
def _moe_kernel(hn_ref, gate_ref, h_ref, w1_ref, w3_ref, w2_ref,
                ws1_ref, ws3_ref, ws2_ref, o_ref, acc_ref):
    e = pl.program_id(0)
    hn = hn_ref[...]                                            # bf16 (M, D)

    @pl.when(e == 0)
    def _():
        # init accumulator with residual + shared expert output
        s1 = jnp.dot(hn, ws1_ref[...], preferred_element_type=jnp.float32)
        s3 = jnp.dot(hn, ws3_ref[...], preferred_element_type=jnp.float32)
        mid = (s1 * jax.nn.sigmoid(s1) * s3).astype(jnp.bfloat16)
        z = jnp.dot(mid, ws2_ref[...], preferred_element_type=jnp.float32)
        acc_ref[...] = h_ref[...] + z

    # routed expert `e` (dense-equivalent: gate weight is 0 for unrouted tokens)
    a1 = jnp.dot(hn, w1_ref[0], preferred_element_type=jnp.float32)
    a3 = jnp.dot(hn, w3_ref[0], preferred_element_type=jnp.float32)
    mid = (a1 * jax.nn.sigmoid(a1) * a3).astype(jnp.bfloat16)
    ye = jnp.dot(mid, w2_ref[0], preferred_element_type=jnp.float32)
    acc_ref[...] += gate_ref[0] * ye

    @pl.when(e == pl.num_programs(0) - 1)
    def _():
        o_ref[...] = acc_ref[...]


# ----------------------------------------------------------------------------
# JAX glue: RoPE cos/sin tables, routing bookkeeping, layout plumbing
# ----------------------------------------------------------------------------
def build_rope_tables(B, S, args):
    """cos/sin tables over the fused [q | kv_c | k_pe] projection lanes.

    Rope lanes get (cos, +/-sin); all other lanes get (1, 0) so the in-kernel
    elementwise rotation is identity there.  Sign layout matches
    view_as_complex pairing: y[2i] = x[2i]*cos - x[2i+1]*sin,
                             y[2i+1] = x[2i]*sin + x[2i+1]*cos.
    """
    H, dn, dr, dc = (args.n_heads, args.qk_nope_head_dim,
                     args.qk_rope_head_dim, args.kv_lora_rank)
    freqs = 1.0 / (args.rope_theta ** (jnp.arange(0, dr, 2, dtype=jnp.float32) / dr))
    t = jnp.arange(S, dtype=jnp.float32)
    ang = jnp.outer(t, freqs)                                    # (S, dr//2)
    cos2 = jnp.repeat(jnp.cos(ang), 2, axis=-1)                  # (S, dr)
    sin2 = jnp.stack([-jnp.sin(ang), jnp.sin(ang)], axis=-1).reshape(S, dr)
    ones_n = jnp.ones((S, dn), jnp.float32)
    zeros_n = jnp.zeros((S, dn), jnp.float32)
    cos_head = jnp.concatenate([ones_n, cos2], axis=-1)          # per-head (S, dn+dr)
    sin_head = jnp.concatenate([zeros_n, sin2], axis=-1)
    cos_row = jnp.concatenate([jnp.tile(cos_head, (1, H)),
                               jnp.ones((S, dc), jnp.float32), cos2], axis=-1)
    sin_row = jnp.concatenate([jnp.tile(sin_head, (1, H)),
                               jnp.zeros((S, dc), jnp.float32), sin2], axis=-1)
    return jnp.tile(cos_row, (B, 1)), jnp.tile(sin_row, (B, 1))  # (B*S, lanes)


def block_forward(p, x, cos_t, sin_t, mask, args, softmax_scale):
    B, S, D = x.shape
    H = args.n_heads
    dn, dr = args.qk_nope_head_dim, args.qk_rope_head_dim
    dv, dc = args.v_head_dim, args.kv_lora_rank
    qk = dn + dr
    E = args.n_routed_experts
    Im = args.moe_inter_dim
    Ish = args.n_shared_experts * args.moe_inter_dim
    M = B * S
    P1 = H * qk + dc + dr

    xf = x.reshape(M, D)

    # --- K1: fused attn-norm + QKV projections + RoPE + kv-norm + wkv_b --------
    rot, kvb = pl.pallas_call(
        partial(_qkv_rope_kernel, eps=1e-6, q_width=H * qk, c_width=dc),
        out_shape=(jax.ShapeDtypeStruct((M, P1), jnp.bfloat16),
                   jax.ShapeDtypeStruct((M, H * (dn + dv)), jnp.bfloat16)),
    )(xf, p["attn_norm"], p["wcat_t"], p["wswap_t"], cos_t, sin_t,
      p["kv_norm"], p["wkv_b_t"])

    # head-major assembly (tiny XLA reshapes / transposes)
    q = rot[:, :H * qk].reshape(B, S, H, qk)
    k_pe = rot[:, H * qk + dc:].reshape(B, S, 1, dr)
    kvb = kvb.reshape(B, S, H, dn + dv)
    k_nope, v = kvb[..., :dn], kvb[..., dn:]
    k = jnp.concatenate([k_nope, jnp.broadcast_to(k_pe, (B, S, H, dr))], axis=-1)

    def to_bh(t):
        return jnp.transpose(t, (0, 2, 1, 3)).reshape(B * H, S, t.shape[-1])

    # --- K2: attention + wo + residual + ffn-norm + gate logits ---------------
    h, hn, logits = pl.pallas_call(
        partial(_attn_wo_gate_kernel, scale=softmax_scale,
                batch=B, heads=H, seq=S, eps=1e-6),
        out_shape=(jax.ShapeDtypeStruct((M, D), jnp.float32),
                   jax.ShapeDtypeStruct((M, D), jnp.bfloat16),
                   jax.ShapeDtypeStruct((M, E), jnp.float32)),
    )(to_bh(q), to_bh(k), to_bh(v), mask, p["wo_t"], xf,
      p["ffn_norm"], p["gate_w_t"])

    # Routing: softmax + top-k -> dense per-(token, expert) gate weights.
    # TODO(synk): top-k / scatter routing has no clean Pallas equivalent; done in JAX.
    scores = jax.nn.softmax(logits, axis=-1)
    weights, indices = jax.lax.top_k(scores, args.n_activated_experts)
    weights = weights * args.route_scale
    gate_dense = jnp.sum(weights[..., None]
                         * jax.nn.one_hot(indices, E, dtype=jnp.float32), axis=1)
    gate_t = gate_dense.T.reshape(E, M, 1)

    # --- K3: single gridded MoE kernel (routed + shared experts + residual) ---
    out = pl.pallas_call(
        _moe_kernel,
        out_shape=jax.ShapeDtypeStruct((M, D), jnp.float32),
        grid=(E,),
        in_specs=[
            pl.BlockSpec((M, D), lambda e: (0, 0)),            # hn
            pl.BlockSpec((1, M, 1), lambda e: (e, 0, 0)),      # per-expert gates
            pl.BlockSpec((M, D), lambda e: (0, 0)),            # residual h
            pl.BlockSpec((1, D, Im), lambda e: (e, 0, 0)),     # expert w1^T
            pl.BlockSpec((1, D, Im), lambda e: (e, 0, 0)),     # expert w3^T
            pl.BlockSpec((1, Im, D), lambda e: (e, 0, 0)),     # expert w2^T
            pl.BlockSpec((D, Ish), lambda e: (0, 0)),          # shared w1^T
            pl.BlockSpec((D, Ish), lambda e: (0, 0)),          # shared w3^T
            pl.BlockSpec((Ish, D), lambda e: (0, 0)),          # shared w2^T
        ],
        out_specs=pl.BlockSpec((M, D), lambda e: (0, 0)),
        scratch_shapes=[pltpu.VMEM((M, D), jnp.float32)],
        compiler_params=pltpu.CompilerParams(
            dimension_semantics=("arbitrary",)),
    )(hn, gate_t, h, p["e_w1_t"], p["e_w3_t"], p["e_w2_t"],
      p["s_w1_t"], p["s_w3_t"], p["s_w2_t"])

    return out.reshape(B, S, D)


# ----------------------------------------------------------------------------
# Deterministic parameter init (shapes follow the PyTorch module __init__,
# then pre-transposed to [in, out] bf16 for the MXU)
# ----------------------------------------------------------------------------
def init_params(key, args):
    H = args.n_heads
    dn, dr = args.qk_nope_head_dim, args.qk_rope_head_dim
    dv, dc = args.v_head_dim, args.kv_lora_rank
    qk = dn + dr
    D = args.dim
    E = args.n_routed_experts
    Im = args.moe_inter_dim
    Ish = args.n_shared_experts * args.moe_inter_dim
    keys = iter(jax.random.split(key, 64))

    def w(shape):
        return 0.02 * jax.random.normal(next(keys), shape, jnp.float32)

    bf = jnp.bfloat16
    # PyTorch layout [out, in]
    wq = w((H * qk, D))
    wkv_a = w((dc + dr, D))
    wkv_b = w((H * (dn + dv), dc))
    wo = w((D, H * dv))
    gate_w = w((E, D))
    e_w1 = jnp.stack([w((Im, D)) for _ in range(E)])
    e_w2 = jnp.stack([w((D, Im)) for _ in range(E)])
    e_w3 = jnp.stack([w((Im, D)) for _ in range(E)])
    s_w1, s_w2, s_w3 = w((Ish, D)), w((D, Ish)), w((Ish, D))

    # Fused [wq | wkv_a]^T and its column-pair-swapped copy (for in-kernel RoPE).
    wcat_t = jnp.concatenate([wq, wkv_a], axis=0).T            # (D, H*qk+dc+dr)
    P = wcat_t.shape[1]
    wswap_t = wcat_t.reshape(D, P // 2, 2)[:, :, ::-1].reshape(D, P)

    return {
        "attn_norm": jnp.ones((1, D), jnp.float32),
        "ffn_norm": jnp.ones((1, D), jnp.float32),
        "kv_norm": jnp.ones((1, dc), jnp.float32),
        "wcat_t": wcat_t.astype(bf),
        "wswap_t": wswap_t.astype(bf),
        "wkv_b_t": wkv_b.T.astype(bf),                         # (dc, H*(dn+dv))
        "wo_t": wo.T.reshape(H, dv, D).astype(bf),             # (H, dv, D)
        "gate_w_t": gate_w.T.astype(bf),                       # (D, E)
        "e_w1_t": jnp.transpose(e_w1, (0, 2, 1)).astype(bf),   # (E, D, Im)
        "e_w3_t": jnp.transpose(e_w3, (0, 2, 1)).astype(bf),
        "e_w2_t": jnp.transpose(e_w2, (0, 2, 1)).astype(bf),   # (E, Im, D)
        "s_w1_t": s_w1.T.astype(bf),                           # (D, Ish)
        "s_w3_t": s_w3.T.astype(bf),
        "s_w2_t": s_w2.T.astype(bf),                           # (Ish, D)
    }


# ----------------------------------------------------------------------------
if __name__ == "__main__":
    args = Args()
    B, S = 2, 8

    # softmax scale exactly as in MLA.__init__
    qk_head_dim = args.qk_nope_head_dim + args.qk_rope_head_dim
    softmax_scale = qk_head_dim ** (-0.5)
    if args.max_seq_len > args.original_seq_len:
        mscale = 0.1 * args.mscale * math.log(args.rope_factor) + 1.0
        softmax_scale = softmax_scale * mscale * mscale

    key = jax.random.PRNGKey(0)
    kp, kx = jax.random.split(key)
    params = init_params(kp, args)
    x = jax.random.normal(kx, (B, S, args.dim), jnp.float32)

    cos_t, sin_t = build_rope_tables(B, S, args)
    mask = jnp.triu(jnp.full((S, S), float("-inf"), jnp.float32), k=1)  # causal

    fwd = jax.jit(lambda p, xx, c, s_, m:
                  block_forward(p, xx, c, s_, m, args, softmax_scale))
    out = fwd(params, x, cos_t, sin_t, mask)
    jax.block_until_ready(out)

    assert out.shape == (B, S, args.dim) and out.dtype == jnp.float32
    assert bool(jnp.all(jnp.isfinite(out)))
    print("KERNEL_OK")
</pallas_src>

<mosaic_0001>
module attributes {stable_mosaic.version = 11 : i64} {
  func.func @_qkv_rope_kernel(%arg0: memref<16x64xf32, #tpu.memory_space<vmem>>, %arg1: memref<1x64xf32, #tpu.memory_space<vmem>>, %arg2: memref<64x160xbf16, #tpu.memory_space<vmem>>, %arg3: memref<64x160xbf16, #tpu.memory_space<vmem>>, %arg4: memref<16x160xf32, #tpu.memory_space<vmem>>, %arg5: memref<16x160xf32, #tpu.memory_space<vmem>>, %arg6: memref<1x16xf32, #tpu.memory_space<vmem>>, %arg7: memref<16x128xbf16, #tpu.memory_space<vmem>>, %arg8: memref<16x160xbf16, #tpu.memory_space<vmem>>, %arg9: memref<16x128xbf16, #tpu.memory_space<vmem>>) attributes {dimension_semantics = [], scalar_prefetch = 0 : i64, scratch_operands = 0 : i64, tpu.core_type = #tpu.core_type<tc>} {
    %c0 = arith.constant 0 : index
    %c0_0 = arith.constant 0 : index
    %0 = vector.load %arg0[%c0, %c0_0] : memref<16x64xf32, #tpu.memory_space<vmem>>, vector<16x64xf32>
    %1 = arith.mulf %0, %0 : vector<16x64xf32>
    %cst = arith.constant dense<0.000000e+00> : vector<16xf32>
    %2 = vector.multi_reduction <add>, %1, %cst [1] : vector<16x64xf32> to vector<16xf32>
    %3 = vector.shape_cast %2 : vector<16xf32> to vector<16x1xf32>
    %cst_1 = arith.constant 6.400000e+01 : f32
    %4 = vector.broadcast %cst_1 : f32 to vector<16x1xf32>
    %5 = arith.divf %3, %4 : vector<16x1xf32>
    %cst_2 = arith.constant 9.99999997E-7 : f32
    %6 = vector.broadcast %cst_2 : f32 to vector<16x1xf32>
    %7 = arith.addf %5, %6 : vector<16x1xf32>
    %8 = math.rsqrt %7 : vector<16x1xf32>
    %9 = vector.broadcast %8 : vector<16x1xf32> to vector<16x64xf32>
    %10 = arith.mulf %0, %9 : vector<16x64xf32>
    %c0_3 = arith.constant 0 : index
    %c0_4 = arith.constant 0 : index
    %11 = vector.load %arg1[%c0_3, %c0_4] : memref<1x64xf32, #tpu.memory_space<vmem>>, vector<1x64xf32>
    %12 = vector.broadcast %11 : vector<1x64xf32> to vector<16x64xf32>
    %13 = arith.mulf %10, %12 : vector<16x64xf32>
    %14 = arith.truncf %13 : vector<16x64xf32> to vector<16x64xbf16>
    %c0_5 = arith.constant 0 : index
    %c0_6 = arith.constant 0 : index
    %15 = vector.load %arg2[%c0_5, %c0_6] : memref<64x160xbf16, #tpu.memory_space<vmem>>, vector<64x160xbf16>
    %cst_7 = arith.constant dense<0.000000e+00> : vector<16x160xf32>
    %16 = tpu.matmul %14, %15, %cst_7 {dimension_numbers = #tpu.dot_dimension_numbers<[1], [0], [0], [1], [0, 0, 1, 1], [], []>} : vector<16x64xbf16>, vector<64x160xbf16>, vector<16x160xf32> -> vector<16x160xf32>
    %c0_8 = arith.constant 0 : index
    %c0_9 = arith.constant 0 : index
    %17 = vector.load %arg3[%c0_8, %c0_9] : memref<64x160xbf16, #tpu.memory_space<vmem>>, vector<64x160xbf16>
    %cst_10 = arith.constant dense<0.000000e+00> : vector<16x160xf32>
    %18 = tpu.matmul %14, %17, %cst_10 {dimension_numbers = #tpu.dot_dimension_numbers<[1], [0], [0], [1], [0, 0, 1, 1], [], []>} : vector<16x64xbf16>, vector<64x160xbf16>, vector<16x160xf32> -> vector<16x160xf32>
    %c0_11 = arith.constant 0 : index
    %c0_12 = arith.constant 0 : index
    %19 = vector.load %arg4[%c0_11, %c0_12] : memref<16x160xf32, #tpu.memory_space<vmem>>, vector<16x160xf32>
    %20 = arith.mulf %16, %19 : vector<16x160xf32>
    %c0_13 = arith.constant 0 : index
    %c0_14 = arith.constant 0 : index
    %21 = vector.load %arg5[%c0_13, %c0_14] : memref<16x160xf32, #tpu.memory_space<vmem>>, vector<16x160xf32>
    %22 = arith.mulf %18, %21 : vector<16x160xf32>
    %23 = arith.addf %20, %22 : vector<16x160xf32>
    %24 = arith.truncf %23 : vector<16x160xf32> to vector<16x160xbf16>
    %c0_15 = arith.constant 0 : index
    %c0_16 = arith.constant 0 : index
    %25 = vector.load %arg8[%c0_15, %c0_16] : memref<16x160xbf16, #tpu.memory_space<vmem>>, vector<16x160xbf16>
    tpu.vector_store %arg8[%c0_15, %c0_16], %24 {strides = array<i32>} : memref<16x160xbf16, #tpu.memory_space<vmem>>, vector<16x160xbf16>,
    %26 = vector.extract_strided_slice %23 {offsets = [0, 128], sizes = [16, 16], strides = [1, 1]} : vector<16x160xf32> to vector<16x16xf32>
    %27 = arith.mulf %26, %26 : vector<16x16xf32>
    %cst_17 = arith.constant dense<0.000000e+00> : vector<16xf32>
    %28 = vector.multi_reduction <add>, %27, %cst_17 [1] : vector<16x16xf32> to vector<16xf32>
    %29 = vector.shape_cast %28 : vector<16xf32> to vector<16x1xf32>
    %cst_18 = arith.constant 1.600000e+01 : f32
    %30 = vector.broadcast %cst_18 : f32 to vector<16x1xf32>
    %31 = arith.divf %29, %30 : vector<16x1xf32>
    %cst_19 = arith.constant 9.99999997E-7 : f32
    %32 = vector.broadcast %cst_19 : f32 to vector<16x1xf32>
    %33 = arith.addf %31, %32 : vector<16x1xf32>
    %34 = math.rsqrt %33 : vector<16x1xf32>
    %35 = vector.broadcast %34 : vector<16x1xf32> to vector<16x16xf32>
    %36 = arith.mulf %26, %35 : vector<16x16xf32>
    %c0_20 = arith.constant 0 : index
    %c0_21 = arith.constant 0 : index
    %37 = vector.load %arg6[%c0_20, %c0_21] : memref<1x16xf32, #tpu.memory_space<vmem>>, vector<1x16xf32>
    %38 = vector.broadcast %37 : vector<1x16xf32> to vector<16x16xf32>
    %39 = arith.mulf %36, %38 : vector<16x16xf32>
    %40 = arith.truncf %39 : vector<16x16xf32> to vector<16x16xbf16>
    %c0_22 = arith.constant 0 : index
    %c0_23 = arith.constant 0 : index
    %41 = vector.load %arg7[%c0_22, %c0_23] : memref<16x128xbf16, #tpu.memory_space<vmem>>, vector<16x128xbf16>
    %cst_24 = arith.constant dense<0.000000e+00> : vector<16x128xf32>
    %42 = tpu.matmul %40, %41, %cst_24 {dimension_numbers = #tpu.dot_dimension_numbers<[1], [0], [0], [1], [0, 0, 1, 1], [], []>} : vector<16x16xbf16>, vector<16x128xbf16>, vector<16x128xf32> -> vector<16x128xf32>
    %43 = arith.truncf %42 : vector<16x128xf32> to vector<16x128xbf16>
    %c0_25 = arith.constant 0 : index
    %c0_26 = arith.constant 0 : index
    %44 = vector.load %arg9[%c0_25, %c0_26] : memref<16x128xbf16, #tpu.memory_space<vmem>>, vector<16x128xbf16>
    tpu.vector_store %arg9[%c0_25, %c0_26], %43 {strides = array<i32>} : memref<16x128xbf16, #tpu.memory_space<vmem>>, vector<16x128xbf16>,
    return
  }
}

module attributes {stable_mosaic.version = 11 : i64} {
  func.func @_attn_wo_gate_kernel(%arg0: memref<8x8x32xbf16, #tpu.memory_space<vmem>>, %arg1: memref<8x8x32xbf16, #tpu.memory_space<vmem>>, %arg2: memref<8x8x16xbf16, #tpu.memory_space<vmem>>, %arg3: memref<8x8xf32, #tpu.memory_space<vmem>>, %arg4: memref<4x16x64xbf16, #tpu.memory_space<vmem>>, %arg5: memref<16x64xf32, #tpu.memory_space<vmem>>, %arg6: memref<1x64xf32, #tpu.memory_space<vmem>>, %arg7: memref<64x8xbf16, #tpu.memory_space<vmem>>, %arg8: memref<16x64xf32, #tpu.memory_space<vmem>>, %arg9: memref<16x64xbf16, #tpu.memory_space<vmem>>, %arg10: memref<16x8xf32, #tpu.memory_space<vmem>>) attributes {dimension_semantics = [], scalar_prefetch = 0 : i64, scratch_operands = 0 : i64, tpu.core_type = #tpu.core_type<tc>} {
    %c0 = arith.constant 0 : index
    %c0_0 = arith.constant 0 : index
    %c0_1 = arith.constant 0 : index
    %0 = vector.load %arg0[%c0, %c0_0, %c0_1] : memref<8x8x32xbf16, #tpu.memory_space<vmem>>, vector<8x8x32xbf16>
    %c0_2 = arith.constant 0 : index
    %c0_3 = arith.constant 0 : index
    %c0_4 = arith.constant 0 : index
    %1 = vector.load %arg1[%c0_2, %c0_3, %c0_4] : memref<8x8x32xbf16, #tpu.memory_space<vmem>>, vector<8x8x32xbf16>
    "tpu.trace_start"() <{level = 10 : i32, message = "bqd,bkd->bqk"}> : () -> ()
    %cst = arith.constant dense<0.000000e+00> : vector<8x8x8xf32>
    %2 = tpu.matmul %0, %1, %cst {dimension_numbers = #tpu.dot_dimension_numbers<[2], [2], [1], [1], [0, 0, 0, 1, 1, 1], [0], [0]>} : vector<8x8x32xbf16>, vector<8x8x32xbf16>, vector<8x8x8xf32> -> vector<8x8x8xf32>
    "tpu.trace_stop"() : () -> ()
    %cst_5 = arith.constant 0.331253767 : f32
    %3 = vector.broadcast %cst_5 : f32 to vector<8x8x8xf32>
    %4 = arith.mulf %2, %3 : vector<8x8x8xf32>
    %c0_6 = arith.constant 0 : index
    %c0_7 = arith.constant 0 : index
    %5 = vector.load %arg3[%c0_6, %c0_7] : memref<8x8xf32, #tpu.memory_space<vmem>>, vector<8x8xf32>
    %6 = vector.shape_cast %5 : vector<8x8xf32> to vector<1x8x8xf32>
    %7 = vector.broadcast %6 : vector<1x8x8xf32> to vector<8x8x8xf32>
    %8 = arith.addf %4, %7 : vector<8x8x8xf32>
    %cst_8 = arith.constant dense<0xFF800000> : vector<8x8xf32>
    %9 = vector.multi_reduction <maximumf>, %8, %cst_8 [2] : vector<8x8x8xf32> to vector<8x8xf32>
    %10 = vector.shape_cast %9 : vector<8x8xf32> to vector<8x8x1xf32>
    %11 = vector.broadcast %10 : vector<8x8x1xf32> to vector<8x8x8xf32>
    %12 = arith.subf %8, %11 : vector<8x8x8xf32>
    %13 = math.exp %12 : vector<8x8x8xf32>
    %cst_9 = arith.constant dense<0.000000e+00> : vector<8x8xf32>
    %14 = vector.multi_reduction <add>, %13, %cst_9 [2] : vector<8x8x8xf32> to vector<8x8xf32>
    %15 = vector.shape_cast %14 : vector<8x8xf32> to vector<8x8x1xf32>
    %16 = tpu.reciprocal %15 {approx = true} : vector<8x8x1xf32> -> vector<8x8x1xf32>
    %17 = vector.broadcast %16 : vector<8x8x1xf32> to vector<8x8x8xf32>
    %18 = arith.mulf %13, %17 : vector<8x8x8xf32>
    %19 = arith.truncf %18 : vector<8x8x8xf32> to vector<8x8x8xbf16>
    %c0_10 = arith.constant 0 : index
    %c0_11 = arith.constant 0 : index
    %c0_12 = arith.constant 0 : index
    %20 = vector.load %arg2[%c0_10, %c0_11, %c0_12] : memref<8x8x16xbf16, #tpu.memory_space<vmem>>, vector<8x8x16xbf16>
    "tpu.trace_start"() <{level = 10 : i32, message = "bqk,bkd->bqd"}> : () -> ()
    %cst_13 = arith.constant dense<0.000000e+00> : vector<8x8x16xf32>
    %21 = tpu.matmul %19, %20, %cst_13 {dimension_numbers = #tpu.dot_dimension_numbers<[2], [1], [1], [2], [0, 0, 0, 1, 1, 2], [0], [0]>} : vector<8x8x8xbf16>, vector<8x8x16xbf16>, vector<8x8x16xf32> -> vector<8x8x16xf32>
    "tpu.trace_stop"() : () -> ()
    %c0_14 = arith.constant 0 : index
    %c0_15 = arith.constant 0 : index
    %22 = vector.load %arg5[%c0_14, %c0_15] : memref<16x64xf32, #tpu.memory_space<vmem>>, vector<16x64xf32>
    %23 = vector.extract_strided_slice %22 {offsets = [0, 0], sizes = [8, 64], strides = [1, 1]} : vector<16x64xf32> to vector<8x64xf32>
    %24 = vector.extract_strided_slice %21 {offsets = [0, 0, 0], sizes = [1, 8, 16], strides = [1, 1, 1]} : vector<8x8x16xf32> to vector<1x8x16xf32>
    %25 = vector.shape_cast %24 : vector<1x8x16xf32> to vector<8x16xf32>
    %26 = arith.truncf %25 : vector<8x16xf32> to vector<8x16xbf16>
    %c0_16 = arith.constant 0 : index
    %c0_17 = arith.constant 0 : index
    %c0_18 = arith.constant 0 : index
    %27 = vector.load %arg4[%c0_16, %c0_17, %c0_18] : memref<4x16x64xbf16, #tpu.memory_space<vmem>>, vector<1x16x64xbf16>
    %28 = vector.shape_cast %27 : vector<1x16x64xbf16> to vector<16x64xbf16>
    %cst_19 = arith.constant dense<0.000000e+00> : vector<8x64xf32>
    %29 = tpu.matmul %26, %28, %cst_19 {dimension_numbers = #tpu.dot_dimension_numbers<[1], [0], [0], [1], [0, 0, 1, 1], [], []>} : vector<8x16xbf16>, vector<16x64xbf16>, vector<8x64xf32> -> vector<8x64xf32>
    %30 = arith.addf %23, %29 : vector<8x64xf32>
    %31 = vector.extract_strided_slice %21 {offsets = [1, 0, 0], sizes = [1, 8, 16], strides = [1, 1, 1]} : vector<8x8x16xf32> to vector<1x8x16xf32>
    %32 = vector.shape_cast %31 : vector<1x8x16xf32> to vector<8x16xf32>
    %33 = arith.truncf %32 : vector<8x16xf32> to vector<8x16xbf16>
    %c1 = arith.constant 1 : index
    %c0_20 = arith.constant 0 : index
    %c0_21 = arith.constant 0 : index
    %34 = vector.load %arg4[%c1, %c0_20, %c0_21] : memref<4x16x64xbf16, #tpu.memory_space<vmem>>, vector<1x16x64xbf16>
    %35 = vector.shape_cast %34 : vector<1x16x64xbf16> to vector<16x64xbf16>
    %cst_22 = arith.constant dense<0.000000e+00> : vector<8x64xf32>
    %36 = tpu.matmul %33, %35, %cst_22 {dimension_numbers = #tpu.dot_dimension_numbers<[1], [0], [0], [1], [0, 0, 1, 1], [], []>} : vector<8x16xbf16>, vector<16x64xbf16>, vector<8x64xf32> -> vector<8x64xf32>
    %37 = arith.addf %30, %36 : vector<8x64xf32>
    %38 = vector.extract_strided_slice %21 {offsets = [2, 0, 0], sizes = [1, 8, 16], strides = [1, 1, 1]} : vector<8x8x16xf32> to vector<1x8x16xf32>
    %39 = vector.shape_cast %38 : vector<1x8x16xf32> to vector<8x16xf32>
    %40 = arith.truncf %39 : vector<8x16xf32> to vector<8x16xbf16>
    %c2 = arith.constant 2 : index
    %c0_23 = arith.constant 0 : index
    %c0_24 = arith.constant 0 : index
    %41 = vector.load %arg4[%c2, %c0_23, %c0_24] : memref<4x16x64xbf16, #tpu.memory_space<vmem>>, vector<1x16x64xbf16>
    %42 = vector.shape_cast %41 : vector<1x16x64xbf16> to vector<16x64xbf16>
    %cst_25 = arith.constant dense<0.000000e+00> : vector<8x64xf32>
    %43 = tpu.matmul %40, %42, %cst_25 {dimension_numbers = #tpu.dot_dimension_numbers<[1], [0], [0], [1], [0, 0, 1, 1], [], []>} : vector<8x16xbf16>, vector<16x64xbf16>, vector<8x64xf32> -> vector<8x64xf32>
    %44 = arith.addf %37, %43 : vector<8x64xf32>
    %45 = vector.extract_strided_slice %21 {offsets = [3, 0, 0], sizes = [1, 8, 16], strides = [1, 1, 1]} : vector<8x8x16xf32> to vector<1x8x16xf32>
    %46 = vector.shape_cast %45 : vector<1x8x16xf32> to vector<8x16xf32>
    %47 = arith.truncf %46 : vector<8x16xf32> to vector<8x16xbf16>
    %c3 = arith.constant 3 : index
    %c0_26 = arith.constant 0 : index
    %c0_27 = arith.constant 0 : index
    %48 = vector.load %arg4[%c3, %c0_26, %c0_27] : memref<4x16x64xbf16, #tpu.memory_space<vmem>>, vector<1x16x64xbf16>
    %49 = vector.shape_cast %48 : vector<1x16x64xbf16> to vector<16x64xbf16>
    %cst_28 = arith.constant dense<0.000000e+00> : vector<8x64xf32>
    %50 = tpu.matmul %47, %49, %cst_28 {dimension_numbers = #tpu.dot_dimension_numbers<[1], [0], [0], [1], [0, 0, 1, 1], [], []>} : vector<8x16xbf16>, vector<16x64xbf16>, vector<8x64xf32> -> vector<8x64xf32>
    %51 = arith.addf %44, %50 : vector<8x64xf32>
    %52 = vector.extract_strided_slice %22 {offsets = [8, 0], sizes = [8, 64], strides = [1, 1]} : vector<16x64xf32> to vector<8x64xf32>
    %53 = vector.extract_strided_slice %21 {offsets = [4, 0, 0], sizes = [1, 8, 16], strides = [1, 1, 1]} : vector<8x8x16xf32> to vector<1x8x16xf32>
    %54 = vector.shape_cast %53 : vector<1x8x16xf32> to vector<8x16xf32>
    %55 = arith.truncf %54 : vector<8x16xf32> to vector<8x16xbf16>
    %c0_29 = arith.constant 0 : index
    %c0_30 = arith.constant 0 : index
    %c0_31 = arith.constant 0 : index
    %56 = vector.load %arg4[%c0_29, %c0_30, %c0_31] : memref<4x16x64xbf16, #tpu.memory_space<vmem>>, vector<1x16x64xbf16>
    %57 = vector.shape_cast %56 : vector<1x16x64xbf16> to vector<16x64xbf16>
    %cst_32 = arith.constant dense<0.000000e+00> : vector<8x64xf32>
    %58 = tpu.matmul %55, %57, %cst_32 {dimension_numbers = #tpu.dot_dimension_numbers<[1], [0], [0], [1], [0, 0, 1, 1], [], []>} : vector<8x16xbf16>, vector<16x64xbf16>, vector<8x64xf32> -> vector<8x64xf32>
    %59 = arith.addf %52, %58 : vector<8x64xf32>
    %60 = vector.extract_strided_slice %21 {offsets = [5, 0, 0], sizes = [1, 8, 16], strides = [1, 1, 1]} : vector<8x8x16xf32> to vector<1x8x16xf32>
    %61 = vector.shape_cast %60 : vector<1x8x16xf32> to vector<8x16xf32>
    %62 = arith.truncf %61 : vector<8x16xf32> to vector<8x16xbf16>
    %c1_33 = arith.constant 1 : index
    %c0_34 = arith.constant 0 : index
    %c0_35 = arith.constant 0 : index
    %63 = vector.load %arg4[%c1_33, %c0_34, %c0_35] : memref<4x16x64xbf16, #tpu.memory_space<vmem>>, vector<1x16x64xbf16>
    %64 = vector.shape_cast %63 : vector<1x16x64xbf16> to vector<16x64xbf16>
    %cst_36 = arith.constant dense<0.000000e+00> : vector<8x64xf32>
    %65 = tpu.matmul %62, %64, %cst_36 {dimension_numbers = #tpu.dot_dimension_numbers<[1], [0], [0], [1], [0, 0, 1, 1], [], []>} : vector<8x16xbf16>, vector<16x64xbf16>, vector<8x64xf32> -> vector<8x64xf32>
    %66 = arith.addf %59, %65 : vector<8x64xf32>
    %67 = vector.extract_strided_slice %21 {offsets = [6, 0, 0], sizes = [1, 8, 16], strides = [1, 1, 1]} : vector<8x8x16xf32> to vector<1x8x16xf32>
    %68 = vector.shape_cast %67 : vector<1x8x16xf32> to vector<8x16xf32>
    %69 = arith.truncf %68 : vector<8x16xf32> to vector<8x16xbf16>
    %c2_37 = arith.constant 2 : index
    %c0_38 = arith.constant 0 : index
    %c0_39 = arith.constant 0 : index
    %70 = vector.load %arg4[%c2_37, %c0_38, %c0_39] : memref<4x16x64xbf16, #tpu.memory_space<vmem>>, vector<1x16x64xbf16>
    %71 = vector.shape_cast %70 : vector<1x16x64xbf16> to vector<16x64xbf16>
    %cst_40 = arith.constant dense<0.000000e+00> : vector<8x64xf32>
    %72 = tpu.matmul %69, %71, %cst_40 {dimension_numbers = #tpu.dot_dimension_numbers<[1], [0], [0], [1], [0, 0, 1, 1], [], []>} : vector<8x16xbf16>, vector<16x64xbf16>, vector<8x64xf32> -> vector<8x64xf32>
    %73 = arith.addf %66, %72 : vector<8x64xf32>
    %74 = vector.extract_strided_slice %21 {offsets = [7, 0, 0], sizes = [1, 8, 16], strides = [1, 1, 1]} : vector<8x8x16xf32> to vector<1x8x16xf32>
    %75 = vector.shape_cast %74 : vector<1x8x16xf32> to vector<8x16xf32>
    %76 = arith.truncf %75 : vector<8x16xf32> to vector<8x16xbf16>
    %c3_41 = arith.constant 3 : index
    %c0_42 = arith.constant 0 : index
    %c0_43 = arith.constant 0 : index
    %77 = vector.load %arg4[%c3_41, %c0_42, %c0_43] : memref<4x16x64xbf16, #tpu.memory_space<vmem>>, vector<1x16x64xbf16>
    %78 = vector.shape_cast %77 : vector<1x16x64xbf16> to vector<16x64xbf16>
    %cst_44 = arith.constant dense<0.000000e+00> : vector<8x64xf32>
    %79 = tpu.matmul %76, %78, %cst_44 {dimension_numbers = #tpu.dot_dimension_numbers<[1], [0], [0], [1], [0, 0, 1, 1], [], []>} : vector<8x16xbf16>, vector<16x64xbf16>, vector<8x64xf32> -> vector<8x64xf32>
    %80 = arith.addf %73, %79 : vector<8x64xf32>
    %81 = tpu.concatenate %51, %80 in 0 : vector<8x64xf32>, vector<8x64xf32> -> vector<16x64xf32>
    %c0_45 = arith.constant 0 : index
    %c0_46 = arith.constant 0 : index
    %82 = vector.load %arg8[%c0_45, %c0_46] : memref<16x64xf32, #tpu.memory_space<vmem>>, vector<16x64xf32>
    tpu.vector_store %arg8[%c0_45, %c0_46], %81 {strides = array<i32>} : memref<16x64xf32, #tpu.memory_space<vmem>>, vector<16x64xf32>,
    %83 = arith.mulf %81, %81 : vector<16x64xf32>
    %cst_47 = arith.constant dense<0.000000e+00> : vector<16xf32>
    %84 = vector.multi_reduction <add>, %83, %cst_47 [1] : vector<16x64xf32> to vector<16xf32>
    %85 = vector.shape_cast %84 : vector<16xf32> to vector<16x1xf32>
    %cst_48 = arith.constant 6.400000e+01 : f32
    %86 = vector.broadcast %cst_48 : f32 to vector<16x1xf32>
    %87 = arith.divf %85, %86 : vector<16x1xf32>
    %cst_49 = arith.constant 9.99999997E-7 : f32
    %88 = vector.broadcast %cst_49 : f32 to vector<16x1xf32>
    %89 = arith.addf %87, %88 : vector<16x1xf32>
    %90 = math.rsqrt %89 : vector<16x1xf32>
    %91 = vector.broadcast %90 : vector<16x1xf32> to vector<16x64xf32>
    %92 = arith.mulf %81, %91 : vector<16x64xf32>
    %c0_50 = arith.constant 0 : index
    %c0_51 = arith.constant 0 : index
    %93 = vector.load %arg6[%c0_50, %c0_51] : memref<1x64xf32, #tpu.memory_space<vmem>>, vector<1x64xf32>
    %94 = vector.broadcast %93 : vector<1x64xf32> to vector<16x64xf32>
    %95 = arith.mulf %92, %94 : vector<16x64xf32>
    %96 = arith.truncf %95 : vector<16x64xf32> to vector<16x64xbf16>
    %c0_52 = arith.constant 0 : index
    %c0_53 = arith.constant 0 : index
    %97 = vector.load %arg9[%c0_52, %c0_53] : memref<16x64xbf16, #tpu.memory_space<vmem>>, vector<16x64xbf16>
    tpu.vector_store %arg9[%c0_52, %c0_53], %96 {strides = array<i32>} : memref<16x64xbf16, #tpu.memory_space<vmem>>, vector<16x64xbf16>,
    %98 = arith.truncf %95 : vector<16x64xf32> to vector<16x64xbf16>
    %c0_54 = arith.constant 0 : index
    %c0_55 = arith.constant 0 : index
    %99 = vector.load %arg7[%c0_54, %c0_55] : memref<64x8xbf16, #tpu.memory_space<vmem>>, vector<64x8xbf16>
    %cst_56 = arith.constant dense<0.000000e+00> : vector<16x8xf32>
    %100 = tpu.matmul %98, %99, %cst_56 {dimension_numbers = #tpu.dot_dimension_numbers<[1], [0], [0], [1], [0, 0, 1, 1], [], []>} : vector<16x64xbf16>, vector<64x8xbf16>, vector<16x8xf32> -> vector<16x8xf32>
    %c0_57 = arith.constant 0 : index
    %c0_58 = arith.constant 0 : index
    %101 = vector.load %arg10[%c0_57, %c0_58] : memref<16x8xf32, #tpu.memory_space<vmem>>, vector<16x8xf32>
    tpu.vector_store %arg10[%c0_57, %c0_58], %100 {strides = array<i32>} : memref<16x8xf32, #tpu.memory_space<vmem>>, vector<16x8xf32>,
    return
  }
}

module attributes {stable_mosaic.version = 11 : i64} {
  func.func @_moe_kernel(%arg0: i32, %arg1: memref<16x64xbf16, #tpu.memory_space<vmem>>, %arg2: memref<1x16x1xf32, #tpu.memory_space<vmem>>, %arg3: memref<16x64xf32, #tpu.memory_space<vmem>>, %arg4: memref<1x64x64xbf16, #tpu.memory_space<vmem>>, %arg5: memref<1x64x64xbf16, #tpu.memory_space<vmem>>, %arg6: memref<1x64x64xbf16, #tpu.memory_space<vmem>>, %arg7: memref<64x128xbf16, #tpu.memory_space<vmem>>, %arg8: memref<64x128xbf16, #tpu.memory_space<vmem>>, %arg9: memref<128x64xbf16, #tpu.memory_space<vmem>>, %arg10: memref<16x64xf32, #tpu.memory_space<vmem>>, %arg11: memref<16x64xf32, #tpu.memory_space<vmem>>) attributes {dimension_semantics = [#tpu.dimension_semantics<arbitrary>], iteration_bounds = array<i64: 8>, scalar_prefetch = 0 : i64, scratch_operands = 1 : i64, tpu.core_type = #tpu.core_type<tc>, window_params = [{pipeline_mode = #tpu.pipeline_mode<synchronous>, transform_indices = @transform_0, window_bounds = array<i64: 16, 64>}, {transform_indices = @transform_1, window_bounds = array<i64: 1, 16, 1>}, {pipeline_mode = #tpu.pipeline_mode<synchronous>, transform_indices = @transform_2, window_bounds = array<i64: 16, 64>}, {transform_indices = @transform_3, window_bounds = array<i64: 1, 64, 64>}, {transform_indices = @transform_4, window_bounds = array<i64: 1, 64, 64>}, {transform_indices = @transform_5, window_bounds = array<i64: 1, 64, 64>}, {pipeline_mode = #tpu.pipeline_mode<synchronous>, transform_indices = @transform_6, window_bounds = array<i64: 64, 128>}, {pipeline_mode = #tpu.pipeline_mode<synchronous>, transform_indices = @transform_7, window_bounds = array<i64: 64, 128>}, {pipeline_mode = #tpu.pipeline_mode<synchronous>, transform_indices = @transform_8, window_bounds = array<i64: 128, 64>}, {pipeline_mode = #tpu.pipeline_mode<synchronous>, transform_indices = @transform_9, window_bounds = array<i64: 16, 64>}]} {
    %c0 = arith.constant 0 : index
    %c0_0 = arith.constant 0 : index
    %0 = vector.load %arg1[%c0, %c0_0] : memref<16x64xbf16, #tpu.memory_space<vmem>>, vector<16x64xbf16>
    %c0_i32 = arith.constant 0 : i32
    %1 = arith.cmpi eq, %arg0, %c0_i32 : i32
    %2 = arith.extui %1 : i1 to i32
    %c0_i32_1 = arith.constant 0 : i32
    %3 = arith.cmpi ne, %2, %c0_i32_1 : i32
    scf.if %3 {
      %c0_22 = arith.constant 0 : index
      %c0_23 = arith.constant 0 : index
      %31 = vector.load %arg7[%c0_22, %c0_23] : memref<64x128xbf16, #tpu.memory_space<vmem>>, vector<64x128xbf16>
      %cst_24 = arith.constant dense<0.000000e+00> : vector<16x128xf32>
      %32 = tpu.matmul %0, %31, %cst_24 {dimension_numbers = #tpu.dot_dimension_numbers<[1], [0], [0], [1], [0, 0, 1, 1], [], []>} : vector<16x64xbf16>, vector<64x128xbf16>, vector<16x128xf32> -> vector<16x128xf32>
      %c0_25 = arith.constant 0 : index
      %c0_26 = arith.constant 0 : index
      %33 = vector.load %arg8[%c0_25, %c0_26] : memref<64x128xbf16, #tpu.memory_space<vmem>>, vector<64x128xbf16>
      %cst_27 = arith.constant dense<0.000000e+00> : vector<16x128xf32>
      %34 = tpu.matmul %0, %33, %cst_27 {dimension_numbers = #tpu.dot_dimension_numbers<[1], [0], [0], [1], [0, 0, 1, 1], [], []>} : vector<16x64xbf16>, vector<64x128xbf16>, vector<16x128xf32> -> vector<16x128xf32>
      %35 = arith.negf %32 : vector<16x128xf32>
      %36 = math.exp %35 : vector<16x128xf32>
      %cst_28 = arith.constant 1.000000e+00 : f32
      %37 = vector.broadcast %cst_28 : f32 to vector<16x128xf32>
      %38 = arith.addf %37, %36 : vector<16x128xf32>
      %39 = arith.divf %37, %38 : vector<16x128xf32>
      %40 = arith.mulf %32, %39 : vector<16x128xf32>
      %41 = arith.mulf %40, %34 : vector<16x128xf32>
      %42 = arith.truncf %41 : vector<16x128xf32> to vector<16x128xbf16>
      %c0_29 = arith.constant 0 : index
      %c0_30 = arith.constant 0 : index
      %43 = vector.load %arg9[%c0_29, %c0_30] : memref<128x64xbf16, #tpu.memory_space<vmem>>, vector<128x64xbf16>
      %cst_31 = arith.constant dense<0.000000e+00> : vector<16x64xf32>
      %44 = tpu.matmul %42, %43, %cst_31 {dimension_numbers = #tpu.dot_dimension_numbers<[1], [0], [0], [1], [0, 0, 1, 1], [], []>} : vector<16x128xbf16>, vector<128x64xbf16>, vector<16x64xf32> -> vector<16x64xf32>
      %c0_32 = arith.constant 0 : index
      %c0_33 = arith.constant 0 : index
      %45 = vector.load %arg3[%c0_32, %c0_33] : memref<16x64xf32, #tpu.memory_space<vmem>>, vector<16x64xf32>
      %46 = arith.addf %45, %44 : vector<16x64xf32>
      %c0_34 = arith.constant 0 : index
      %c0_35 = arith.constant 0 : index
      %47 = vector.load %arg11[%c0_34, %c0_35] : memref<16x64xf32, #tpu.memory_space<vmem>>, vector<16x64xf32>
      tpu.vector_store %arg11[%c0_34, %c0_35], %46 {strides = array<i32>} : memref<16x64xf32, #tpu.memory_space<vmem>>, vector<16x64xf32>,
    } else {
    }
    %c0_2 = arith.constant 0 : index
    %c0_3 = arith.constant 0 : index
    %c0_4 = arith.constant 0 : index
    %4 = vector.load %arg4[%c0_2, %c0_3, %c0_4] : memref<1x64x64xbf16, #tpu.memory_space<vmem>>, vector<1x64x64xbf16>
    %5 = vector.shape_cast %4 : vector<1x64x64xbf16> to vector<64x64xbf16>
    %cst = arith.constant dense<0.000000e+00> : vector<16x64xf32>
    %6 = tpu.matmul %0, %5, %cst {dimension_numbers = #tpu.dot_dimension_numbers<[1], [0], [0], [1], [0, 0, 1, 1], [], []>} : vector<16x64xbf16>, vector<64x64xbf16>, vector<16x64xf32> -> vector<16x64xf32>
    %c0_5 = arith.constant 0 : index
    %c0_6 = arith.constant 0 : index
    %c0_7 = arith.constant 0 : index
    %7 = vector.load %arg5[%c0_5, %c0_6, %c0_7] : memref<1x64x64xbf16, #tpu.memory_space<vmem>>, vector<1x64x64xbf16>
    %8 = vector.shape_cast %7 : vector<1x64x64xbf16> to vector<64x64xbf16>
    %cst_8 = arith.constant dense<0.000000e+00> : vector<16x64xf32>
    %9 = tpu.matmul %0, %8, %cst_8 {dimension_numbers = #tpu.dot_dimension_numbers<[1], [0], [0], [1], [0, 0, 1, 1], [], []>} : vector<16x64xbf16>, vector<64x64xbf16>, vector<16x64xf32> -> vector<16x64xf32>
    %10 = arith.negf %6 : vector<16x64xf32>
    %11 = math.exp %10 : vector<16x64xf32>
    %cst_9 = arith.constant 1.000000e+00 : f32
    %12 = vector.broadcast %cst_9 : f32 to vector<16x64xf32>
    %13 = arith.addf %12, %11 : vector<16x64xf32>
    %14 = arith.divf %12, %13 : vector<16x64xf32>
    %15 = arith.mulf %6, %14 : vector<16x64xf32>
    %16 = arith.mulf %15, %9 : vector<16x64xf32>
    %17 = arith.truncf %16 : vector<16x64xf32> to vector<16x64xbf16>
    %c0_10 = arith.constant 0 : index
    %c0_11 = arith.constant 0 : index
    %c0_12 = arith.constant 0 : index
    %18 = vector.load %arg6[%c0_10, %c0_11, %c0_12] : memref<1x64x64xbf16, #tpu.memory_space<vmem>>, vector<1x64x64xbf16>
    %19 = vector.shape_cast %18 : vector<1x64x64xbf16> to vector<64x64xbf16>
    %cst_13 = arith.constant dense<0.000000e+00> : vector<16x64xf32>
    %20 = tpu.matmul %17, %19, %cst_13 {dimension_numbers = #tpu.dot_dimension_numbers<[1], [0], [0], [1], [0, 0, 1, 1], [], []>} : vector<16x64xbf16>, vector<64x64xbf16>, vector<16x64xf32> -> vector<16x64xf32>
    %c0_14 = arith.constant 0 : index
    %c0_15 = arith.constant 0 : index
    %21 = vector.load %arg11[%c0_14, %c0_15] : memref<16x64xf32, #tpu.memory_space<vmem>>, vector<16x64xf32>
    %c0_16 = arith.constant 0 : index
    %c0_17 = arith.constant 0 : index
    %c0_18 = arith.constant 0 : index
    %22 = vector.load %arg2[%c0_16, %c0_17, %c0_18] : memref<1x16x1xf32, #tpu.memory_space<vmem>>, vector<1x16x1xf32>
    %23 = vector.shape_cast %22 : vector<1x16x1xf32> to vector<16x1xf32>
    %24 = vector.broadcast %23 : vector<16x1xf32> to vector<16x64xf32>
    %25 = arith.mulf %24, %20 : vector<16x64xf32>
    %26 = arith.addf %21, %25 : vector<16x64xf32>
    %c0_19 = arith.constant 0 : index
    %c0_20 = arith.constant 0 : index
    %27 = vector.load %arg11[%c0_19, %c0_20] : memref<16x64xf32, #tpu.memory_space<vmem>>, vector<16x64xf32>
    tpu.vector_store %arg11[%c0_19, %c0_20], %26 {strides = array<i32>} : memref<16x64xf32, #tpu.memory_space<vmem>>, vector<16x64xf32>,
    %c7_i32 = arith.constant 7 : i32
    %28 = arith.cmpi eq, %arg0, %c7_i32 : i32
    %29 = arith.extui %28 : i1 to i32
    %c0_i32_21 = arith.constant 0 : i32
    %30 = arith.cmpi ne, %29, %c0_i32_21 : i32
    scf.if %30 {
      %c0_22 = arith.constant 0 : index
      %c0_23 = arith.constant 0 : index
      %31 = vector.load %arg11[%c0_22, %c0_23] : memref<16x64xf32, #tpu.memory_space<vmem>>, vector<16x64xf32>
      %c0_24 = arith.constant 0 : index
      %c0_25 = arith.constant 0 : index
      %32 = vector.load %arg10[%c0_24, %c0_25] : memref<16x64xf32, #tpu.memory_space<vmem>>, vector<16x64xf32>
      tpu.vector_store %arg10[%c0_24, %c0_25], %31 {strides = array<i32>} : memref<16x64xf32, #tpu.memory_space<vmem>>, vector<16x64xf32>,
    } else {
    }
    return
  }
  func.func @transform_0(%arg0: i32) -> (i32, i32) {
    %c0_i32 = arith.constant 0 : i32
    %c0_i32_0 = arith.constant 0 : i32
    %c0_i32_1 = arith.constant 0 : i32
    return %c0_i32, %c0_i32_0 : i32, i32
  }
  func.func @transform_1(%arg0: i32) -> (i32, i32, i32) {
    %c0_i32 = arith.constant 0 : i32
    %c0_i32_0 = arith.constant 0 : i32
    %c0_i32_1 = arith.constant 0 : i32
    return %arg0, %c0_i32, %c0_i32_0 : i32, i32, i32
  }
  func.func @transform_2(%arg0: i32) -> (i32, i32) {
    %c0_i32 = arith.constant 0 : i32
    %c0_i32_0 = arith.constant 0 : i32
    %c0_i32_1 = arith.constant 0 : i32
    return %c0_i32, %c0_i32_0 : i32, i32
  }
  func.func @transform_3(%arg0: i32) -> (i32, i32, i32) {
    %c0_i32 = arith.constant 0 : i32
    %c0_i32_0 = arith.constant 0 : i32
    %c0_i32_1 = arith.constant 0 : i32
    return %arg0, %c0_i32, %c0_i32_0 : i32, i32, i32
  }
  func.func @transform_4(%arg0: i32) -> (i32, i32, i32) {
    %c0_i32 = arith.constant 0 : i32
    %c0_i32_0 = arith.constant 0 : i32
    %c0_i32_1 = arith.constant 0 : i32
    return %arg0, %c0_i32, %c0_i32_0 : i32, i32, i32
  }
  func.func @transform_5(%arg0: i32) -> (i32, i32, i32) {
    %c0_i32 = arith.constant 0 : i32
    %c0_i32_0 = arith.constant 0 : i32
    %c0_i32_1 = arith.constant 0 : i32
    return %arg0, %c0_i32, %c0_i32_0 : i32, i32, i32
  }
  func.func @transform_6(%arg0: i32) -> (i32, i32) {
    %c0_i32 = arith.constant 0 : i32
    %c0_i32_0 = arith.constant 0 : i32
    %c0_i32_1 = arith.constant 0 : i32
    return %c0_i32, %c0_i32_0 : i32, i32
  }
  func.func @transform_7(%arg0: i32) -> (i32, i32) {
    %c0_i32 = arith.constant 0 : i32
    %c0_i32_0 = arith.constant 0 : i32
    %c0_i32_1 = arith.constant 0 : i32
    return %c0_i32, %c0_i32_0 : i32, i32
  }
  func.func @transform_8(%arg0: i32) -> (i32, i32) {
    %c0_i32 = arith.constant 0 : i32
    %c0_i32_0 = arith.constant 0 : i32
    %c0_i32_1 = arith.constant 0 : i32
    return %c0_i32, %c0_i32_0 : i32, i32
  }
  func.func @transform_9(%arg0: i32) -> (i32, i32) {
    %c0_i32 = arith.constant 0 : i32
    %c0_i32_0 = arith.constant 0 : i32
    %c0_i32_1 = arith.constant 0 : i32
    return %c0_i32, %c0_i32_0 : i32, i32
  }
}

</mosaic_0001>

<llo_original>
// kernel: _lambda_.3
$region0: #{_lambda_.3}
  #allocation0 [shape = 'u32[]', space=smem, size = 0x4, offset = 0x4, fixed_abs, tag = 'smem constant byte address 0x4 - core index']
  #allocation1 [shape = 'u32[144,128]{1,0:T(1,128)}', space=vmem, size = 0x12000, scoped, tag = 'internal scratch']
  %s0 = inlined_call_operand.vmem [shape: f32[16,64], index: 0, kind: input, shape index: {}]
  %s1 = inlined_call_operand.vmem [shape: f32[1,64], index: 1, kind: input, shape index: {}]
  %s2 = inlined_call_operand.hbm [shape: bf16[64,160], index: 2, kind: input, shape index: {}]
  %s3 = inlined_call_operand.hbm [shape: bf16[64,160], index: 3, kind: input, shape index: {}]
  %s4 = inlined_call_operand.vmem [shape: f32[16,160], index: 4, kind: input, shape index: {}]
  %s5 = inlined_call_operand.hbm [shape: f32[16,160], index: 5, kind: input, shape index: {}]
  %s6 = inlined_call_operand.vmem [shape: f32[1,16], index: 6, kind: input, shape index: {}]
  %s7 = inlined_call_operand.vmem [shape: bf16[16,128], index: 7, kind: input, shape index: {}]
  %s8 = inlined_call_operand.vmem [shape: bf16[16,160], index: 8, kind: output, shape index: {0}]
  %s9 = inlined_call_operand.vmem [shape: bf16[16,128], index: 9, kind: output, shape index: {1}]
  %10 = xla_tuple %s8, %s9
  %s11 = sld [smem:[#allocation0]]
  $region62: #{_lambda_.3} parent=0
    _
  %s13 = ssub.s32 1, %s11
  %s14 = scalar_select 0, %s13, %s11
  $region1: #{_lambda_.3} parent=0
    #allocation2 [shape = 'u8[32768]{0}', space=vmem, size = 0x8000, scoped, tag = 'input window, operand 2, single buffered']
    #allocation3 [shape = 's32[1]{0}', space=sflag, size = 0x4, scoped, tag = 'scoped memory for _lambda_.3']
    #allocation4 [shape = 'u8[32768]{0}', space=vmem, size = 0x8000, scoped, tag = 'input window, operand 3, single buffered']
    #allocation5 [shape = 's32[1]{0}', space=sflag, size = 0x4, scoped, tag = 'scoped memory for _lambda_.3']
    #allocation6 [shape = 'u8[16384]{0}', space=vmem, size = 0x4000, scoped, tag = 'input window, operand 5, single buffered']
    %15 = vsyncpa [#allocation3], 0
    %16 = vsyncpa [#allocation5], 0
    // Predicated region
    $region2: #{_lambda_.3} parent=1 // pred_check
      _
    $region3: #{_lambda_.3} parent=1 // pred_check_branch
      %18 = sbr.rel (0) target = $region5
    $region4: #{_lambda_.3} parent=1 // pred_region
      _
    $region5: #{_lambda_.3} parent=1 // pred_fallthru
      _
    // Predicated region
    $region6: #{_lambda_.3} parent=1 // pred_check
      _
    $region7: #{_lambda_.3} parent=1 // pred_check_branch
      %20 = sbr.rel (0) target = $region9
    $region8: #{_lambda_.3} parent=1 // pred_region
      _
    $region9: #{_lambda_.3} parent=1 // pred_fallthru
      _
    // Predicated region
    $region10: #{_lambda_.3} parent=1 // pred_check
      _
    $region11: #{_lambda_.3} parent=1 // pred_check_branch
      %22 = sbr.rel (0) target = $region13
    $region12: #{_lambda_.3} parent=1 // pred_region
      %s24 = ssub.s32 1024, 1024
      %25 = vsyncadd [#allocation3], %s24
      %s26 = sshll.u32 [#allocation2], 4
      %s27 = int_to_ptr.vmem [resolvable:$true] %s26
      %32 = dma.hbm_to_vmem [thread:$0]  %s2, 1024, %s27, [#allocation3], 128, 128, 8
    $region13: #{_lambda_.3} parent=1 // pred_fallthru
      _
    // Predicated region
    $region14: #{_lambda_.3} parent=1 // pred_check
      _
    $region15: #{_lambda_.3} parent=1 // pred_check_branch
      %34 = sbr.rel (0) target = $region17
    $region16: #{_lambda_.3} parent=1 // pred_region
      %s36 = ssub.s32 1024, 1024
      %37 = vsyncadd [#allocation5], %s36
      %s38 = sshll.u32 [#allocation4], 4
      %s39 = int_to_ptr.vmem [resolvable:$true] %s38
      %44 = dma.hbm_to_vmem [thread:$0]  %s3, 1024, %s39, [#allocation5], 128, 128, 8
    $region17: #{_lambda_.3} parent=1 // pred_fallthru
      _
    // Predicated region
    $region18: #{_lambda_.3} parent=1 // pred_check
      _
    $region19: #{_lambda_.3} parent=1 // pred_check_branch
      %46 = sbr.rel (0) target = $region21
    $region20: #{_lambda_.3} parent=1 // pred_region
      _
    $region21: #{_lambda_.3} parent=1 // pred_fallthru
      _
    // Predicated region
    $region22: #{_lambda_.3} parent=1 // pred_check
      _
    $region23: #{_lambda_.3} parent=1 // pred_check_branch
      %48 = sbr.rel (0) target = $region25
    $region24: #{_lambda_.3} parent=1 // pred_region
      %s50 = ssub.s32 512, 512
      %51 = vsyncadd [#allocation5], %s50
      %s52 = sshll.u32 [#allocation6], 4
      %s53 = int_to_ptr.vmem [resolvable:$true] %s52
      %58 = dma.hbm_to_vmem [thread:$0]  %s5, 512, %s53, [#allocation5], 256, 256, 16
    $region25: #{_lambda_.3} parent=1 // pred_fallthru
      _
    // Predicated region
    $region26: #{_lambda_.3} parent=1 // pred_check
      _
    $region27: #{_lambda_.3} parent=1 // pred_check_branch
      %60 = sbr.rel (0) target = $region29
    $region28: #{_lambda_.3} parent=1 // pred_region
      _
    $region29: #{_lambda_.3} parent=1 // pred_fallthru
      _
    // Predicated region
    $region30: #{_lambda_.3} parent=1 // pred_check
      _
    $region31: #{_lambda_.3} parent=1 // pred_check_branch
      %62 = sbr.rel (0) target = $region33
    $region32: #{_lambda_.3} parent=1 // pred_region
      _
    $region33: #{_lambda_.3} parent=1 // pred_fallthru
      _
    // Predicated region
    $region34: #{_lambda_.3} parent=1 // pred_check
      _
    $region35: #{_lambda_.3} parent=1 // pred_check_branch
      %64 = sbr.rel (0) target = $region37
    $region36: #{_lambda_.3} parent=1 // pred_region
      %65 = dma.done [#allocation3], 1024
    $region37: #{_lambda_.3} parent=1 // pred_fallthru
      _
    // Predicated region
    $region38: #{_lambda_.3} parent=1 // pred_check
      _
    $region39: #{_lambda_.3} parent=1 // pred_check_branch
      %67 = sbr.rel (0) target = $region41
    $region40: #{_lambda_.3} parent=1 // pred_region
      %68 = dma.done [#allocation5], 1024
    $region41: #{_lambda_.3} parent=1 // pred_fallthru
      _
    // Predicated region
    $region42: #{_lambda_.3} parent=1 // pred_check
      _
    $region43: #{_lambda_.3} parent=1 // pred_check_branch
      %70 = sbr.rel (0) target = $region45
    $region44: #{_lambda_.3} parent=1 // pred_region
      %71 = dma.done [#allocation5], 512
    $region45: #{_lambda_.3} parent=1 // pred_fallthru
      _
    %v73 = vld [vmem:[%s0] sm:$0xff]
    %v74 = vld [vmem:[%s0 + $0x8] sm:$0xff]
    %v75 = vmul.f32 %v73, %v73
    %v76 = vmul.f32 %v74, %v74
    %vm77 = vcmask 523264
    %v78 = vsel %vm77, %v75, 0.0
    %79 = vadd.xlane.f32.xlu0 %v78
    %v80 = vpop.xlane.xlu0 %79
    %v81 = vsel %vm77, %v76, 0.0
    %82 = vadd.xlane.f32.xlu0 %v81
    %v83 = vpop.xlane.xlu0 %82
    %v84 = vrcp.pop 64.0
    %v85 = vmul.f32 %v80, %v84
    %v86 = vmul.f32 %v83, %v84
    %v87 = vadd.f32 %v85, 1e-06
    %v88 = vadd.f32 %v86, 1e-06
    %v89 = vrsqrt.pop %v87
    %v90 = vrsqrt.pop %v88
    %v91 = vmul.f32 %v73, %v89
    %v92 = vmul.f32 %v74, %v90
    %v93 = vld [vmem:[%s1] sm:$0x1]
    %v95 = vlaneseq
    %v96 = vshrl.u32 %v95, 7
    %v97 = vsub.s32 0, %v96
    %v98 = vrot.slane %v93, %v97
    %v100 = vmul.f32 %v91, %v98
    %v101 = vmul.f32 %v92, %v98
    %v102 = vpack.c.bf16 %v101, %v100
    %v103 = vld [vmem:[#allocation2] sm:$0xff]
    %v104 = vld [vmem:[#allocation2 + $0x8] sm:$0xff]
    %v105 = vld [vmem:[#allocation2 + $0x10] sm:$0xff]
    %v106 = vld [vmem:[#allocation2 + $0x18] sm:$0xff]
    %v107 = vld [vmem:[#allocation2 + $0x20] sm:$0xff]
    %v108 = vld [vmem:[#allocation2 + $0x28] sm:$0xff]
    %v109 = vld [vmem:[#allocation2 + $0x30] sm:$0xff]
    %v110 = vld [vmem:[#allocation2 + $0x38] sm:$0xff]
    %v119 = vunpack.c.l.b16 %v103
    %v120 = vunpack.c.h.b16 %v103
    %v121 = vunpack.c.l.b16 %v104
    %v122 = vunpack.c.h.b16 %v104
    %v123 = vunpack.c.l.b16 %v105
    %v124 = vunpack.c.h.b16 %v105
    %v125 = vunpack.c.l.b16 %v106
    %v126 = vunpack.c.h.b16 %v106
    %v127 = vunpack.c.l.b16 %v107
    %v128 = vunpack.c.h.b16 %v107
    %v129 = vunpack.c.l.b16 %v108
    %v130 = vunpack.c.h.b16 %v108
    %v131 = vunpack.c.l.b16 %v109
    %v132 = vunpack.c.h.b16 %v109
    %v133 = vunpack.c.l.b16 %v110
    %v134 = vunpack.c.h.b16 %v110
    %v135 = vpack.c.b16 %v121, %v119
    %v136 = vpack.c.b16 %v122, %v120
    %v137 = vpack.c.b16 %v125, %v123
    %v138 = vpack.c.b16 %v126, %v124
    %v139 = vpack.c.b16 %v129, %v127
    %v140 = vpack.c.b16 %v130, %v128
    %v141 = vpack.c.b16 %v133, %v131
    %v142 = vpack.c.b16 %v134, %v132
    %v152 = vsel %vm77, %v102, 0
    %154 = vmatprep.subr.bf16.mxu0 %v136
    %155 = vmatpush1.bf16.msra.mxu0 %v135
    %156 = vmatprep.subr.bf16.mxu0 %v138
    %157 = vmatpush1.bf16.msra.mxu0 %v137
    %158 = vmatprep.subr.bf16.mxu0 %v140
    %159 = vmatpush1.bf16.msra.mxu0 %v139
    %160 = vmatprep.subr.bf16.mxu0 %v142
    %161 = vmatpush1.bf16.msra.mxu0 %v141
    %162 = vmatprep.subr.bf16.mxu0 0
    %163 = vmatpush1.bf16.msra.mxu0 0
    %164 = vmatprep.subr.bf16.mxu0 0
    %165 = vmatpush1.bf16.msra.mxu0 0
    %166 = vmatprep.subr.bf16.mxu0 0
    %167 = vmatpush1.bf16.msra.mxu0 0
    %168 = vmatprep.subr.bf16.mxu0 0
    %169 = vmatpush1.bf16.msra.mxu0 0
    %170 = vmatprep.subr.bf16.mxu0 0
    %171 = vmatpush1.bf16.msra.mxu0 0
    %172 = vmatprep.subr.bf16.mxu0 0
    %173 = vmatpush1.bf16.msra.mxu0 0
    %174 = vmatprep.subr.bf16.mxu0 0
    %175 = vmatpush1.bf16.msra.mxu0 0
    %176 = vmatprep.subr.bf16.mxu0 0
    %177 = vmatpush1.bf16.msra.mxu0 0
    %178 = vmatprep.subr.bf16.mxu0 0
    %179 = vmatpush1.bf16.msra.mxu0 0
    %180 = vmatprep.subr.bf16.mxu0 0
    %181 = vmatpush1.bf16.msra.mxu0 0
    %182 = vmatprep.subr.bf16.mxu0 0
    %183 = vmatpush1.bf16.msra.mxu0 0
    %184 = vmatprep.subr.bf16.mxu0 0
    %185 = vmatpush1.bf16.msra.mxu0 0
    %186 = vmatprep.mubr.bf16.mxu0 0
    %187 = vmatmul.mubr.bf16.gmra.mrb[0].mxu0 %v152
    %v188 = vpop.f32.mrb[0].mxu0
    %v189 = vadd.f32 0.0, %v188
    %v190 = vpop.f32.mrb[0].mxu0
    %v191 = vadd.f32 0.0, %v190
    %v192 = vpop.f32.mrb[0].mxu0
    %v193 = vadd.f32 0.0, %v192
    %v194 = vpop.f32.mrb[0].mxu0
    %v195 = vadd.f32 0.0, %v194
    %196 = vdwg.mxu0
    %v197 = vld [vmem:[#allocation4] sm:$0xff]
    %v198 = vld [vmem:[#allocation4 + $0x8] sm:$0xff]
    %v199 = vld [vmem:[#allocation4 + $0x10] sm:$0xff]
    %v200 = vld [vmem:[#allocation4 + $0x18] sm:$0xff]
    %v201 = vld [vmem:[#allocation4 + $0x20] sm:$0xff]
    %v202 = vld [vmem:[#allocation4 + $0x28] sm:$0xff]
    %v203 = vld [vmem:[#allocation4 + $0x30] sm:$0xff]
    %v204 = vld [vmem:[#allocation4 + $0x38] sm:$0xff]
    %v213 = vunpack.c.l.b16 %v197
    %v214 = vunpack.c.h.b16 %v197
    %v215 = vunpack.c.l.b16 %v198
    %v216 = vunpack.c.h.b16 %v198
    %v217 = vunpack.c.l.b16 %v199
    %v218 = vunpack.c.h.b16 %v199
    %v219 = vunpack.c.l.b16 %v200
    %v220 = vunpack.c.h.b16 %v200
    %v221 = vunpack.c.l.b16 %v201
    %v222 = vunpack.c.h.b16 %v201
    %v223 = vunpack.c.l.b16 %v202
    %v224 = vunpack.c.h.b16 %v202
    %v225 = vunpack.c.l.b16 %v203
    %v226 = vunpack.c.h.b16 %v203
    %v227 = vunpack.c.l.b16 %v204
    %v228 = vunpack.c.h.b16 %v204
    %v229 = vpack.c.b16 %v215, %v213
    %v230 = vpack.c.b16 %v216, %v214
    %v231 = vpack.c.b16 %v219, %v217
    %v232 = vpack.c.b16 %v220, %v218
    %v233 = vpack.c.b16 %v223, %v221
    %v234 = vpack.c.b16 %v224, %v222
    %v235 = vpack.c.b16 %v227, %v225
    %v236 = vpack.c.b16 %v228, %v226
    %245 = vmatprep.subr.bf16.mxu0 %v230
    %246 = vmatpush1.bf16.msra.mxu0 %v229
    %247 = vmatprep.subr.bf16.mxu0 %v232
    %248 = vmatpush1.bf16.msra.mxu0 %v231
    %249 = vmatprep.subr.bf16.mxu0 %v234
    %250 = vmatpush1.bf16.msra.mxu0 %v233
    %251 = vmatprep.subr.bf16.mxu0 %v236
    %252 = vmatpush1.bf16.msra.mxu0 %v235
    %253 = vmatprep.subr.bf16.mxu0 0
    %254 = vmatpush1.bf16.msra.mxu0 0
    %255 = vmatprep.subr.bf16.mxu0 0
    %256 = vmatpush1.bf16.msra.mxu0 0
    %257 = vmatprep.subr.bf16.mxu0 0
    %258 = vmatpush1.bf16.msra.mxu0 0
    %259 = vmatprep.subr.bf16.mxu0 0
    %260 = vmatpush1.bf16.msra.mxu0 0
    %261 = vmatprep.subr.bf16.mxu0 0
    %262 = vmatpush1.bf16.msra.mxu0 0
    %263 = vmatprep.subr.bf16.mxu0 0
    %264 = vmatpush1.bf16.msra.mxu0 0
    %265 = vmatprep.subr.bf16.mxu0 0
    %266 = vmatpush1.bf16.msra.mxu0 0
    %267 = vmatprep.subr.bf16.mxu0 0
    %268 = vmatpush1.bf16.msra.mxu0 0
    %269 = vmatprep.subr.bf16.mxu0 0
    %270 = vmatpush1.bf16.msra.mxu0 0
    %271 = vmatprep.subr.bf16.mxu0 0
    %272 = vmatpush1.bf16.msra.mxu0 0
    %273 = vmatprep.subr.bf16.mxu0 0
    %274 = vmatpush1.bf16.msra.mxu0 0
    %275 = vmatprep.subr.bf16.mxu0 0
    %276 = vmatpush1.bf16.msra.mxu0 0
    %277 = vmatprep.mubr.bf16.mxu0 0
    %278 = vmatmul.mubr.bf16.gmra.mrb[0].mxu0 %v152
    %v279 = vpop.f32.mrb[0].mxu0
    %v280 = vadd.f32 0.0, %v279
    %v281 = vpop.f32.mrb[0].mxu0
    %v282 = vadd.f32 0.0, %v281
    %v283 = vpop.f32.mrb[0].mxu0
    %v284 = vadd.f32 0.0, %v283
    %v285 = vpop.f32.mrb[0].mxu0
    %v286 = vadd.f32 0.0, %v285
    %287 = vdwg.mxu0
    %v288 = vld [vmem:[%s4] sm:$0xff]
    %v289 = vld [vmem:[%s4 + $0x8] sm:$0xff]
    %v290 = vld [vmem:[%s4 + $0x10] sm:$0xff]
    %v291 = vld [vmem:[%s4 + $0x18] sm:$0xff]
    %v292 = vmul.f32 %v189, %v288
    %v293 = vmul.f32 %v191, %v289
    %v294 = vmul.f32 %v193, %v290
    %v295 = vmul.f32 %v195, %v291
    %v296 = vld [vmem:[#allocation6] sm:$0xff]
    %v297 = vld [vmem:[#allocation6 + $0x8] sm:$0xff]
    %v298 = vld [vmem:[#allocation6 + $0x10] sm:$0xff]
    %v299 = vld [vmem:[#allocation6 + $0x18] sm:$0xff]
    %v300 = vmul.f32 %v280, %v296
    %v301 = vmul.f32 %v282, %v297
    %v302 = vmul.f32 %v284, %v298
    %v303 = vmul.f32 %v286, %v299
    %v304 = vadd.f32 %v292, %v300
    %v305 = vadd.f32 %v293, %v301
    %v306 = vadd.f32 %v294, %v302
    %v307 = vadd.f32 %v295, %v303
    %v308 = vpack.c.bf16 %v306, %v304
    %v309 = vpack.c.bf16 %v307, %v305
    %v312 = vunpack.c.l.b16 %v308
    %v313 = vunpack.c.l.b16 %v309
    %v314 = vunpack.c.h.b16 %v308
    %v315 = vunpack.c.h.b16 %v309
    %v316 = vpack.c.b16 %v313, %v312
    %v317 = vpack.c.b16 %v315, %v314
    %vm320 = vcmask 1043456
    %vm321 = vcmask 261124
    %vm322 = vmor %vm321, %vm320
    %323 = vst.msk [vmem:[%s8] sm:$0xff] %vm322, %v316
    %324 = vst.msk [vmem:[%s8 + $0x8] sm:$0xff] %vm322, %v317
    %v325 = vmul.f32 %v305, %v305
    %v326 = vmul.f32 %v307, %v307
    %vm327 = vcmask 130048
    %v328 = vsel %vm327, %v325, 0.0
    %329 = vadd.xlane.f32.xlu0 %v328
    %v330 = vpop.xlane.xlu0 %329
    %v331 = vsel %vm327, %v326, 0.0
    %332 = vadd.xlane.f32.xlu0 %v331
    %v333 = vpop.xlane.xlu0 %332
    %v334 = vrcp.pop 16.0
    %v335 = vmul.f32 %v330, %v334
    %v336 = vmul.f32 %v333, %v334
    %v337 = vadd.f32 %v335, 1e-06
    %v338 = vadd.f32 %v336, 1e-06
    %v339 = vrsqrt.pop %v337
    %v340 = vrsqrt.pop %v338
    %v341 = vmul.f32 %v305, %v339
    %v342 = vmul.f32 %v307, %v340
    %v343 = vld [vmem:[%s6] sm:$0x1]
    %v345 = vlaneseq
    %v346 = vshrl.u32 %v345, 7
    %v347 = vsub.s32 0, %v346
    %v348 = vrot.slane %v343, %v347
    %v350 = vmul.f32 %v341, %v348
    %v351 = vmul.f32 %v342, %v348
    %v352 = vpack.c.bf16 %v351, %v350
    %v353 = vld [vmem:[%s7] sm:$0xf]
    %v354 = vld [vmem:[%s7 + $0x4] sm:$0xf]
    %v357 = vunpack.c.l.b16 %v353
    %v358 = vunpack.c.l.b16 %v354
    %v359 = vpack.c.b16 %v358, %v357
    %v362 = vsel %vm327, %v352, 0
    %364 = vmatprep.subr.bf16.mxu0 0
    %365 = vmatpush1.bf16.msra.mxu0 %v359
    %366 = vmatprep.subr.bf16.mxu0 0
    %367 = vmatpush1.bf16.msra.mxu0 0
    %368 = vmatprep.subr.bf16.mxu0 0
    %369 = vmatpush1.bf16.msra.mxu0 0
    %370 = vmatprep.subr.bf16.mxu0 0
    %371 = vmatpush1.bf16.msra.mxu0 0
    %372 = vmatprep.subr.bf16.mxu0 0
    %373 = vmatpush1.bf16.msra.mxu0 0
    %374 = vmatprep.subr.bf16.mxu0 0
    %375 = vmatpush1.bf16.msra.mxu0 0
    %376 = vmatprep.subr.bf16.mxu0 0
    %377 = vmatpush1.bf16.msra.mxu0 0
    %378 = vmatprep.subr.bf16.mxu0 0
    %379 = vmatpush1.bf16.msra.mxu0 0
    %380 = vmatprep.subr.bf16.mxu0 0
    %381 = vmatpush1.bf16.msra.mxu0 0
    %382 = vmatprep.subr.bf16.mxu0 0
    %383 = vmatpush1.bf16.msra.mxu0 0
    %384 = vmatprep.subr.bf16.mxu0 0
    %385 = vmatpush1.bf16.msra.mxu0 0
    %386 = vmatprep.subr.bf16.mxu0 0
    %387 = vmatpush1.bf16.msra.mxu0 0
    %388 = vmatprep.subr.bf16.mxu0 0
    %389 = vmatpush1.bf16.msra.mxu0 0
    %390 = vmatprep.subr.bf16.mxu0 0
    %391 = vmatpush1.bf16.msra.mxu0 0
    %392 = vmatprep.subr.bf16.mxu0 0
    %393 = vmatpush1.bf16.msra.mxu0 0
    %394 = vmatprep.subr.bf16.mxu0 0
    %395 = vmatpush1.bf16.msra.mxu0 0
    %396 = vmatprep.mubr.bf16.mxu0 0
    %397 = vmatmul.mubr.bf16.gmra.mrb[0].mxu0 %v362
    %v398 = vpop.f32.mrb[0].mxu0
    %v399 = vadd.f32 0.0, %v398
    %v400 = vpop.f32.mrb[0].mxu0
    %v401 = vpop.f32.mrb[0].mxu0
    %v402 = vadd.f32 0.0, %v401
    %v403 = vpop.f32.mrb[0].mxu0
    %404 = vdwg.mxu0
    %v405 = vpack.c.bf16 %v402, %v399
    %v407 = vunpack.c.l.b16 %v405
    %v408 = vunpack.c.h.b16 %v405
    %v409 = vpack.c.b16 %v407, %v407
    %v410 = vpack.c.b16 %v408, %v408
    %413 = vst [vmem:[%s9] sm:$0xf] %v409
    %414 = vst [vmem:[%s9 + $0x4] sm:$0xf] %v410
    // Predicated region
    $region46: #{_lambda_.3} parent=1 // pred_check
      _
    $region47: #{_lambda_.3} parent=1 // pred_check_branch
      %416 = sbr.rel (0) target = $region49
    $region48: #{_lambda_.3} parent=1 // pred_region
      _
    $region49: #{_lambda_.3} parent=1 // pred_fallthru
      _
    // Predicated region
    $region50: #{_lambda_.3} parent=1 // pred_check
      _
    $region51: #{_lambda_.3} parent=1 // pred_check_branch
      %418 = sbr.rel (0) target = $region53
    $region52: #{_lambda_.3} parent=1 // pred_region
      _
    $region53: #{_lambda_.3} parent=1 // pred_fallthru
      _
    // Predicated region
    $region54: #{_lambda_.3} parent=1 // pred_check
      _
    $region55: #{_lambda_.3} parent=1 // pred_check_branch
      %420 = sbr.rel (0) target = $region57
    $region56: #{_lambda_.3} parent=1 // pred_region
      _
    $region57: #{_lambda_.3} parent=1 // pred_fallthru
      _
    // Predicated region
    $region58: #{_lambda_.3} parent=1 // pred_check
      _
    $region59: #{_lambda_.3} parent=1 // pred_check_branch
      %422 = sbr.rel (0) target = $region61
    $region60: #{_lambda_.3} parent=1 // pred_region
      _
    $region61: #{_lambda_.3} parent=1 // pred_fallthru
      _
    %423 = vsyncpa [#allocation3], 1
    %424 = vsyncpa [#allocation5], 1

// kernel: _lambda_.4
$region0: #{_lambda_.4}
  #allocation0 [shape = 'u32[]', space=smem, size = 0x4, offset = 0x4, fixed_abs, tag = 'smem constant byte address 0x4 - core index']
  #allocation1 [shape = 'u32[144,128]{1,0:T(1,128)}', space=vmem, size = 0x12000, scoped, tag = 'internal scratch']
  %s0 = inlined_call_operand.vmem [shape: bf16[8,8,32], index: 0, kind: input, shape index: {}]
  %s1 = inlined_call_operand.vmem [shape: bf16[8,8,32], index: 1, kind: input, shape index: {}]
  %s2 = inlined_call_operand.vmem [shape: bf16[8,8,16], index: 2, kind: input, shape index: {}]
  %s3 = inlined_call_operand.vmem [shape: f32[8,8], index: 3, kind: input, shape index: {}]
  %s4 = inlined_call_operand.vmem [shape: bf16[4,16,64], index: 4, kind: input, shape index: {}]
  %s5 = inlined_call_operand.vmem [shape: f32[16,64], index: 5, kind: input, shape index: {}]
  %s6 = inlined_call_operand.vmem [shape: f32[1,64], index: 6, kind: input, shape index: {}]
  %s7 = inlined_call_operand.vmem [shape: bf16[64,8], index: 7, kind: input, shape index: {}]
  %s8 = inlined_call_operand.vmem [shape: f32[16,64], index: 8, kind: output, shape index: {0}]
  %s9 = inlined_call_operand.vmem [shape: bf16[16,64], index: 9, kind: output, shape index: {1}]
  %s10 = inlined_call_operand.vmem [shape: f32[16,8], index: 10, kind: output, shape index: {2}]
  %11 = xla_tuple %s8, %s9, %s10
  %s12 = sld [smem:[#allocation0]]
  $region58: #{_lambda_.4} parent=0
    _
  %s14 = ssub.s32 1, %s12
  %s15 = scalar_select 0, %s14, %s12
  // Predicated region
  $region2: #{_lambda_.4} parent=0 // pred_check
    _
  $region3: #{_lambda_.4} parent=0 // pred_check_branch
    %17 = sbr.rel (0) target = $region5
  $region4: #{_lambda_.4} parent=0 // pred_region
    _
  $region5: #{_lambda_.4} parent=0 // pred_fallthru
    _
  // Predicated region
  $region6: #{_lambda_.4} parent=0 // pred_check
    _
  $region7: #{_lambda_.4} parent=0 // pred_check_branch
    %19 = sbr.rel (0) target = $region9
  $region8: #{_lambda_.4} parent=0 // pred_region
    _
  $region9: #{_lambda_.4} parent=0 // pred_fallthru
    _
  // Predicated region
  $region10: #{_lambda_.4} parent=0 // pred_check
    _
  $region11: #{_lambda_.4} parent=0 // pred_check_branch
    %21 = sbr.rel (0) target = $region13
  $region12: #{_lambda_.4} parent=0 // pred_region
    _
  $region13: #{_lambda_.4} parent=0 // pred_fallthru
    _
  // Predicated region
  $region14: #{_lambda_.4} parent=0 // pred_check
    _
  $region15: #{_lambda_.4} parent=0 // pred_check_branch
    %23 = sbr.rel (0) target = $region17
  $region16: #{_lambda_.4} parent=0 // pred_region
    _
  $region17: #{_lambda_.4} parent=0 // pred_fallthru
    _
  // Predicated region
  $region18: #{_lambda_.4} parent=0 // pred_check
    _
  $region19: #{_lambda_.4} parent=0 // pred_check_branch
    %25 = sbr.rel (0) target = $region21
  $region20: #{_lambda_.4} parent=0 // pred_region
    _
  $region21: #{_lambda_.4} parent=0 // pred_fallthru
    _
  // Predicated region
  $region22: #{_lambda_.4} parent=0 // pred_check
    _
  $region23: #{_lambda_.4} parent=0 // pred_check_branch
    %27 = sbr.rel (0) target = $region25
  $region24: #{_lambda_.4} parent=0 // pred_region
    _
  $region25: #{_lambda_.4} parent=0 // pred_fallthru
    _
  // Predicated region
  $region26: #{_lambda_.4} parent=0 // pred_check
    _
  $region27: #{_lambda_.4} parent=0 // pred_check_branch
    %29 = sbr.rel (0) target = $region29
  $region28: #{_lambda_.4} parent=0 // pred_region
    _
  $region29: #{_lambda_.4} parent=0 // pred_fallthru
    _
  // Predicated region
  $region30: #{_lambda_.4} parent=0 // pred_check
    _
  $region31: #{_lambda_.4} parent=0 // pred_check_branch
    %31 = sbr.rel (0) target = $region33
  $region32: #{_lambda_.4} parent=0 // pred_region
    _
  $region33: #{_lambda_.4} parent=0 // pred_fallthru
    _
  %v33 = vld [vmem:[%s0] sm:$0xf]
  %v34 = vld [vmem:[%s0 + $0x4] sm:$0xf]
  %v35 = vld [vmem:[%s0 + $0x8] sm:$0xf]
  %v36 = vld [vmem:[%s0 + $0xc] sm:$0xf]
  %v37 = vld [vmem:[%s0 + $0x10] sm:$0xf]
  %v38 = vld [vmem:[%s0 + $0x14] sm:$0xf]
  %v39 = vld [vmem:[%s0 + $0x18] sm:$0xf]
  %v40 = vld [vmem:[%s0 + $0x1c] sm:$0xf]
  %v41 = vld [vmem:[%s1] sm:$0xf]
  %v42 = vld [vmem:[%s1 + $0x4] sm:$0xf]
  %v43 = vld [vmem:[%s1 + $0x8] sm:$0xf]
  %v44 = vld [vmem:[%s1 + $0xc] sm:$0xf]
  %v45 = vld [vmem:[%s1 + $0x10] sm:$0xf]
  %v46 = vld [vmem:[%s1 + $0x14] sm:$0xf]
  %v47 = vld [vmem:[%s1 + $0x18] sm:$0xf]
  %v48 = vld [vmem:[%s1 + $0x1c] sm:$0xf]
  %vm49 = vcmask 261120
  %v51 = vsel %vm49, %v33, 0
  %v54 = vsel %vm49, %v41, 0
  %56 = vmatprep.subr.bf16.mxu0 0
  %57 = vmatpush1.bf16.xpose.msra.mxu0 %v54
  %58 = vmatprep.subr.bf16.mxu0 0
  %59 = vmatpush1.bf16.xpose.msra.mxu0 0
  %60 = vmatprep.subr.bf16.mxu0 0
  %61 = vmatpush1.bf16.xpose.msra.mxu0 0
  %62 = vmatprep.subr.bf16.mxu0 0
  %63 = vmatpush1.bf16.xpose.msra.mxu0 0
  %64 = vmatprep.subr.bf16.mxu0 0
  %65 = vmatpush1.bf16.xpose.msra.mxu0 0
  %66 = vmatprep.subr.bf16.mxu0 0
  %67 = vmatpush1.bf16.xpose.msra.mxu0 0
  %68 = vmatprep.subr.bf16.mxu0 0
  %69 = vmatpush1.bf16.xpose.msra.mxu0 0
  %70 = vmatprep.subr.bf16.mxu0 0
  %71 = vmatpush1.bf16.xpose.msra.mxu0 0
  %72 = vmatprep.subr.bf16.mxu0 0
  %73 = vmatpush1.bf16.xpose.msra.mxu0 0
  %74 = vmatprep.subr.bf16.mxu0 0
  %75 = vmatpush1.bf16.xpose.msra.mxu0 0
  %76 = vmatprep.subr.bf16.mxu0 0
  %77 = vmatpush1.bf16.xpose.msra.mxu0 0
  %78 = vmatprep.subr.bf16.mxu0 0
  %79 = vmatpush1.bf16.xpose.msra.mxu0 0
  %80 = vmatprep.subr.bf16.mxu0 0
  %81 = vmatpush1.bf16.xpose.msra.mxu0 0
  %82 = vmatprep.subr.bf16.mxu0 0
  %83 = vmatpush1.bf16.xpose.msra.mxu0 0
  %84 = vmatprep.subr.bf16.mxu0 0
  %85 = vmatpush1.bf16.xpose.msra.mxu0 0
  %86 = vmatprep.subr.bf16.mxu0 0
  %87 = vmatpush1.bf16.xpose.msra.mxu0 0
  %88 = vmatprep.mubr.bf16.mxu0 0
  %89 = vmatmul.mubr.bf16.gmra.mrb[0].mxu0 %v51
  %v90 = vpop.f32.mrb[0].mxu0
  %v91 = vadd.f32 0.0, %v90
  %v92 = vpop.f32.mrb[0].mxu0
  %v93 = vpop.f32.mrb[0].mxu0
  %v94 = vpop.f32.mrb[0].mxu0
  %95 = vdwg.mxu0
  %v97 = vsel %vm49, %v34, 0
  %v100 = vsel %vm49, %v42, 0
  %102 = vmatprep.subr.bf16.mxu0 0
  %103 = vmatpush1.bf16.xpose.msra.mxu0 %v100
  %104 = vmatprep.subr.bf16.mxu0 0
  %105 = vmatpush1.bf16.xpose.msra.mxu0 0
  %106 = vmatprep.subr.bf16.mxu0 0
  %107 = vmatpush1.bf16.xpose.msra.mxu0 0
  %108 = vmatprep.subr.bf16.mxu0 0
  %109 = vmatpush1.bf16.xpose.msra.mxu0 0
  %110 = vmatprep.subr.bf16.mxu0 0
  %111 = vmatpush1.bf16.xpose.msra.mxu0 0
  %112 = vmatprep.subr.bf16.mxu0 0
  %113 = vmatpush1.bf16.xpose.msra.mxu0 0
  %114 = vmatprep.subr.bf16.mxu0 0
  %115 = vmatpush1.bf16.xpose.msra.mxu0 0
  %116 = vmatprep.subr.bf16.mxu0 0
  %117 = vmatpush1.bf16.xpose.msra.mxu0 0
  %118 = vmatprep.subr.bf16.mxu0 0
  %119 = vmatpush1.bf16.xpose.msra.mxu0 0
  %120 = vmatprep.subr.bf16.mxu0 0
  %121 = vmatpush1.bf16.xpose.msra.mxu0 0
  %122 = vmatprep.subr.bf16.mxu0 0
  %123 = vmatpush1.bf16.xpose.msra.mxu0 0
  %124 = vmatprep.subr.bf16.mxu0 0
  %125 = vmatpush1.bf16.xpose.msra.mxu0 0
  %126 = vmatprep.subr.bf16.mxu0 0
  %127 = vmatpush1.bf16.xpose.msra.mxu0 0
  %128 = vmatprep.subr.bf16.mxu0 0
  %129 = vmatpush1.bf16.xpose.msra.mxu0 0
  %130 = vmatprep.subr.bf16.mxu0 0
  %131 = vmatpush1.bf16.xpose.msra.mxu0 0
  %132 = vmatprep.subr.bf16.mxu0 0
  %133 = vmatpush1.bf16.xpose.msra.mxu0 0
  %134 = vmatprep.mubr.bf16.mxu0 0
  %135 = vmatmul.mubr.bf16.gmra.mrb[0].mxu0 %v97
  %v136 = vpop.f32.mrb[0].mxu0
  %v137 = vadd.f32 0.0, %v136
  %v138 = vpop.f32.mrb[0].mxu0
  %v139 = vpop.f32.mrb[0].mxu0
  %v140 = vpop.f32.mrb[0].mxu0
  %141 = vdwg.mxu0
  %v143 = vsel %vm49, %v35, 0
  %v146 = vsel %vm49, %v43, 0
  %148 = vmatprep.subr.bf16.mxu0 0
  %149 = vmatpush1.bf16.xpose.msra.mxu0 %v146
  %150 = vmatprep.subr.bf16.mxu0 0
  %151 = vmatpush1.bf16.xpose.msra.mxu0 0
  %152 = vmatprep.subr.bf16.mxu0 0
  %153 = vmatpush1.bf16.xpose.msra.mxu0 0
  %154 = vmatprep.subr.bf16.mxu0 0
  %155 = vmatpush1.bf16.xpose.msra.mxu0 0
  %156 = vmatprep.subr.bf16.mxu0 0
  %157 = vmatpush1.bf16.xpose.msra.mxu0 0
  %158 = vmatprep.subr.bf16.mxu0 0
  %159 = vmatpush1.bf16.xpose.msra.mxu0 0
  %160 = vmatprep.subr.bf16.mxu0 0
  %161 = vmatpush1.bf16.xpose.msra.mxu0 0
  %162 = vmatprep.subr.bf16.mxu0 0
  %163 = vmatpush1.bf16.xpose.msra.mxu0 0
  %164 = vmatprep.subr.bf16.mxu0 0
  %165 = vmatpush1.bf16.xpose.msra.mxu0 0
  %166 = vmatprep.subr.bf16.mxu0 0
  %167 = vmatpush1.bf16.xpose.msra.mxu0 0
  %168 = vmatprep.subr.bf16.mxu0 0
  %169 = vmatpush1.bf16.xpose.msra.mxu0 0
  %170 = vmatprep.subr.bf16.mxu0 0
  %171 = vmatpush1.bf16.xpose.msra.mxu0 0
  %172 = vmatprep.subr.bf16.mxu0 0
  %173 = vmatpush1.bf16.xpose.msra.mxu0 0
  %174 = vmatprep.subr.bf16.mxu0 0
  %175 = vmatpush1.bf16.xpose.msra.mxu0 0
  %176 = vmatprep.subr.bf16.mxu0 0
  %177 = vmatpush1.bf16.xpose.msra.mxu0 0
  %178 = vmatprep.subr.bf16.mxu0 0
  %179 = vmatpush1.bf16.xpose.msra.mxu0 0
  %180 = vmatprep.mubr.bf16.mxu0 0
  %181 = vmatmul.mubr.bf16.gmra.mrb[0].mxu0 %v143
  %v182 = vpop.f32.mrb[0].mxu0
  %v183 = vadd.f32 0.0, %v182
  %v184 = vpop.f32.mrb[0].mxu0
  %v185 = vpop.f32.mrb[0].mxu0
  %v186 = vpop.f32.mrb[0].mxu0
  %187 = vdwg.mxu0
  %v189 = vsel %vm49, %v36, 0
  %v192 = vsel %vm49, %v44, 0
  %194 = vmatprep.subr.bf16.mxu0 0
  %195 = vmatpush1.bf16.xpose.msra.mxu0 %v192
  %196 = vmatprep.subr.bf16.mxu0 0
  %197 = vmatpush1.bf16.xpose.msra.mxu0 0
  %198 = vmatprep.subr.bf16.mxu0 0
  %199 = vmatpush1.bf16.xpose.msra.mxu0 0
  %200 = vmatprep.subr.bf16.mxu0 0
  %201 = vmatpush1.bf16.xpose.msra.mxu0 0
  %202 = vmatprep.subr.bf16.mxu0 0
  %203 = vmatpush1.bf16.xpose.msra.mxu0 0
  %204 = vmatprep.subr.bf16.mxu0 0
  %205 = vmatpush1.bf16.xpose.msra.mxu0 0
  %206 = vmatprep.subr.bf16.mxu0 0
  %207 = vmatpush1.bf16.xpose.msra.mxu0 0
  %208 = vmatprep.subr.bf16.mxu0 0
  %209 = vmatpush1.bf16.xpose.msra.mxu0 0
  %210 = vmatprep.subr.bf16.mxu0 0
  %211 = vmatpush1.bf16.xpose.msra.mxu0 0
  %212 = vmatprep.subr.bf16.mxu0 0
  %213 = vmatpush1.bf16.xpose.msra.mxu0 0
  %214 = vmatprep.subr.bf16.mxu0 0
  %215 = vmatpush1.bf16.xpose.msra.mxu0 0
  %216 = vmatprep.subr.bf16.mxu0 0
  %217 = vmatpush1.bf16.xpose.msra.mxu0 0
  %218 = vmatprep.subr.bf16.mxu0 0
  %219 = vmatpush1.bf16.xpose.msra.mxu0 0
  %220 = vmatprep.subr.bf16.mxu0 0
  %221 = vmatpush1.bf16.xpose.msra.mxu0 0
  %222 = vmatprep.subr.bf16.mxu0 0
  %223 = vmatpush1.bf16.xpose.msra.mxu0 0
  %224 = vmatprep.subr.bf16.mxu0 0
  %225 = vmatpush1.bf16.xpose.msra.mxu0 0
  %226 = vmatprep.mubr.bf16.mxu0 0
  %227 = vmatmul.mubr.bf16.gmra.mrb[0].mxu0 %v189
  %v228 = vpop.f32.mrb[0].mxu0
  %v229 = vadd.f32 0.0, %v228
  %v230 = vpop.f32.mrb[0].mxu0
  %v231 = vpop.f32.mrb[0].mxu0
  %v232 = vpop.f32.mrb[0].mxu0
  %233 = vdwg.mxu0
  %v235 = vsel %vm49, %v37, 0
  %v238 = vsel %vm49, %v45, 0
  %240 = vmatprep.subr.bf16.mxu0 0
  %241 = vmatpush1.bf16.xpose.msra.mxu0 %v238
  %242 = vmatprep.subr.bf16.mxu0 0
  %243 = vmatpush1.bf16.xpose.msra.mxu0 0
  %244 = vmatprep.subr.bf16.mxu0 0
  %245 = vmatpush1.bf16.xpose.msra.mxu0 0
  %246 = vmatprep.subr.bf16.mxu0 0
  %247 = vmatpush1.bf16.xpose.msra.mxu0 0
  %248 = vmatprep.subr.bf16.mxu0 0
  %249 = vmatpush1.bf16.xpose.msra.mxu0 0
  %250 = vmatprep.subr.bf16.mxu0 0
  %251 = vmatpush1.bf16.xpose.msra.mxu0 0
  %252 = vmatprep.subr.bf16.mxu0 0
  %253 = vmatpush1.bf16.xpose.msra.mxu0 0
  %254 = vmatprep.subr.bf16.mxu0 0
  %255 = vmatpush1.bf16.xpose.msra.mxu0 0
  %256 = vmatprep.subr.bf16.mxu0 0
  %257 = vmatpush1.bf16.xpose.msra.mxu0 0
  %258 = vmatprep.subr.bf16.mxu0 0
  %259 = vmatpush1.bf16.xpose.msra.mxu0 0
  %260 = vmatprep.subr.bf16.mxu0 0
  %261 = vmatpush1.bf16.xpose.msra.mxu0 0
  %262 = vmatprep.subr.bf16.mxu0 0
  %263 = vmatpush1.bf16.xpose.msra.mxu0 0
  %264 = vmatprep.subr.bf16.mxu0 0
  %265 = vmatpush1.bf16.xpose.msra.mxu0 0
  %266 = vmatprep.subr.bf16.mxu0 0
  %267 = vmatpush1.bf16.xpose.msra.mxu0 0
  %268 = vmatprep.subr.bf16.mxu0 0
  %269 = vmatpush1.bf16.xpose.msra.mxu0 0
  %270 = vmatprep.subr.bf16.mxu0 0
  %271 = vmatpush1.bf16.xpose.msra.mxu0 0
  %272 = vmatprep.mubr.bf16.mxu0 0
  %273 = vmatmul.mubr.bf16.gmra.mrb[0].mxu0 %v235
  %v274 = vpop.f32.mrb[0].mxu0
  %v275 = vadd.f32 0.0, %v274
  %v276 = vpop.f32.mrb[0].mxu0
  %v277 = vpop.f32.mrb[0].mxu0
  %v278 = vpop.f32.mrb[0].mxu0
  %279 = vdwg.mxu0
  %v281 = vsel %vm49, %v38, 0
  %v284 = vsel %vm49, %v46, 0
  %286 = vmatprep.subr.bf16.mxu0 0
  %287 = vmatpush1.bf16.xpose.msra.mxu0 %v284
  %288 = vmatprep.subr.bf16.mxu0 0
  %289 = vmatpush1.bf16.xpose.msra.mxu0 0
  %290 = vmatprep.subr.bf16.mxu0 0
  %291 = vmatpush1.bf16.xpose.msra.mxu0 0
  %292 = vmatprep.subr.bf16.mxu0 0
  %293 = vmatpush1.bf16.xpose.msra.mxu0 0
  %294 = vmatprep.subr.bf16.mxu0 0
  %295 = vmatpush1.bf16.xpose.msra.mxu0 0
  %296 = vmatprep.subr.bf16.mxu0 0
  %297 = vmatpush1.bf16.xpose.msra.mxu0 0
  %298 = vmatprep.subr.bf16.mxu0 0
  %299 = vmatpush1.bf16.xpose.msra.mxu0 0
  %300 = vmatprep.subr.bf16.mxu0 0
  %301 = vmatpush1.bf16.xpose.msra.mxu0 0
  %302 = vmatprep.subr.bf16.mxu0 0
  %303 = vmatpush1.bf16.xpose.msra.mxu0 0
  %304 = vmatprep.subr.bf16.mxu0 0
  %305 = vmatpush1.bf16.xpose.msra.mxu0 0
  %306 = vmatprep.subr.bf16.mxu0 0
  %307 = vmatpush1.bf16.xpose.msra.mxu0 0
  %308 = vmatprep.subr.bf16.mxu0 0
  %309 = vmatpush1.bf16.xpose.msra.mxu0 0
  %310 = vmatprep.subr.bf16.mxu0 0
  %311 = vmatpush1.bf16.xpose.msra.mxu0 0
  %312 = vmatprep.subr.bf16.mxu0 0
  %313 = vmatpush1.bf16.xpose.msra.mxu0 0
  %314 = vmatprep.subr.bf16.mxu0 0
  %315 = vmatpush1.bf16.xpose.msra.mxu0 0
  %316 = vmatprep.subr.bf16.mxu0 0
  %317 = vmatpush1.bf16.xpose.msra.mxu0 0
  %318 = vmatprep.mubr.bf16.mxu0 0
  %319 = vmatmul.mubr.bf16.gmra.mrb[0].mxu0 %v281
  %v320 = vpop.f32.mrb[0].mxu0
  %v321 = vadd.f32 0.0, %v320
  %v322 = vpop.f32.mrb[0].mxu0
  %v323 = vpop.f32.mrb[0].mxu0
  %v324 = vpop.f32.mrb[0].mxu0
  %325 = vdwg.mxu0
  %v327 = vsel %vm49, %v39, 0
  %v330 = vsel %vm49, %v47, 0
  %332 = vmatprep.subr.bf16.mxu0 0
  %333 = vmatpush1.bf16.xpose.msra.mxu0 %v330
  %334 = vmatprep.subr.bf16.mxu0 0
  %335 = vmatpush1.bf16.xpose.msra.mxu0 0
  %336 = vmatprep.subr.bf16.mxu0 0
  %337 = vmatpush1.bf16.xpose.msra.mxu0 0
  %338 = vmatprep.subr.bf16.mxu0 0
  %339 = vmatpush1.bf16.xpose.msra.mxu0 0
  %340 = vmatprep.subr.bf16.mxu0 0
  %341 = vmatpush1.bf16.xpose.msra.mxu0 0
  %342 = vmatprep.subr.bf16.mxu0 0
  %343 = vmatpush1.bf16.xpose.msra.mxu0 0
  %344 = vmatprep.subr.bf16.mxu0 0
  %345 = vmatpush1.bf16.xpose.msra.mxu0 0
  %346 = vmatprep.subr.bf16.mxu0 0
  %347 = vmatpush1.bf16.xpose.msra.mxu0 0
  %348 = vmatprep.subr.bf16.mxu0 0
  %349 = vmatpush1.bf16.xpose.msra.mxu0 0
  %350 = vmatprep.subr.bf16.mxu0 0
  %351 = vmatpush1.bf16.xpose.msra.mxu0 0
  %352 = vmatprep.subr.bf16.mxu0 0
  %353 = vmatpush1.bf16.xpose.msra.mxu0 0
  %354 = vmatprep.subr.bf16.mxu0 0
  %355 = vmatpush1.bf16.xpose.msra.mxu0 0
  %356 = vmatprep.subr.bf16.mxu0 0
  %357 = vmatpush1.bf16.xpose.msra.mxu0 0
  %358 = vmatprep.subr.bf16.mxu0 0
  %359 = vmatpush1.bf16.xpose.msra.mxu0 0
  %360 = vmatprep.subr.bf16.mxu0 0
  %361 = vmatpush1.bf16.xpose.msra.mxu0 0
  %362 = vmatprep.subr.bf16.mxu0 0
  %363 = vmatpush1.bf16.xpose.msra.mxu0 0
  %364 = vmatprep.mubr.bf16.mxu0 0
  %365 = vmatmul.mubr.bf16.gmra.mrb[0].mxu0 %v327
  %v366 = vpop.f32.mrb[0].mxu0
  %v367 = vadd.f32 0.0, %v366
  %v368 = vpop.f32.mrb[0].mxu0
  %v369 = vpop.f32.mrb[0].mxu0
  %v370 = vpop.f32.mrb[0].mxu0
  %371 = vdwg.mxu0
  %v373 = vsel %vm49, %v40, 0
  %v376 = vsel %vm49, %v48, 0
  %378 = vmatprep.subr.bf16.mxu0 0
  %379 = vmatpush1.bf16.xpose.msra.mxu0 %v376
  %380 = vmatprep.subr.bf16.mxu0 0
  %381 = vmatpush1.bf16.xpose.msra.mxu0 0
  %382 = vmatprep.subr.bf16.mxu0 0
  %383 = vmatpush1.bf16.xpose.msra.mxu0 0
  %384 = vmatprep.subr.bf16.mxu0 0
  %385 = vmatpush1.bf16.xpose.msra.mxu0 0
  %386 = vmatprep.subr.bf16.mxu0 0
  %387 = vmatpush1.bf16.xpose.msra.mxu0 0
  %388 = vmatprep.subr.bf16.mxu0 0
  %389 = vmatpush1.bf16.xpose.msra.mxu0 0
  %390 = vmatprep.subr.bf16.mxu0 0
  %391 = vmatpush1.bf16.xpose.msra.mxu0 0
  %392 = vmatprep.subr.bf16.mxu0 0
  %393 = vmatpush1.bf16.xpose.msra.mxu0 0
  %394 = vmatprep.subr.bf16.mxu0 0
  %395 = vmatpush1.bf16.xpose.msra.mxu0 0
  %396 = vmatprep.subr.bf16.mxu0 0
  %397 = vmatpush1.bf16.xpose.msra.mxu0 0
  %398 = vmatprep.subr.bf16.mxu0 0
  %399 = vmatpush1.bf16.xpose.msra.mxu0 0
  %400 = vmatprep.subr.bf16.mxu0 0
  %401 = vmatpush1.bf16.xpose.msra.mxu0 0
  %402 = vmatprep.subr.bf16.mxu0 0
  %403 = vmatpush1.bf16.xpose.msra.mxu0 0
  %404 = vmatprep.subr.bf16.mxu0 0
  %405 = vmatpush1.bf16.xpose.msra.mxu0 0
  %406 = vmatprep.subr.bf16.mxu0 0
  %407 = vmatpush1.bf16.xpose.msra.mxu0 0
  %408 = vmatprep.subr.bf16.mxu0 0
  %409 = vmatpush1.bf16.xpose.msra.mxu0 0
  %410 = vmatprep.mubr.bf16.mxu0 0
  %411 = vmatmul.mubr.bf16.gmra.mrb[0].mxu0 %v373
  %v412 = vpop.f32.mrb[0].mxu0
  %v413 = vadd.f32 0.0, %v412
  %v414 = vpop.f32.mrb[0].mxu0
  %v415 = vpop.f32.mrb[0].mxu0
  %v416 = vpop.f32.mrb[0].mxu0
  %417 = vdwg.mxu0
  %v418 = vmul.f32 %v91, 0.33125377
  %v419 = vmul.f32 %v137, 0.33125377
  %v420 = vmul.f32 %v183, 0.33125377
  %v421 = vmul.f32 %v229, 0.33125377
  %v422 = vmul.f32 %v275, 0.33125377
  %v423 = vmul.f32 %v321, 0.33125377
  %v424 = vmul.f32 %v367, 0.33125377
  %v425 = vmul.f32 %v413, 0.33125377
  %v426 = vld [vmem:[%s3] sm:$0xff]
  %v427 = vadd.f32 %v418, %v426
  %v428 = vadd.f32 %v419, %v426
  %v429 = vadd.f32 %v420, %v426
  %v430 = vadd.f32 %v421, %v426
  %v431 = vadd.f32 %v422, %v426
  %v432 = vadd.f32 %v423, %v426
  %v433 = vadd.f32 %v424, %v426
  %v434 = vadd.f32 %v425, %v426
  %vm435 = vcmask 64512
  %v436 = vsel %vm435, %v427, -inf
  %437 = vmax.xlane.f32.xlu0 %v436
  %v438 = vpop.xlane.xlu0 %437
  %v439 = vsel %vm435, %v428, -inf
  %440 = vmax.xlane.f32.xlu0 %v439
  %v441 = vpop.xlane.xlu0 %440
  %v442 = vsel %vm435, %v429, -inf
  %443 = vmax.xlane.f32.xlu0 %v442
  %v444 = vpop.xlane.xlu0 %443
  %v445 = vsel %vm435, %v430, -inf
  %446 = vmax.xlane.f32.xlu0 %v445
  %v447 = vpop.xlane.xlu0 %446
  %v448 = vsel %vm435, %v431, -inf
  %449 = vmax.xlane.f32.xlu0 %v448
  %v450 = vpop.xlane.xlu0 %449
  %v451 = vsel %vm435, %v432, -inf
  %452 = vmax.xlane.f32.xlu0 %v451
  %v453 = vpop.xlane.xlu0 %452
  %v454 = vsel %vm435, %v433, -inf
  %455 = vmax.xlane.f32.xlu0 %v454
  %v456 = vpop.xlane.xlu0 %455
  %v457 = vsel %vm435, %v434, -inf
  %458 = vmax.xlane.f32.xlu0 %v457
  %v459 = vpop.xlane.xlu0 %458
  %v460 = vsub.f32 %v427, %v438
  %v461 = vsub.f32 %v428, %v441
  %v462 = vsub.f32 %v429, %v444
  %v463 = vsub.f32 %v430, %v447
  %v464 = vsub.f32 %v431, %v450
  %v465 = vsub.f32 %v432, %v453
  %v466 = vsub.f32 %v433, %v456
  %v467 = vsub.f32 %v434, %v459
  %v468 = vmul.f32 %v460, 1.442695
  %v469 = vpow.pop %v468
  %v470 = vmul.f32 %v461, 1.442695
  %v471 = vpow.pop %v470
  %v472 = vmul.f32 %v462, 1.442695
  %v473 = vpow.pop %v472
  %v474 = vmul.f32 %v463, 1.442695
  %v475 = vpow.pop %v474
  %v476 = vmul.f32 %v464, 1.442695
  %v477 = vpow.pop %v476
  %v478 = vmul.f32 %v465, 1.442695
  %v479 = vpow.pop %v478
  %v480 = vmul.f32 %v466, 1.442695
  %v481 = vpow.pop %v480
  %v482 = vmul.f32 %v467, 1.442695
  %v483 = vpow.pop %v482
  %v484 = vsel %vm435, %v469, 0.0
  %485 = vadd.xlane.f32.xlu0 %v484
  %v486 = vpop.xlane.xlu0 %485
  %v487 = vsel %vm435, %v471, 0.0
  %488 = vadd.xlane.f32.xlu0 %v487
  %v489 = vpop.xlane.xlu0 %488
  %v490 = vsel %vm435, %v473, 0.0
  %491 = vadd.xlane.f32.xlu0 %v490
  %v492 = vpop.xlane.xlu0 %491
  %v493 = vsel %vm435, %v475, 0.0
  %494 = vadd.xlane.f32.xlu0 %v493
  %v495 = vpop.xlane.xlu0 %494
  %v496 = vsel %vm435, %v477, 0.0
  %497 = vadd.xlane.f32.xlu0 %v496
  %v498 = vpop.xlane.xlu0 %497
  %v499 = vsel %vm435, %v479, 0.0
  %500 = vadd.xlane.f32.xlu0 %v499
  %v501 = vpop.xlane.xlu0 %500
  %v502 = vsel %vm435, %v481, 0.0
  %503 = vadd.xlane.f32.xlu0 %v502
  %v504 = vpop.xlane.xlu0 %503
  %v505 = vsel %vm435, %v483, 0.0
  %506 = vadd.xlane.f32.xlu0 %v505
  %v507 = vpop.xlane.xlu0 %506
  %v508 = vrcp.pop %v486
  %v509 = vrcp.pop %v489
  %v510 = vrcp.pop %v492
  %v511 = vrcp.pop %v495
  %v512 = vrcp.pop %v498
  %v513 = vrcp.pop %v501
  %v514 = vrcp.pop %v504
  %v515 = vrcp.pop %v507
  %v516 = vmul.f32 %v469, %v508
  %v517 = vmul.f32 %v471, %v509
  %v518 = vmul.f32 %v473, %v510
  %v519 = vmul.f32 %v475, %v511
  %v520 = vmul.f32 %v477, %v512
  %v521 = vmul.f32 %v479, %v513
  %v522 = vmul.f32 %v481, %v514
  %v523 = vmul.f32 %v483, %v515
  %v524 = vpack.c.bf16 %v516, %v516
  %v525 = vpack.c.bf16 %v517, %v517
  %v526 = vpack.c.bf16 %v518, %v518
  %v527 = vpack.c.bf16 %v519, %v519
  %v528 = vpack.c.bf16 %v520, %v520
  %v529 = vpack.c.bf16 %v521, %v521
  %v530 = vpack.c.bf16 %v522, %v522
  %v531 = vpack.c.bf16 %v523, %v523
  %v532 = vld [vmem:[%s2] sm:$0xf]
  %v533 = vld [vmem:[%s2 + $0x4] sm:$0xf]
  %v534 = vld [vmem:[%s2 + $0x8] sm:$0xf]
  %v535 = vld [vmem:[%s2 + $0xc] sm:$0xf]
  %v536 = vld [vmem:[%s2 + $0x10] sm:$0xf]
  %v537 = vld [vmem:[%s2 + $0x14] sm:$0xf]
  %v538 = vld [vmem:[%s2 + $0x18] sm:$0xf]
  %v539 = vld [vmem:[%s2 + $0x1c] sm:$0xf]
  %v541 = vsel %vm435, %v524, 0
  %vm543 = vcmask 1043456
  %v545 = vsel %vm543, %v532, 0
  %547 = vmatprep.subr.bf16.mxu0 0
  %548 = vmatpush1.bf16.msra.mxu0 %v545
  %549 = vmatprep.subr.bf16.mxu0 0
  %550 = vmatpush1.bf16.msra.mxu0 0
  %551 = vmatprep.subr.bf16.mxu0 0
  %552 = vmatpush1.bf16.msra.mxu0 0
  %553 = vmatprep.subr.bf16.mxu0 0
  %554 = vmatpush1.bf16.msra.mxu0 0
  %555 = vmatprep.subr.bf16.mxu0 0
  %556 = vmatpush1.bf16.msra.mxu0 0
  %557 = vmatprep.subr.bf16.mxu0 0
  %558 = vmatpush1.bf16.msra.mxu0 0
  %559 = vmatprep.subr.bf16.mxu0 0
  %560 = vmatpush1.bf16.msra.mxu0 0
  %561 = vmatprep.subr.bf16.mxu0 0
  %562 = vmatpush1.bf16.msra.mxu0 0
  %563 = vmatprep.subr.bf16.mxu0 0
  %564 = vmatpush1.bf16.msra.mxu0 0
  %565 = vmatprep.subr.bf16.mxu0 0
  %566 = vmatpush1.bf16.msra.mxu0 0
  %567 = vmatprep.subr.bf16.mxu0 0
  %568 = vmatpush1.bf16.msra.mxu0 0
  %569 = vmatprep.subr.bf16.mxu0 0
  %570 = vmatpush1.bf16.msra.mxu0 0
  %571 = vmatprep.subr.bf16.mxu0 0
  %572 = vmatpush1.bf16.msra.mxu0 0
  %573 = vmatprep.subr.bf16.mxu0 0
  %574 = vmatpush1.bf16.msra.mxu0 0
  %575 = vmatprep.subr.bf16.mxu0 0
  %576 = vmatpush1.bf16.msra.mxu0 0
  %577 = vmatprep.subr.bf16.mxu0 0
  %578 = vmatpush1.bf16.msra.mxu0 0
  %579 = vmatprep.mubr.bf16.mxu0 0
  %580 = vmatmul.mubr.bf16.gmra.mrb[0].mxu0 %v541
  %v581 = vpop.f32.mrb[0].mxu0
  %v582 = vadd.f32 0.0, %v581
  %v583 = vpop.f32.mrb[0].mxu0
  %v584 = vpop.f32.mrb[0].mxu0
  %v585 = vpop.f32.mrb[0].mxu0
  %586 = vdwg.mxu0
  %v588 = vsel %vm435, %v525, 0
  %v591 = vsel %vm543, %v533, 0
  %593 = vmatprep.subr.bf16.mxu0 0
  %594 = vmatpush1.bf16.msra.mxu0 %v591
  %595 = vmatprep.subr.bf16.mxu0 0
  %596 = vmatpush1.bf16.msra.mxu0 0
  %597 = vmatprep.subr.bf16.mxu0 0
  %598 = vmatpush1.bf16.msra.mxu0 0
  %599 = vmatprep.subr.bf16.mxu0 0
  %600 = vmatpush1.bf16.msra.mxu0 0
  %601 = vmatprep.subr.bf16.mxu0 0
  %602 = vmatpush1.bf16.msra.mxu0 0
  %603 = vmatprep.subr.bf16.mxu0 0
  %604 = vmatpush1.bf16.msra.mxu0 0
  %605 = vmatprep.subr.bf16.mxu0 0
  %606 = vmatpush1.bf16.msra.mxu0 0
  %607 = vmatprep.subr.bf16.mxu0 0
  %608 = vmatpush1.bf16.msra.mxu0 0
  %609 = vmatprep.subr.bf16.mxu0 0
  %610 = vmatpush1.bf16.msra.mxu0 0
  %611 = vmatprep.subr.bf16.mxu0 0
  %612 = vmatpush1.bf16.msra.mxu0 0
  %613 = vmatprep.subr.bf16.mxu0 0
  %614 = vmatpush1.bf16.msra.mxu0 0
  %615 = vmatprep.subr.bf16.mxu0 0
  %616 = vmatpush1.bf16.msra.mxu0 0
  %617 = vmatprep.subr.bf16.mxu0 0
  %618 = vmatpush1.bf16.msra.mxu0 0
  %619 = vmatprep.subr.bf16.mxu0 0
  %620 = vmatpush1.bf16.msra.mxu0 0
  %621 = vmatprep.subr.bf16.mxu0 0
  %622 = vmatpush1.bf16.msra.mxu0 0
  %623 = vmatprep.subr.bf16.mxu0 0
  %624 = vmatpush1.bf16.msra.mxu0 0
  %625 = vmatprep.mubr.bf16.mxu0 0
  %626 = vmatmul.mubr.bf16.gmra.mrb[0].mxu0 %v588
  %v627 = vpop.f32.mrb[0].mxu0
  %v628 = vadd.f32 0.0, %v627
  %v629 = vpop.f32.mrb[0].mxu0
  %v630 = vpop.f32.mrb[0].mxu0
  %v631 = vpop.f32.mrb[0].mxu0
  %632 = vdwg.mxu0
  %v634 = vsel %vm435, %v526, 0
  %v637 = vsel %vm543, %v534, 0
  %639 = vmatprep.subr.bf16.mxu0 0
  %640 = vmatpush1.bf16.msra.mxu0 %v637
  %641 = vmatprep.subr.bf16.mxu0 0
  %642 = vmatpush1.bf16.msra.mxu0 0
  %643 = vmatprep.subr.bf16.mxu0 0
  %644 = vmatpush1.bf16.msra.mxu0 0
  %645 = vmatprep.subr.bf16.mxu0 0
  %646 = vmatpush1.bf16.msra.mxu0 0
  %647 = vmatprep.subr.bf16.mxu0 0
  %648 = vmatpush1.bf16.msra.mxu0 0
  %649 = vmatprep.subr.bf16.mxu0 0
  %650 = vmatpush1.bf16.msra.mxu0 0
  %651 = vmatprep.subr.bf16.mxu0 0
  %652 = vmatpush1.bf16.msra.mxu0 0
  %653 = vmatprep.subr.bf16.mxu0 0
  %654 = vmatpush1.bf16.msra.mxu0 0
  %655 = vmatprep.subr.bf16.mxu0 0
  %656 = vmatpush1.bf16.msra.mxu0 0
  %657 = vmatprep.subr.bf16.mxu0 0
  %658 = vmatpush1.bf16.msra.mxu0 0
  %659 = vmatprep.subr.bf16.mxu0 0
  %660 = vmatpush1.bf16.msra.mxu0 0
  %661 = vmatprep.subr.bf16.mxu0 0
  %662 = vmatpush1.bf16.msra.mxu0 0
  %663 = vmatprep.subr.bf16.mxu0 0
  %664 = vmatpush1.bf16.msra.mxu0 0
  %665 = vmatprep.subr.bf16.mxu0 0
  %666 = vmatpush1.bf16.msra.mxu0 0
  %667 = vmatprep.subr.bf16.mxu0 0
  %668 = vmatpush1.bf16.msra.mxu0 0
  %669 = vmatprep.subr.bf16.mxu0 0
  %670 = vmatpush1.bf16.msra.mxu0 0
  %671 = vmatprep.mubr.bf16.mxu0 0
  %672 = vmatmul.mubr.bf16.gmra.mrb[0].mxu0 %v634
  %v673 = vpop.f32.mrb[0].mxu0
  %v674 = vadd.f32 0.0, %v673
  %v675 = vpop.f32.mrb[0].mxu0
  %v676 = vpop.f32.mrb[0].mxu0
  %v677 = vpop.f32.mrb[0].mxu0
  %678 = vdwg.mxu0
  %v680 = vsel %vm435, %v527, 0
  %v683 = vsel %vm543, %v535, 0
  %685 = vmatprep.subr.bf16.mxu0 0
  %686 = vmatpush1.bf16.msra.mxu0 %v683
  %687 = vmatprep.subr.bf16.mxu0 0
  %688 = vmatpush1.bf16.msra.mxu0 0
  %689 = vmatprep.subr.bf16.mxu0 0
  %690 = vmatpush1.bf16.msra.mxu0 0
  %691 = vmatprep.subr.bf16.mxu0 0
  %692 = vmatpush1.bf16.msra.mxu0 0
  %693 = vmatprep.subr.bf16.mxu0 0
  %694 = vmatpush1.bf16.msra.mxu0 0
  %695 = vmatprep.subr.bf16.mxu0 0
  %696 = vmatpush1.bf16.msra.mxu0 0
  %697 = vmatprep.subr.bf16.mxu0 0
  %698 = vmatpush1.bf16.msra.mxu0 0
  %699 = vmatprep.subr.bf16.mxu0 0
  %700 = vmatpush1.bf16.msra.mxu0 0
  %701 = vmatprep.subr.bf16.mxu0 0
  %702 = vmatpush1.bf16.msra.mxu0 0
  %703 = vmatprep.subr.bf16.mxu0 0
  %704 = vmatpush1.bf16.msra.mxu0 0
  %705 = vmatprep.subr.bf16.mxu0 0
  %706 = vmatpush1.bf16.msra.mxu0 0
  %707 = vmatprep.subr.bf16.mxu0 0
  %708 = vmatpush1.bf16.msra.mxu0 0
  %709 = vmatprep.subr.bf16.mxu0 0
  %710 = vmatpush1.bf16.msra.mxu0 0
  %711 = vmatprep.subr.bf16.mxu0 0
  %712 = vmatpush1.bf16.msra.mxu0 0
  %713 = vmatprep.subr.bf16.mxu0 0
  %714 = vmatpush1.bf16.msra.mxu0 0
  %715 = vmatprep.subr.bf16.mxu0 0
  %716 = vmatpush1.bf16.msra.mxu0 0
  %717 = vmatprep.mubr.bf16.mxu0 0
  %718 = vmatmul.mubr.bf16.gmra.mrb[0].mxu0 %v680
  %v719 = vpop.f32.mrb[0].mxu0
  %v720 = vadd.f32 0.0, %v719
  %v721 = vpop.f32.mrb[0].mxu0
  %v722 = vpop.f32.mrb[0].mxu0
  %v723 = vpop.f32.mrb[0].mxu0
  %724 = vdwg.mxu0
  %v726 = vsel %vm435, %v528, 0
  %v729 = vsel %vm543, %v536, 0
  %731 = vmatprep.subr.bf16.mxu0 0
  %732 = vmatpush1.bf16.msra.mxu0 %v729
  %733 = vmatprep.subr.bf16.mxu0 0
  %734 = vmatpush1.bf16.msra.mxu0 0
  %735 = vmatprep.subr.bf16.mxu0 0
  %736 = vmatpush1.bf16.msra.mxu0 0
  %737 = vmatprep.subr.bf16.mxu0 0
  %738 = vmatpush1.bf16.msra.mxu0 0
  %739 = vmatprep.subr.bf16.mxu0 0
  %740 = vmatpush1.bf16.msra.mxu0 0
  %741 = vmatprep.subr.bf16.mxu0 0
  %742 = vmatpush1.bf16.msra.mxu0 0
  %743 = vmatprep.subr.bf16.mxu0 0
  %744 = vmatpush1.bf16.msra.mxu0 0
  %745 = vmatprep.subr.bf16.mxu0 0
  %746 = vmatpush1.bf16.msra.mxu0 0
  %747 = vmatprep.subr.bf16.mxu0 0
  %748 = vmatpush1.bf16.msra.mxu0 0
  %749 = vmatprep.subr.bf16.mxu0 0
  %750 = vmatpush1.bf16.msra.mxu0 0
  %751 = vmatprep.subr.bf16.mxu0 0
  %752 = vmatpush1.bf16.msra.mxu0 0
  %753 = vmatprep.subr.bf16.mxu0 0
  %754 = vmatpush1.bf16.msra.mxu0 0
  %755 = vmatprep.subr.bf16.mxu0 0
  %756 = vmatpush1.bf16.msra.mxu0 0
  %757 = vmatprep.subr.bf16.mxu0 0
  %758 = vmatpush1.bf16.msra.mxu0 0
  %759 = vmatprep.subr.bf16.mxu0 0
  %760 = vmatpush1.bf16.msra.mxu0 0
  %761 = vmatprep.subr.bf16.mxu0 0
  %762 = vmatpush1.bf16.msra.mxu0 0
  %763 = vmatprep.mubr.bf16.mxu0 0
  %764 = vmatmul.mubr.bf16.gmra.mrb[0].mxu0 %v726
  %v765 = vpop.f32.mrb[0].mxu0
  %v766 = vadd.f32 0.0, %v765
  %v767 = vpop.f32.mrb[0].mxu0
  %v768 = vpop.f32.mrb[0].mxu0
  %v769 = vpop.f32.mrb[0].mxu0
  %770 = vdwg.mxu0
  %v772 = vsel %vm435, %v529, 0
  %v775 = vsel %vm543, %v537, 0
  %777 = vmatprep.subr.bf16.mxu0 0
  %778 = vmatpush1.bf16.msra.mxu0 %v775
  %779 = vmatprep.subr.bf16.mxu0 0
  %780 = vmatpush1.bf16.msra.mxu0 0
  %781 = vmatprep.subr.bf16.mxu0 0
  %782 = vmatpush1.bf16.msra.mxu0 0
  %783 = vmatprep.subr.bf16.mxu0 0
  %784 = vmatpush1.bf16.msra.mxu0 0
  %785 = vmatprep.subr.bf16.mxu0 0
  %786 = vmatpush1.bf16.msra.mxu0 0
  %787 = vmatprep.subr.bf16.mxu0 0
  %788 = vmatpush1.bf16.msra.mxu0 0
  %789 = vmatprep.subr.bf16.mxu0 0
  %790 = vmatpush1.bf16.msra.mxu0 0
  %791 = vmatprep.subr.bf16.mxu0 0
  %792 = vmatpush1.bf16.msra.mxu0 0
  %793 = vmatprep.subr.bf16.mxu0 0
  %794 = vmatpush1.bf16.msra.mxu0 0
  %795 = vmatprep.subr.bf16.mxu0 0
  %796 = vmatpush1.bf16.msra.mxu0 0
  %797 = vmatprep.subr.bf16.mxu0 0
  %798 = vmatpush1.bf16.msra.mxu0 0
  %799 = vmatprep.subr.bf16.mxu0 0
  %800 = vmatpush1.bf16.msra.mxu0 0
  %801 = vmatprep.subr.bf16.mxu0 0
  %802 = vmatpush1.bf16.msra.mxu0 0
  %803 = vmatprep.subr.bf16.mxu0 0
  %804 = vmatpush1.bf16.msra.mxu0 0
  %805 = vmatprep.subr.bf16.mxu0 0
  %806 = vmatpush1.bf16.msra.mxu0 0
  %807 = vmatprep.subr.bf16.mxu0 0
  %808 = vmatpush1.bf16.msra.mxu0 0
  %809 = vmatprep.mubr.bf16.mxu0 0
  %810 = vmatmul.mubr.bf16.gmra.mrb[0].mxu0 %v772
  %v811 = vpop.f32.mrb[0].mxu0
  %v812 = vadd.f32 0.0, %v811
  %v813 = vpop.f32.mrb[0].mxu0
  %v814 = vpop.f32.mrb[0].mxu0
  %v815 = vpop.f32.mrb[0].mxu0
  %816 = vdwg.mxu0
  %v818 = vsel %vm435, %v530, 0
  %v821 = vsel %vm543, %v538, 0
  %823 = vmatprep.subr.bf16.mxu0 0
  %824 = vmatpush1.bf16.msra.mxu0 %v821
  %825 = vmatprep.subr.bf16.mxu0 0
  %826 = vmatpush1.bf16.msra.mxu0 0
  %827 = vmatprep.subr.bf16.mxu0 0
  %828 = vmatpush1.bf16.msra.mxu0 0
  %829 = vmatprep.subr.bf16.mxu0 0
  %830 = vmatpush1.bf16.msra.mxu0 0
  %831 = vmatprep.subr.bf16.mxu0 0
  %832 = vmatpush1.bf16.msra.mxu0 0
  %833 = vmatprep.subr.bf16.mxu0 0
  %834 = vmatpush1.bf16.msra.mxu0 0
  %835 = vmatprep.subr.bf16.mxu0 0
  %836 = vmatpush1.bf16.msra.mxu0 0
  %837 = vmatprep.subr.bf16.mxu0 0
  %838 = vmatpush1.bf16.msra.mxu0 0
  %839 = vmatprep.subr.bf16.mxu0 0
  %840 = vmatpush1.bf16.msra.mxu0 0
  %841 = vmatprep.subr.bf16.mxu0 0
  %842 = vmatpush1.bf16.msra.mxu0 0
  %843 = vmatprep.subr.bf16.mxu0 0
  %844 = vmatpush1.bf16.msra.mxu0 0
  %845 = vmatprep.subr.bf16.mxu0 0
  %846 = vmatpush1.bf16.msra.mxu0 0
  %847 = vmatprep.subr.bf16.mxu0 0
  %848 = vmatpush1.bf16.msra.mxu0 0
  %849 = vmatprep.subr.bf16.mxu0 0
  %850 = vmatpush1.bf16.msra.mxu0 0
  %851 = vmatprep.subr.bf16.mxu0 0
  %852 = vmatpush1.bf16.msra.mxu0 0
  %853 = vmatprep.subr.bf16.mxu0 0
  %854 = vmatpush1.bf16.msra.mxu0 0
  %855 = vmatprep.mubr.bf16.mxu0 0
  %856 = vmatmul.mubr.bf16.gmra.mrb[0].mxu0 %v818
  %v857 = vpop.f32.mrb[0].mxu0
  %v858 = vadd.f32 0.0, %v857
  %v859 = vpop.f32.mrb[0].mxu0
  %v860 = vpop.f32.mrb[0].mxu0
  %v861 = vpop.f32.mrb[0].mxu0
  %862 = vdwg.mxu0
  %v864 = vsel %vm435, %v531, 0
  %v867 = vsel %vm543, %v539, 0
  %869 = vmatprep.subr.bf16.mxu0 0
  %870 = vmatpush1.bf16.msra.mxu0 %v867
  %871 = vmatprep.subr.bf16.mxu0 0
  %872 = vmatpush1.bf16.msra.mxu0 0
  %873 = vmatprep.subr.bf16.mxu0 0
  %874 = vmatpush1.bf16.msra.mxu0 0
  %875 = vmatprep.subr.bf16.mxu0 0
  %876 = vmatpush1.bf16.msra.mxu0 0
  %877 = vmatprep.subr.bf16.mxu0 0
  %878 = vmatpush1.bf16.msra.mxu0 0
  %879 = vmatprep.subr.bf16.mxu0 0
  %880 = vmatpush1.bf16.msra.mxu0 0
  %881 = vmatprep.subr.bf16.mxu0 0
  %882 = vmatpush1.bf16.msra.mxu0 0
  %883 = vmatprep.subr.bf16.mxu0 0
  %884 = vmatpush1.bf16.msra.mxu0 0
  %885 = vmatprep.subr.bf16.mxu0 0
  %886 = vmatpush1.bf16.msra.mxu0 0
  %887 = vmatprep.subr.bf16.mxu0 0
  %888 = vmatpush1.bf16.msra.mxu0 0
  %889 = vmatprep.subr.bf16.mxu0 0
  %890 = vmatpush1.bf16.msra.mxu0 0
  %891 = vmatprep.subr.bf16.mxu0 0
  %892 = vmatpush1.bf16.msra.mxu0 0
  %893 = vmatprep.subr.bf16.mxu0 0
  %894 = vmatpush1.bf16.msra.mxu0 0
  %895 = vmatprep.subr.bf16.mxu0 0
  %896 = vmatpush1.bf16.msra.mxu0 0
  %897 = vmatprep.subr.bf16.mxu0 0
  %898 = vmatpush1.bf16.msra.mxu0 0
  %899 = vmatprep.subr.bf16.mxu0 0
  %900 = vmatpush1.bf16.msra.mxu0 0
  %901 = vmatprep.mubr.bf16.mxu0 0
  %902 = vmatmul.mubr.bf16.gmra.mrb[0].mxu0 %v864
  %v903 = vpop.f32.mrb[0].mxu0
  %v904 = vadd.f32 0.0, %v903
  %v905 = vpop.f32.mrb[0].mxu0
  %v906 = vpop.f32.mrb[0].mxu0
  %v907 = vpop.f32.mrb[0].mxu0
  %908 = vdwg.mxu0
  %v909 = vld [vmem:[%s5] sm:$0xff]
  %v910 = vld [vmem:[%s5 + $0x8] sm:$0xff]
  %v911 = vpack.c.bf16 %v582, %v582
  %v912 = vld [vmem:[%s4] sm:$0xf]
  %v913 = vld [vmem:[%s4 + $0x4] sm:$0xf]
  %v916 = vunpack.c.l.b16 %v912
  %v917 = vunpack.c.l.b16 %v913
  %v918 = vpack.c.b16 %v917, %v916
  %vm920 = vcmask 130048
  %v922 = vsel %vm920, %v911, 0
  %924 = vmatprep.subr.bf16.mxu0 0
  %925 = vmatpush1.bf16.msra.mxu0 %v918
  %926 = vmatprep.subr.bf16.mxu0 0
  %927 = vmatpush1.bf16.msra.mxu0 0
  %928 = vmatprep.subr.bf16.mxu0 0
  %929 = vmatpush1.bf16.msra.mxu0 0
  %930 = vmatprep.subr.bf16.mxu0 0
  %931 = vmatpush1.bf16.msra.mxu0 0
  %932 = vmatprep.subr.bf16.mxu0 0
  %933 = vmatpush1.bf16.msra.mxu0 0
  %934 = vmatprep.subr.bf16.mxu0 0
  %935 = vmatpush1.bf16.msra.mxu0 0
  %936 = vmatprep.subr.bf16.mxu0 0
  %937 = vmatpush1.bf16.msra.mxu0 0
  %938 = vmatprep.subr.bf16.mxu0 0
  %939 = vmatpush1.bf16.msra.mxu0 0
  %940 = vmatprep.subr.bf16.mxu0 0
  %941 = vmatpush1.bf16.msra.mxu0 0
  %942 = vmatprep.subr.bf16.mxu0 0
  %943 = vmatpush1.bf16.msra.mxu0 0
  %944 = vmatprep.subr.bf16.mxu0 0
  %945 = vmatpush1.bf16.msra.mxu0 0
  %946 = vmatprep.subr.bf16.mxu0 0
  %947 = vmatpush1.bf16.msra.mxu0 0
  %948 = vmatprep.subr.bf16.mxu0 0
  %949 = vmatpush1.bf16.msra.mxu0 0
  %950 = vmatprep.subr.bf16.mxu0 0
  %951 = vmatpush1.bf16.msra.mxu0 0
  %952 = vmatprep.subr.bf16.mxu0 0
  %953 = vmatpush1.bf16.msra.mxu0 0
  %954 = vmatprep.subr.bf16.mxu0 0
  %955 = vmatpush1.bf16.msra.mxu0 0
  %956 = vmatprep.mubr.bf16.mxu0 0
  %957 = vmatmul.mubr.bf16.gmra.mrb[0].mxu0 %v922
  %v958 = vpop.f32.mrb[0].mxu0
  %v959 = vadd.f32 0.0, %v958
  %v960 = vpop.f32.mrb[0].mxu0
  %v961 = vpop.f32.mrb[0].mxu0
  %v962 = vpop.f32.mrb[0].mxu0
  %963 = vdwg.mxu0
  %v964 = vadd.f32 %v909, %v959
  %v965 = vpack.c.bf16 %v628, %v628
  %s966 = scalar_lea.vmem %s4, 8
  %v967 = vld [vmem:[%s966] sm:$0xf]
  %v968 = vld [vmem:[%s966 + $0x4] sm:$0xf]
  %v971 = vunpack.c.l.b16 %v967
  %v972 = vunpack.c.l.b16 %v968
  %v973 = vpack.c.b16 %v972, %v971
  %v976 = vsel %vm920, %v965, 0
  %978 = vmatprep.subr.bf16.mxu0 0
  %979 = vmatpush1.bf16.msra.mxu0 %v973
  %980 = vmatprep.subr.bf16.mxu0 0
  %981 = vmatpush1.bf16.msra.mxu0 0
  %982 = vmatprep.subr.bf16.mxu0 0
  %983 = vmatpush1.bf16.msra.mxu0 0
  %984 = vmatprep.subr.bf16.mxu0 0
  %985 = vmatpush1.bf16.msra.mxu0 0
  %986 = vmatprep.subr.bf16.mxu0 0
  %987 = vmatpush1.bf16.msra.mxu0 0
  %988 = vmatprep.subr.bf16.mxu0 0
  %989 = vmatpush1.bf16.msra.mxu0 0
  %990 = vmatprep.subr.bf16.mxu0 0
  %991 = vmatpush1.bf16.msra.mxu0 0
  %992 = vmatprep.subr.bf16.mxu0 0
  %993 = vmatpush1.bf16.msra.mxu0 0
  %994 = vmatprep.subr.bf16.mxu0 0
  %995 = vmatpush1.bf16.msra.mxu0 0
  %996 = vmatprep.subr.bf16.mxu0 0
  %997 = vmatpush1.bf16.msra.mxu0 0
  %998 = vmatprep.subr.bf16.mxu0 0
  %999 = vmatpush1.bf16.msra.mxu0 0
  %1000 = vmatprep.subr.bf16.mxu0 0
  %1001 = vmatpush1.bf16.msra.mxu0 0
  %1002 = vmatprep.subr.bf16.mxu0 0
  %1003 = vmatpush1.bf16.msra.mxu0 0
  %1004 = vmatprep.subr.bf16.mxu0 0
  %1005 = vmatpush1.bf16.msra.mxu0 0
  %1006 = vmatprep.subr.bf16.mxu0 0
  %1007 = vmatpush1.bf16.msra.mxu0 0
  %1008 = vmatprep.subr.bf16.mxu0 0
  %1009 = vmatpush1.bf16.msra.mxu0 0
  %1010 = vmatprep.mubr.bf16.mxu0 0
  %1011 = vmatmul.mubr.bf16.gmra.mrb[0].mxu0 %v976
  %v1012 = vpop.f32.mrb[0].mxu0
  %v1013 = vadd.f32 0.0, %v1012
  %v1014 = vpop.f32.mrb[0].mxu0
  %v1015 = vpop.f32.mrb[0].mxu0
  %v1016 = vpop.f32.mrb[0].mxu0
  %1017 = vdwg.mxu0
  %v1018 = vadd.f32 %v964, %v1013
  %v1019 = vpack.c.bf16 %v674, %v674
  %s1020 = scalar_lea.vmem %s4, 16
  %v1021 = vld [vmem:[%s1020] sm:$0xf]
  %v1022 = vld [vmem:[%s1020 + $0x4] sm:$0xf]
  %v1025 = vunpack.c.l.b16 %v1021
  %v1026 = vunpack.c.l.b16 %v1022
  %v1027 = vpack.c.b16 %v1026, %v1025
  %v1030 = vsel %vm920, %v1019, 0
  %1032 = vmatprep.subr.bf16.mxu0 0
  %1033 = vmatpush1.bf16.msra.mxu0 %v1027
  %1034 = vmatprep.subr.bf16.mxu0 0
  %1035 = vmatpush1.bf16.msra.mxu0 0
  %1036 = vmatprep.subr.bf16.mxu0 0
  %1037 = vmatpush1.bf16.msra.mxu0 0
  %1038 = vmatprep.subr.bf16.mxu0 0
  %1039 = vmatpush1.bf16.msra.mxu0 0
  %1040 = vmatprep.subr.bf16.mxu0 0
  %1041 = vmatpush1.bf16.msra.mxu0 0
  %1042 = vmatprep.subr.bf16.mxu0 0
  %1043 = vmatpush1.bf16.msra.mxu0 0
  %1044 = vmatprep.subr.bf16.mxu0 0
  %1045 = vmatpush1.bf16.msra.mxu0 0
  %1046 = vmatprep.subr.bf16.mxu0 0
  %1047 = vmatpush1.bf16.msra.mxu0 0
  %1048 = vmatprep.subr.bf16.mxu0 0
  %1049 = vmatpush1.bf16.msra.mxu0 0
  %1050 = vmatprep.subr.bf16.mxu0 0
  %1051 = vmatpush1.bf16.msra.mxu0 0
  %1052 = vmatprep.subr.bf16.mxu0 0
  %1053 = vmatpush1.bf16.msra.mxu0 0
  %1054 = vmatprep.subr.bf16.mxu0 0
  %1055 = vmatpush1.bf16.msra.mxu0 0
  %1056 = vmatprep.subr.bf16.mxu0 0
  %1057 = vmatpush1.bf16.msra.mxu0 0
  %1058 = vmatprep.subr.bf16.mxu0 0
  %1059 = vmatpush1.bf16.msra.mxu0 0
  %1060 = vmatprep.subr.bf16.mxu0 0
  %1061 = vmatpush1.bf16.msra.mxu0 0
  %1062 = vmatprep.subr.bf16.mxu0 0
  %1063 = vmatpush1.bf16.msra.mxu0 0
  %1064 = vmatprep.mubr.bf16.mxu0 0
  %1065 = vmatmul.mubr.bf16.gmra.mrb[0].mxu0 %v1030
  %v1066 = vpop.f32.mrb[0].mxu0
  %v1067 = vadd.f32 0.0, %v1066
  %v1068 = vpop.f32.mrb[0].mxu0
  %v1069 = vpop.f32.mrb[0].mxu0
  %v1070 = vpop.f32.mrb[0].mxu0
  %1071 = vdwg.mxu0
  %v1072 = vadd.f32 %v1018, %v1067
  %v1073 = vpack.c.bf16 %v720, %v720
  %s1074 = scalar_lea.vmem %s4, 24
  %v1075 = vld [vmem:[%s1074] sm:$0xf]
  %v1076 = vld [vmem:[%s1074 + $0x4] sm:$0xf]
  %v1079 = vunpack.c.l.b16 %v1075
  %v1080 = vunpack.c.l.b16 %v1076
  %v1081 = vpack.c.b16 %v1080, %v1079
  %v1084 = vsel %vm920, %v1073, 0
  %1086 = vmatprep.subr.bf16.mxu0 0
  %1087 = vmatpush1.bf16.msra.mxu0 %v1081
  %1088 = vmatprep.subr.bf16.mxu0 0
  %1089 = vmatpush1.bf16.msra.mxu0 0
  %1090 = vmatprep.subr.bf16.mxu0 0
  %1091 = vmatpush1.bf16.msra.mxu0 0
  %1092 = vmatprep.subr.bf16.mxu0 0
  %1093 = vmatpush1.bf16.msra.mxu0 0
  %1094 = vmatprep.subr.bf16.mxu0 0
  %1095 = vmatpush1.bf16.msra.mxu0 0
  %1096 = vmatprep.subr.bf16.mxu0 0
  %1097 = vmatpush1.bf16.msra.mxu0 0
  %1098 = vmatprep.subr.bf16.mxu0 0
  %1099 = vmatpush1.bf16.msra.mxu0 0
  %1100 = vmatprep.subr.bf16.mxu0 0
  %1101 = vmatpush1.bf16.msra.mxu0 0
  %1102 = vmatprep.subr.bf16.mxu0 0
  %1103 = vmatpush1.bf16.msra.mxu0 0
  %1104 = vmatprep.subr.bf16.mxu0 0
  %1105 = vmatpush1.bf16.msra.mxu0 0
  %1106 = vmatprep.subr.bf16.mxu0 0
  %1107 = vmatpush1.bf16.msra.mxu0 0
  %1108 = vmatprep.subr.bf16.mxu0 0
  %1109 = vmatpush1.bf16.msra.mxu0 0
  %1110 = vmatprep.subr.bf16.mxu0 0
  %1111 = vmatpush1.bf16.msra.mxu0 0
  %1112 = vmatprep.subr.bf16.mxu0 0
  %1113 = vmatpush1.bf16.msra.mxu0 0
  %1114 = vmatprep.subr.bf16.mxu0 0
  %1115 = vmatpush1.bf16.msra.mxu0 0
  %1116 = vmatprep.subr.bf16.mxu0 0
  %1117 = vmatpush1.bf16.msra.mxu0 0
  %1118 = vmatprep.mubr.bf16.mxu0 0
  %1119 = vmatmul.mubr.bf16.gmra.mrb[0].mxu0 %v1084
  %v1120 = vpop.f32.mrb[0].mxu0
  %v1121 = vadd.f32 0.0, %v1120
  %v1122 = vpop.f32.mrb[0].mxu0
  %v1123 = vpop.f32.mrb[0].mxu0
  %v1124 = vpop.f32.mrb[0].mxu0
  %1125 = vdwg.mxu0
  %v1126 = vadd.f32 %v1072, %v1121
  %v1127 = vpack.c.bf16 %v766, %v766
  %v1129 = vsel %vm920, %v1127, 0
  %1131 = vmatprep.subr.bf16.mxu0 0
  %1132 = vmatpush1.bf16.msra.mxu0 %v918
  %1133 = vmatprep.subr.bf16.mxu0 0
  %1134 = vmatpush1.bf16.msra.mxu0 0
  %1135 = vmatprep.subr.bf16.mxu0 0
  %1136 = vmatpush1.bf16.msra.mxu0 0
  %1137 = vmatprep.subr.bf16.mxu0 0
  %1138 = vmatpush1.bf16.msra.mxu0 0
  %1139 = vmatprep.subr.bf16.mxu0 0
  %1140 = vmatpush1.bf16.msra.mxu0 0
  %1141 = vmatprep.subr.bf16.mxu0 0
  %1142 = vmatpush1.bf16.msra.mxu0 0
  %1143 = vmatprep.subr.bf16.mxu0 0
  %1144 = vmatpush1.bf16.msra.mxu0 0
  %1145 = vmatprep.subr.bf16.mxu0 0
  %1146 = vmatpush1.bf16.msra.mxu0 0
  %1147 = vmatprep.subr.bf16.mxu0 0
  %1148 = vmatpush1.bf16.msra.mxu0 0
  %1149 = vmatprep.subr.bf16.mxu0 0
  %1150 = vmatpush1.bf16.msra.mxu0 0
  %1151 = vmatprep.subr.bf16.mxu0 0
  %1152 = vmatpush1.bf16.msra.mxu0 0
  %1153 = vmatprep.subr.bf16.mxu0 0
  %1154 = vmatpush1.bf16.msra.mxu0 0
  %1155 = vmatprep.subr.bf16.mxu0 0
  %1156 = vmatpush1.bf16.msra.mxu0 0
  %1157 = vmatprep.subr.bf16.mxu0 0
  %1158 = vmatpush1.bf16.msra.mxu0 0
  %1159 = vmatprep.subr.bf16.mxu0 0
  %1160 = vmatpush1.bf16.msra.mxu0 0
  %1161 = vmatprep.subr.bf16.mxu0 0
  %1162 = vmatpush1.bf16.msra.mxu0 0
  %1163 = vmatprep.mubr.bf16.mxu0 0
  %1164 = vmatmul.mubr.bf16.gmra.mrb[0].mxu0 %v1129
  %v1165 = vpop.f32.mrb[0].mxu0
  %v1166 = vadd.f32 0.0, %v1165
  %v1167 = vpop.f32.mrb[0].mxu0
  %v1168 = vpop.f32.mrb[0].mxu0
  %v1169 = vpop.f32.mrb[0].mxu0
  %1170 = vdwg.mxu0
  %v1171 = vadd.f32 %v910, %v1166
  %v1172 = vpack.c.bf16 %v812, %v812
  %v1174 = vsel %vm920, %v1172, 0
  %1176 = vmatprep.subr.bf16.mxu0 0
  %1177 = vmatpush1.bf16.msra.mxu0 %v973
  %1178 = vmatprep.subr.bf16.mxu0 0
  %1179 = vmatpush1.bf16.msra.mxu0 0
  %1180 = vmatprep.subr.bf16.mxu0 0
  %1181 = vmatpush1.bf16.msra.mxu0 0
  %1182 = vmatprep.subr.bf16.mxu0 0
  %1183 = vmatpush1.bf16.msra.mxu0 0
  %1184 = vmatprep.subr.bf16.mxu0 0
  %1185 = vmatpush1.bf16.msra.mxu0 0
  %1186 = vmatprep.subr.bf16.mxu0 0
  %1187 = vmatpush1.bf16.msra.mxu0 0
  %1188 = vmatprep.subr.bf16.mxu0 0
  %1189 = vmatpush1.bf16.msra.mxu0 0
  %1190 = vmatprep.subr.bf16.mxu0 0
  %1191 = vmatpush1.bf16.msra.mxu0 0
  %1192 = vmatprep.subr.bf16.mxu0 0
  %1193 = vmatpush1.bf16.msra.mxu0 0
  %1194 = vmatprep.subr.bf16.mxu0 0
  %1195 = vmatpush1.bf16.msra.mxu0 0
  %1196 = vmatprep.subr.bf16.mxu0 0
  %1197 = vmatpush1.bf16.msra.mxu0 0
  %1198 = vmatprep.subr.bf16.mxu0 0
  %1199 = vmatpush1.bf16.msra.mxu0 0
  %1200 = vmatprep.subr.bf16.mxu0 0
  %1201 = vmatpush1.bf16.msra.mxu0 0
  %1202 = vmatprep.subr.bf16.mxu0 0
  %1203 = vmatpush1.bf16.msra.mxu0 0
  %1204 = vmatprep.subr.bf16.mxu0 0
  %1205 = vmatpush1.bf16.msra.mxu0 0
  %1206 = vmatprep.subr.bf16.mxu0 0
  %1207 = vmatpush1.bf16.msra.mxu0 0
  %1208 = vmatprep.mubr.bf16.mxu0 0
  %1209 = vmatmul.mubr.bf16.gmra.mrb[0].mxu0 %v1174
  %v1210 = vpop.f32.mrb[0].mxu0
  %v1211 = vadd.f32 0.0, %v1210
  %v1212 = vpop.f32.mrb[0].mxu0
  %v1213 = vpop.f32.mrb[0].mxu0
  %v1214 = vpop.f32.mrb[0].mxu0
  %1215 = vdwg.mxu0
  %v1216 = vadd.f32 %v1171, %v1211
  %v1217 = vpack.c.bf16 %v858, %v858
  %v1219 = vsel %vm920, %v1217, 0
  %1221 = vmatprep.subr.bf16.mxu0 0
  %1222 = vmatpush1.bf16.msra.mxu0 %v1027
  %1223 = vmatprep.subr.bf16.mxu0 0
  %1224 = vmatpush1.bf16.msra.mxu0 0
  %1225 = vmatprep.subr.bf16.mxu0 0
  %1226 = vmatpush1.bf16.msra.mxu0 0
  %1227 = vmatprep.subr.bf16.mxu0 0
  %1228 = vmatpush1.bf16.msra.mxu0 0
  %1229 = vmatprep.subr.bf16.mxu0 0
  %1230 = vmatpush1.bf16.msra.mxu0 0
  %1231 = vmatprep.subr.bf16.mxu0 0
  %1232 = vmatpush1.bf16.msra.mxu0 0
  %1233 = vmatprep.subr.bf16.mxu0 0
  %1234 = vmatpush1.bf16.msra.mxu0 0
  %1235 = vmatprep.subr.bf16.mxu0 0
  %1236 = vmatpush1.bf16.msra.mxu0 0
  %1237 = vmatprep.subr.bf16.mxu0 0
  %1238 = vmatpush1.bf16.msra.mxu0 0
  %1239 = vmatprep.subr.bf16.mxu0 0
  %1240 = vmatpush1.bf16.msra.mxu0 0
  %1241 = vmatprep.subr.bf16.mxu0 0
  %1242 = vmatpush1.bf16.msra.mxu0 0
  %1243 = vmatprep.subr.bf16.mxu0 0
  %1244 = vmatpush1.bf16.msra.mxu0 0
  %1245 = vmatprep.subr.bf16.mxu0 0
  %1246 = vmatpush1.bf16.msra.mxu0 0
  %1247 = vmatprep.subr.bf16.mxu0 0
  %1248 = vmatpush1.bf16.msra.mxu0 0
  %1249 = vmatprep.subr.bf16.mxu0 0
  %1250 = vmatpush1.bf16.msra.mxu0 0
  %1251 = vmatprep.subr.bf16.mxu0 0
  %1252 = vmatpush1.bf16.msra.mxu0 0
  %1253 = vmatprep.mubr.bf16.mxu0 0
  %1254 = vmatmul.mubr.bf16.gmra.mrb[0].mxu0 %v1219
  %v1255 = vpop.f32.mrb[0].mxu0
  %v1256 = vadd.f32 0.0, %v1255
  %v1257 = vpop.f32.mrb[0].mxu0
  %v1258 = vpop.f32.mrb[0].mxu0
  %v1259 = vpop.f32.mrb[0].mxu0
  %1260 = vdwg.mxu0
  %v1261 = vadd.f32 %v1216, %v1256
  %v1262 = vpack.c.bf16 %v904, %v904
  %v1264 = vsel %vm920, %v1262, 0
  %1266 = vmatprep.subr.bf16.mxu0 0
  %1267 = vmatpush1.bf16.msra.mxu0 %v1081
  %1268 = vmatprep.subr.bf16.mxu0 0
  %1269 = vmatpush1.bf16.msra.mxu0 0
  %1270 = vmatprep.subr.bf16.mxu0 0
  %1271 = vmatpush1.bf16.msra.mxu0 0
  %1272 = vmatprep.subr.bf16.mxu0 0
  %1273 = vmatpush1.bf16.msra.mxu0 0
  %1274 = vmatprep.subr.bf16.mxu0 0
  %1275 = vmatpush1.bf16.msra.mxu0 0
  %1276 = vmatprep.subr.bf16.mxu0 0
  %1277 = vmatpush1.bf16.msra.mxu0 0
  %1278 = vmatprep.subr.bf16.mxu0 0
  %1279 = vmatpush1.bf16.msra.mxu0 0
  %1280 = vmatprep.subr.bf16.mxu0 0
  %1281 = vmatpush1.bf16.msra.mxu0 0
  %1282 = vmatprep.subr.bf16.mxu0 0
  %1283 = vmatpush1.bf16.msra.mxu0 0
  %1284 = vmatprep.subr.bf16.mxu0 0
  %1285 = vmatpush1.bf16.msra.mxu0 0
  %1286 = vmatprep.subr.bf16.mxu0 0
  %1287 = vmatpush1.bf16.msra.mxu0 0
  %1288 = vmatprep.subr.bf16.mxu0 0
  %1289 = vmatpush1.bf16.msra.mxu0 0
  %1290 = vmatprep.subr.bf16.mxu0 0
  %1291 = vmatpush1.bf16.msra.mxu0 0
  %1292 = vmatprep.subr.bf16.mxu0 0
  %1293 = vmatpush1.bf16.msra.mxu0 0
  %1294 = vmatprep.subr.bf16.mxu0 0
  %1295 = vmatpush1.bf16.msra.mxu0 0
  %1296 = vmatprep.subr.bf16.mxu0 0
  %1297 = vmatpush1.bf16.msra.mxu0 0
  %1298 = vmatprep.mubr.bf16.mxu0 0
  %1299 = vmatmul.mubr.bf16.gmra.mrb[0].mxu0 %v1264
  %v1300 = vpop.f32.mrb[0].mxu0
  %v1301 = vadd.f32 0.0, %v1300
  %v1302 = vpop.f32.mrb[0].mxu0
  %v1303 = vpop.f32.mrb[0].mxu0
  %v1304 = vpop.f32.mrb[0].mxu0
  %1305 = vdwg.mxu0
  %v1306 = vadd.f32 %v1261, %v1301
  %vm1307 = vcmask 523264
  %1308 = vst.msk [vmem:[%s8] sm:$0xff] %vm1307, %v1126
  %1309 = vst.msk [vmem:[%s8 + $0x8] sm:$0xff] %vm1307, %v1306
  %v1310 = vmul.f32 %v1126, %v1126
  %v1311 = vmul.f32 %v1306, %v1306
  %v1312 = vsel %vm1307, %v1310, 0.0
  %1313 = vadd.xlane.f32.xlu0 %v1312
  %v1314 = vpop.xlane.xlu0 %1313
  %v1315 = vsel %vm1307, %v1311, 0.0
  %1316 = vadd.xlane.f32.xlu0 %v1315
  %v1317 = vpop.xlane.xlu0 %1316
  %v1318 = vrcp.pop 64.0
  %v1319 = vmul.f32 %v1314, %v1318
  %v1320 = vmul.f32 %v1317, %v1318
  %v1321 = vadd.f32 %v1319, 1e-06
  %v1322 = vadd.f32 %v1320, 1e-06
  %v1323 = vrsqrt.pop %v1321
  %v1324 = vrsqrt.pop %v1322
  %v1325 = vmul.f32 %v1126, %v1323
  %v1326 = vmul.f32 %v1306, %v1324
  %v1327 = vld [vmem:[%s6] sm:$0x1]
  %v1329 = vlaneseq
  %v1330 = vshrl.u32 %v1329, 7
  %v1331 = vsub.s32 0, %v1330
  %v1332 = vrot.slane %v1327, %v1331
  %v1334 = vmul.f32 %v1325, %v1332
  %v1335 = vmul.f32 %v1326, %v1332
  %v1336 = vpack.c.bf16 %v1335, %v1334
  %v1338 = vunpack.c.l.b16 %v1336
  %v1339 = vunpack.c.h.b16 %v1336
  %v1340 = vpack.c.b16 %v1338, %v1338
  %v1341 = vpack.c.b16 %v1339, %v1339
  %vm1344 = vcmask 519168
  %1345 = vst.msk [vmem:[%s9] sm:$0xf] %vm1344, %v1340
  %1346 = vst.msk [vmem:[%s9 + $0x4] sm:$0xf] %vm1344, %v1341
  %v1347 = vld [vmem:[%s7] sm:$0xf]
  %v1348 = vld [vmem:[%s7 + $0x4] sm:$0xf]
  %v1349 = vld [vmem:[%s7 + $0x8] sm:$0xf]
  %v1350 = vld [vmem:[%s7 + $0xc] sm:$0xf]
  %v1351 = vld [vmem:[%s7 + $0x10] sm:$0xf]
  %v1352 = vld [vmem:[%s7 + $0x14] sm:$0xf]
  %v1353 = vld [vmem:[%s7 + $0x18] sm:$0xf]
  %v1354 = vld [vmem:[%s7 + $0x1c] sm:$0xf]
  %v1363 = vunpack.c.l.b16 %v1347
  %v1364 = vunpack.c.l.b16 %v1348
  %v1365 = vunpack.c.l.b16 %v1349
  %v1366 = vunpack.c.l.b16 %v1350
  %v1367 = vunpack.c.l.b16 %v1351
  %v1368 = vunpack.c.l.b16 %v1352
  %v1369 = vunpack.c.l.b16 %v1353
  %v1370 = vunpack.c.l.b16 %v1354
  %v1371 = vpack.c.b16 %v1364, %v1363
  %v1372 = vpack.c.b16 %v1366, %v1365
  %v1373 = vpack.c.b16 %v1368, %v1367
  %v1374 = vpack.c.b16 %v1370, %v1369
  %v1380 = vsel %vm1307, %v1336, 0
  %1382 = vmatprep.subr.bf16.mxu0 0
  %1383 = vmatpush1.bf16.msra.mxu0 %v1371
  %1384 = vmatprep.subr.bf16.mxu0 0
  %1385 = vmatpush1.bf16.msra.mxu0 %v1372
  %1386 = vmatprep.subr.bf16.mxu0 0
  %1387 = vmatpush1.bf16.msra.mxu0 %v1373
  %1388 = vmatprep.subr.bf16.mxu0 0
  %1389 = vmatpush1.bf16.msra.mxu0 %v1374
  %1390 = vmatprep.subr.bf16.mxu0 0
  %1391 = vmatpush1.bf16.msra.mxu0 0
  %1392 = vmatprep.subr.bf16.mxu0 0
  %1393 = vmatpush1.bf16.msra.mxu0 0
  %1394 = vmatprep.subr.bf16.mxu0 0
  %1395 = vmatpush1.bf16.msra.mxu0 0
  %1396 = vmatprep.subr.bf16.mxu0 0
  %1397 = vmatpush1.bf16.msra.mxu0 0
  %1398 = vmatprep.subr.bf16.mxu0 0
  %1399 = vmatpush1.bf16.msra.mxu0 0
  %1400 = vmatprep.subr.bf16.mxu0 0
  %1401 = vmatpush1.bf16.msra.mxu0 0
  %1402 = vmatprep.subr.bf16.mxu0 0
  %1403 = vmatpush1.bf16.msra.mxu0 0
  %1404 = vmatprep.subr.bf16.mxu0 0
  %1405 = vmatpush1.bf16.msra.mxu0 0
  %1406 = vmatprep.subr.bf16.mxu0 0
  %1407 = vmatpush1.bf16.msra.mxu0 0
  %1408 = vmatprep.subr.bf16.mxu0 0
  %1409 = vmatpush1.bf16.msra.mxu0 0
  %1410 = vmatprep.subr.bf16.mxu0 0
  %1411 = vmatpush1.bf16.msra.mxu0 0
  %1412 = vmatprep.subr.bf16.mxu0 0
  %1413 = vmatpush1.bf16.msra.mxu0 0
  %1414 = vmatprep.mubr.bf16.mxu0 0
  %1415 = vmatmul.mubr.bf16.gmra.mrb[0].mxu0 %v1380
  %v1416 = vpop.f32.mrb[0].mxu0
  %v1417 = vadd.f32 0.0, %v1416
  %v1418 = vpop.f32.mrb[0].mxu0
  %v1419 = vpop.f32.mrb[0].mxu0
  %v1420 = vadd.f32 0.0, %v1419
  %v1421 = vpop.f32.mrb[0].mxu0
  %1422 = vdwg.mxu0
  %1423 = vst.msk [vmem:[%s10] sm:$0xff] %vm435, %v1417
  %1424 = vst.msk [vmem:[%s10 + $0x8] sm:$0xff] %vm435, %v1420
  // Predicated region
  $region34: #{_lambda_.4} parent=0 // pred_check
    _
  $region35: #{_lambda_.4} parent=0 // pred_check_branch
    %1426 = sbr.rel (0) target = $region37
  $region36: #{_lambda_.4} parent=0 // pred_region
    _
  $region37: #{_lambda_.4} parent=0 // pred_fallthru
    _
  // Predicated region
  $region38: #{_lambda_.4} parent=0 // pred_check
    _
  $region39: #{_lambda_.4} parent=0 // pred_check_branch
    %1428 = sbr.rel (0) target = $region41
  $region40: #{_lambda_.4} parent=0 // pred_region
    _
  $region41: #{_lambda_.4} parent=0 // pred_fallthru
    _
  // Predicated region
  $region42: #{_lambda_.4} parent=0 // pred_check
    _
  $region43: #{_lambda_.4} parent=0 // pred_check_branch
    %1430 = sbr.rel (0) target = $region45
  $region44: #{_lambda_.4} parent=0 // pred_region
    _
  $region45: #{_lambda_.4} parent=0 // pred_fallthru
    _
  // Predicated region
  $region46: #{_lambda_.4} parent=0 // pred_check
    _
  $region47: #{_lambda_.4} parent=0 // pred_check_branch
    %1432 = sbr.rel (0) target = $region49
  $region48: #{_lambda_.4} parent=0 // pred_region
    _
  $region49: #{_lambda_.4} parent=0 // pred_fallthru
    _
  // Predicated region
  $region50: #{_lambda_.4} parent=0 // pred_check
    _
  $region51: #{_lambda_.4} parent=0 // pred_check_branch
    %1434 = sbr.rel (0) target = $region53
  $region52: #{_lambda_.4} parent=0 // pred_region
    _
  $region53: #{_lambda_.4} parent=0 // pred_fallthru
    _
  // Predicated region
  $region54: #{_lambda_.4} parent=0 // pred_check
    _
  $region55: #{_lambda_.4} parent=0 // pred_check_branch
    %1436 = sbr.rel (0) target = $region57
  $region56: #{_lambda_.4} parent=0 // pred_region
    _
  $region57: #{_lambda_.4} parent=0 // pred_fallthru
    _

// kernel: _lambda_.5
$region0: #{_lambda_.5}
  #allocation0 [shape = 'u32[]', space=smem, size = 0x4, offset = 0x4, fixed_abs, tag = 'smem constant byte address 0x4 - core index']
  #allocation1 [shape = 'u32[144,128]{1,0:T(1,128)}', space=vmem, size = 0x12000, scoped, tag = 'internal scratch']
  #allocation2 [shape = 'f32[16,64]{1,0:T(8,128)}', space=vmem, size = 0x2000, scoped, tag = 'scratch operand']
  %s0 = inlined_call_operand.vmem [shape: bf16[16,64], index: 0, kind: input, shape index: {}]
  %s1 = inlined_call_operand.vmem [shape: f32[8,16,1], index: 1, kind: input, shape index: {}]
  %s2 = inlined_call_operand.vmem [shape: f32[16,64], index: 2, kind: input, shape index: {}]
  %s3 = inlined_call_operand.vmem [shape: bf16[8,64,64], index: 3, kind: input, shape index: {}]
  %s4 = inlined_call_operand.vmem [shape: bf16[8,64,64], index: 4, kind: input, shape index: {}]
  %s5 = inlined_call_operand.vmem [shape: bf16[8,64,64], index: 5, kind: input, shape index: {}]
  %s6 = inlined_call_operand.vmem [shape: bf16[64,128], index: 6, kind: input, shape index: {}]
  %s7 = inlined_call_operand.vmem [shape: bf16[64,128], index: 7, kind: input, shape index: {}]
  %s8 = inlined_call_operand.vmem [shape: bf16[128,64], index: 8, kind: input, shape index: {}]
  %s9 = inlined_call_operand.hbm [shape: f32[16,64], index: 9, kind: output, shape index: {}]
  %s10 = sld [smem:[#allocation0]]
  $region77: #{_lambda_.5} parent=0
    _
  %s12 = ssub.s32 1, %s10
  %s13 = scalar_select 0, %s12, %s10
  $region1: #{_lambda_.5} parent=0
    #allocation3 [shape = 'u8[8192]{0}', space=vmem, size = 0x2000, scoped, tag = 'output window, operand 0, single buffered']
    #allocation4 [shape = 's32[2]{0}', space=sflag, size = 0x8, scoped, tag = 'scoped memory for _lambda_.5']
    %14 = vsyncpa [#allocation4], 0
    loop: start=0, step=1, limit=10
    $region2: #{_lambda_.5} parent=1 // loop_pre_header
      _
    $region3: #{_lambda_.5} parent=1 // loop_header
      %s16 = sphi 0, %s20
      %p17 = scmp.ge.s32.totalorder %s16, 10
      %s24 = sphi 0, %s24
      %s26 = sphi 0, %s24
      %s27 = sphi 0, %s26
      %s41 = sphi 0, %s27
      %s47 = sphi 0, %s49
      %s50 = sphi 0, %s47
      %s51 = sphi 0, %s50
      %s67 = sphi 0, %s51
      %s71 = sphi 0, %s71
      %s73 = sphi 0, %s71
      %s74 = sphi 0, %s73
      %s88 = sphi 0, %s74
      %s94 = sphi 0, %s96
      %s97 = sphi 0, %s94
      %s98 = sphi 0, %s97
      %s114 = sphi 0, %s98
      %s120 = sphi 0, %s122
      %s123 = sphi 0, %s120
      %s124 = sphi 0, %s123
      %s140 = sphi 0, %s124
      %s146 = sphi 0, %s148
      %s149 = sphi 0, %s146
      %s150 = sphi 0, %s149
      %s166 = sphi 0, %s150
      %s170 = sphi 0, %s170
      %s172 = sphi 0, %s170
      %s173 = sphi 0, %s172
      %s187 = sphi 0, %s173
      %s191 = sphi 0, %s191
      %s193 = sphi 0, %s191
      %s194 = sphi 0, %s193
      %s208 = sphi 0, %s194
      %s212 = sphi 0, %s212
      %s214 = sphi 0, %s212
      %s215 = sphi 0, %s214
      %s229 = sphi 0, %s215
      %s233 = sphi 0, %s233
      %s235 = sphi 0, %s233
      %s236 = sphi 0, %s235
      %s250 = sphi 0, %s236
    $region4: #{_lambda_.5} parent=1 // loop_header_branch
      %19 = sbr.rel (%p17) target = $region8
    $region5: #{_lambda_.5} parent=1 // loop_body
      %s21 = ssub.s32 %s16, 1
      %s22 = ssub.s32 %s16, 2
      %s23 = sadd.s32 %s16, 1
      %s25 = sadd.s32 %s24, 1
      %p28 = scmp.eq.s32.totalorder %s16, 7
      %p29 = scmp.ne.s32.totalorder %s24, %s26
      %p30 = scmp.eq.s32.totalorder %s16, 0
      %p31 = por %p29, %p30
      %p32 = scmp.ne.s32.totalorder %s24, %s26
      %p33 = scmp.eq.s32.totalorder %s21, 7
      %p34 = por %p32, %p33
      %p35 = scmp.ne.s32.totalorder %s26, %s27
      %p36 = scmp.eq.s32.totalorder %s21, 0
      %p37 = por %p35, %p36
      %p38 = scmp.ne.s32.totalorder %s26, %s27
      %p39 = scmp.eq.s32.totalorder %s22, 7
      %p40 = por %p38, %p39
      %p42 = scmp.ne.s32.totalorder %s27, %s41
      %p43 = scmp.eq.s32.totalorder %s22, 0
      %p44 = por %p42, %p43
      %s45 = ssub.s32 %s16, %s23
      %p46 = scmp.eq.s32.totalorder %s45, 0
      %s48 = sadd.s32 %s47, 1
      %s49 = scalar_select %p46, %s47, %s48
      %p52 = pneg %p46
      %p53 = scmp.eq.s32.totalorder %s16, 7
      %p54 = por %p52, %p53
      %p55 = scmp.ne.s32.totalorder %s47, %s50
      %p56 = scmp.eq.s32.totalorder %s16, 0
      %p57 = por %p55, %p56
      %p58 = scmp.ne.s32.totalorder %s47, %s50
      %p59 = scmp.eq.s32.totalorder %s21, 7
      %p60 = por %p58, %p59
      %p61 = scmp.ne.s32.totalorder %s50, %s51
      %p62 = scmp.eq.s32.totalorder %s21, 0
      %p63 = por %p61, %p62
      %p64 = scmp.ne.s32.totalorder %s50, %s51
      %p65 = scmp.eq.s32.totalorder %s22, 7
      %p66 = por %p64, %p65
      %p68 = scmp.ne.s32.totalorder %s51, %s67
      %p69 = scmp.eq.s32.totalorder %s22, 0
      %p70 = por %p68, %p69
      %s72 = sadd.s32 %s71, 1
      %p75 = scmp.eq.s32.totalorder %s16, 7
      %p76 = scmp.ne.s32.totalorder %s71, %s73
      %p77 = scmp.eq.s32.totalorder %s16, 0
      %p78 = por %p76, %p77
      %p79 = scmp.ne.s32.totalorder %s71, %s73
      %p80 = scmp.eq.s32.totalorder %s21, 7
      %p81 = por %p79, %p80
      %p82 = scmp.ne.s32.totalorder %s73, %s74
      %p83 = scmp.eq.s32.totalorder %s21, 0
      %p84 = por %p82, %p83
      %p85 = scmp.ne.s32.totalorder %s73, %s74
      %p86 = scmp.eq.s32.totalorder %s22, 7
      %p87 = por %p85, %p86
      %p89 = scmp.ne.s32.totalorder %s74, %s88
      %p90 = scmp.eq.s32.totalorder %s22, 0
      %p91 = por %p89, %p90
      %s92 = ssub.s32 %s16, %s23
      %p93 = scmp.eq.s32.totalorder %s92, 0
      %s95 = sadd.s32 %s94, 1
      %s96 = scalar_select %p93, %s94, %s95
      %p99 = pneg %p93
      %p100 = scmp.eq.s32.totalorder %s16, 7
      %p101 = por %p99, %p100
      %p102 = scmp.ne.s32.totalorder %s94, %s97
      %p103 = scmp.eq.s32.totalorder %s16, 0
      %p104 = por %p102, %p103
      %p105 = scmp.ne.s32.totalorder %s94, %s97
      %p106 = scmp.eq.s32.totalorder %s21, 7
      %p107 = por %p105, %p106
      %p108 = scmp.ne.s32.totalorder %s97, %s98
      %p109 = scmp.eq.s32.totalorder %s21, 0
      %p110 = por %p108, %p109
      %p111 = scmp.ne.s32.totalorder %s97, %s98
      %p112 = scmp.eq.s32.totalorder %s22, 7
      %p113 = por %p111, %p112
      %p115 = scmp.ne.s32.totalorder %s98, %s114
      %p116 = scmp.eq.s32.totalorder %s22, 0
      %p117 = por %p115, %p116
      %s118 = ssub.s32 %s16, %s23
      %p119 = scmp.eq.s32.totalorder %s118, 0
      %s121 = sadd.s32 %s120, 1
      %s122 = scalar_select %p119, %s120, %s121
      %p125 = pneg %p119
      %p126 = scmp.eq.s32.totalorder %s16, 7
      %p127 = por %p125, %p126
      %p128 = scmp.ne.s32.totalorder %s120, %s123
      %p129 = scmp.eq.s32.totalorder %s16, 0
      %p130 = por %p128, %p129
      %p131 = scmp.ne.s32.totalorder %s120, %s123
      %p132 = scmp.eq.s32.totalorder %s21, 7
      %p133 = por %p131, %p132
      %p134 = scmp.ne.s32.totalorder %s123, %s124
      %p135 = scmp.eq.s32.totalorder %s21, 0
      %p136 = por %p134, %p135
      %p137 = scmp.ne.s32.totalorder %s123, %s124
      %p138 = scmp.eq.s32.totalorder %s22, 7
      %p139 = por %p137, %p138
      %p141 = scmp.ne.s32.totalorder %s124, %s140
      %p142 = scmp.eq.s32.totalorder %s22, 0
      %p143 = por %p141, %p142
      %s144 = ssub.s32 %s16, %s23
      %p145 = scmp.eq.s32.totalorder %s144, 0
      %s147 = sadd.s32 %s146, 1
      %s148 = scalar_select %p145, %s146, %s147
      %p151 = pneg %p145
      %p152 = scmp.eq.s32.totalorder %s16, 7
      %p153 = por %p151, %p152
      %p154 = scmp.ne.s32.totalorder %s146, %s149
      %p155 = scmp.eq.s32.totalorder %s16, 0
      %p156 = por %p154, %p155
      %p157 = scmp.ne.s32.totalorder %s146, %s149
      %p158 = scmp.eq.s32.totalorder %s21, 7
      %p159 = por %p157, %p158
      %p160 = scmp.ne.s32.totalorder %s149, %s150
      %p161 = scmp.eq.s32.totalorder %s21, 0
      %p162 = por %p160, %p161
      %p163 = scmp.ne.s32.totalorder %s149, %s150
      %p164 = scmp.eq.s32.totalorder %s22, 7
      %p165 = por %p163, %p164
      %p167 = scmp.ne.s32.totalorder %s150, %s166
      %p168 = scmp.eq.s32.totalorder %s22, 0
      %p169 = por %p167, %p168
      %s171 = sadd.s32 %s170, 1
      %p174 = scmp.eq.s32.totalorder %s16, 7
      %p175 = scmp.ne.s32.totalorder %s170, %s172
      %p176 = scmp.eq.s32.totalorder %s16, 0
      %p177 = por %p175, %p176
      %p178 = scmp.ne.s32.totalorder %s170, %s172
      %p179 = scmp.eq.s32.totalorder %s21, 7
      %p180 = por %p178, %p179
      %p181 = scmp.ne.s32.totalorder %s172, %s173
      %p182 = scmp.eq.s32.totalorder %s21, 0
      %p183 = por %p181, %p182
      %p184 = scmp.ne.s32.totalorder %s172, %s173
      %p185 = scmp.eq.s32.totalorder %s22, 7
      %p186 = por %p184, %p185
      %p188 = scmp.ne.s32.totalorder %s173, %s187
      %p189 = scmp.eq.s32.totalorder %s22, 0
      %p190 = por %p188, %p189
      %s192 = sadd.s32 %s191, 1
      %p195 = scmp.eq.s32.totalorder %s16, 7
      %p196 = scmp.ne.s32.totalorder %s191, %s193
      %p197 = scmp.eq.s32.totalorder %s16, 0
      %p198 = por %p196, %p197
      %p199 = scmp.ne.s32.totalorder %s191, %s193
      %p200 = scmp.eq.s32.totalorder %s21, 7
      %p201 = por %p199, %p200
      %p202 = scmp.ne.s32.totalorder %s193, %s194
      %p203 = scmp.eq.s32.totalorder %s21, 0
      %p204 = por %p202, %p203
      %p205 = scmp.ne.s32.totalorder %s193, %s194
      %p206 = scmp.eq.s32.totalorder %s22, 7
      %p207 = por %p205, %p206
      %p209 = scmp.ne.s32.totalorder %s194, %s208
      %p210 = scmp.eq.s32.totalorder %s22, 0
      %p211 = por %p209, %p210
      %s213 = sadd.s32 %s212, 1
      %p216 = scmp.eq.s32.totalorder %s16, 7
      %p217 = scmp.ne.s32.totalorder %s212, %s214
      %p218 = scmp.eq.s32.totalorder %s16, 0
      %p219 = por %p217, %p218
      %p220 = scmp.ne.s32.totalorder %s212, %s214
      %p221 = scmp.eq.s32.totalorder %s21, 7
      %p222 = por %p220, %p221
      %p223 = scmp.ne.s32.totalorder %s214, %s215
      %p224 = scmp.eq.s32.totalorder %s21, 0
      %p225 = por %p223, %p224
      %p226 = scmp.ne.s32.totalorder %s214, %s215
      %p227 = scmp.eq.s32.totalorder %s22, 7
      %p228 = por %p226, %p227
      %p230 = scmp.ne.s32.totalorder %s215, %s229
      %p231 = scmp.eq.s32.totalorder %s22, 0
      %p232 = por %p230, %p231
      %s234 = sadd.s32 %s233, 1
      %p237 = scmp.eq.s32.totalorder %s16, 7
      %p238 = scmp.ne.s32.totalorder %s233, %s235
      %p239 = scmp.eq.s32.totalorder %s16, 0
      %p240 = por %p238, %p239
      %p241 = scmp.ne.s32.totalorder %s233, %s235
      %p242 = scmp.eq.s32.totalorder %s21, 7
      %p243 = por %p241, %p242
      %p244 = scmp.ne.s32.totalorder %s235, %s236
      %p245 = scmp.eq.s32.totalorder %s21, 0
      %p246 = por %p244, %p245
      %p247 = scmp.ne.s32.totalorder %s235, %s236
      %p248 = scmp.eq.s32.totalorder %s22, 7
      %p249 = por %p247, %p248
      %p251 = scmp.ne.s32.totalorder %s236, %s250
      %p252 = scmp.eq.s32.totalorder %s22, 0
      %p253 = por %p251, %p252
      %p254 = scmp.le.s32.totalorder 1, %s16
      %p255 = scmp.lt.s32.totalorder %s16, 9
      %p256 = pnand %p254, %p255
      %p257 = pneg %p256
      // Predicated region
      $region9: #{_lambda_.5} parent=5 // pred_check
        _
      $region10: #{_lambda_.5} parent=5 // pred_check_branch
        %259 = sbr.rel (%p256) target = $region12
      $region11: #{_lambda_.5} parent=5 // pred_region
        %s260 = ssub.s32 %s16, 1
        // Predicated region
        $region13: #{_lambda_.5} parent=11 // pred_check
          %p261 = pneg %p37
        $region14: #{_lambda_.5} parent=11 // pred_check_branch
          %263 = sbr.rel (%p261) target = $region16
        $region15: #{_lambda_.5} parent=11 // pred_region
          _
        $region16: #{_lambda_.5} parent=11 // pred_fallthru
          _
        // Predicated region
        $region17: #{_lambda_.5} parent=11 // pred_check
          %p264 = pneg %p84
        $region18: #{_lambda_.5} parent=11 // pred_check_branch
          %266 = sbr.rel (%p264) target = $region20
        $region19: #{_lambda_.5} parent=11 // pred_region
          _
        $region20: #{_lambda_.5} parent=11 // pred_fallthru
          _
        // Predicated region
        $region21: #{_lambda_.5} parent=11 // pred_check
          %p267 = pneg %p183
        $region22: #{_lambda_.5} parent=11 // pred_check_branch
          %269 = sbr.rel (%p267) target = $region24
        $region23: #{_lambda_.5} parent=11 // pred_region
          _
        $region24: #{_lambda_.5} parent=11 // pred_fallthru
          _
        // Predicated region
        $region25: #{_lambda_.5} parent=11 // pred_check
          %p270 = pneg %p204
        $region26: #{_lambda_.5} parent=11 // pred_check_branch
          %272 = sbr.rel (%p270) target = $region28
        $region27: #{_lambda_.5} parent=11 // pred_region
          _
        $region28: #{_lambda_.5} parent=11 // pred_fallthru
          _
        // Predicated region
        $region29: #{_lambda_.5} parent=11 // pred_check
          %p273 = pneg %p225
        $region30: #{_lambda_.5} parent=11 // pred_check_branch
          %275 = sbr.rel (%p273) target = $region32
        $region31: #{_lambda_.5} parent=11 // pred_region
          _
        $region32: #{_lambda_.5} parent=11 // pred_fallthru
          _
      $region12: #{_lambda_.5} parent=5 // pred_fallthru
        _
      %p276 = scmp.lt.s32.totalorder %s16, 8
      // Predicated region
      $region33: #{_lambda_.5} parent=5 // pred_check
        %p277 = pneg %p276
      $region34: #{_lambda_.5} parent=5 // pred_check_branch
        %279 = sbr.rel (%p277) target = $region36
      $region35: #{_lambda_.5} parent=5 // pred_region
        // Predicated region
        $region37: #{_lambda_.5} parent=35 // pred_check
          %p280 = pneg %p57
        $region38: #{_lambda_.5} parent=35 // pred_check_branch
          %282 = sbr.rel (%p280) target = $region40
        $region39: #{_lambda_.5} parent=35 // pred_region
          %p283 = scmp.lt.s32.totalorder %s16, 7
          %s284 = scalar_select %p283, %s16, 7
          %s285 = smul.addr %s284, 2
          %s286 = smul.addr %s285, 8
          %s287 = scalar_lea.vmem %s1, %s286
        $region40: #{_lambda_.5} parent=35 // pred_fallthru
          _
        // Predicated region
        $region41: #{_lambda_.5} parent=35 // pred_check
          %p288 = pneg %p104
        $region42: #{_lambda_.5} parent=35 // pred_check_branch
          %290 = sbr.rel (%p288) target = $region44
        $region43: #{_lambda_.5} parent=35 // pred_region
          %p291 = scmp.lt.s32.totalorder %s16, 7
          %s292 = scalar_select %p291, %s16, 7
          %s293 = smul.addr %s292, 8
          %s294 = smul.addr %s293, 4
          %s295 = scalar_lea.vmem %s3, %s294
        $region44: #{_lambda_.5} parent=35 // pred_fallthru
          _
        // Predicated region
        $region45: #{_lambda_.5} parent=35 // pred_check
          %p296 = pneg %p130
        $region46: #{_lambda_.5} parent=35 // pred_check_branch
          %298 = sbr.rel (%p296) target = $region48
        $region47: #{_lambda_.5} parent=35 // pred_region
          %p299 = scmp.lt.s32.totalorder %s16, 7
          %s300 = scalar_select %p299, %s16, 7
          %s301 = smul.addr %s300, 8
          %s302 = smul.addr %s301, 4
          %s303 = scalar_lea.vmem %s4, %s302
        $region48: #{_lambda_.5} parent=35 // pred_fallthru
          _
        // Predicated region
        $region49: #{_lambda_.5} parent=35 // pred_check
          %p304 = pneg %p156
        $region50: #{_lambda_.5} parent=35 // pred_check_branch
          %306 = sbr.rel (%p304) target = $region52
        $region51: #{_lambda_.5} parent=35 // pred_region
          %p307 = scmp.lt.s32.totalorder %s16, 7
          %s308 = scalar_select %p307, %s16, 7
          %s309 = smul.addr %s308, 8
          %s310 = smul.addr %s309, 4
          %s311 = scalar_lea.vmem %s5, %s310
        $region52: #{_lambda_.5} parent=35 // pred_fallthru
          _
      $region36: #{_lambda_.5} parent=5 // pred_fallthru
        _
      %p312 = scmp.le.s32.totalorder 1, %s16
      %p313 = scmp.lt.s32.totalorder %s16, 9
      %p314 = pnand %p312, %p313
      %p315 = pneg %p314
      // Predicated region
      $region53: #{_lambda_.5} parent=5 // pred_check
        _
      $region54: #{_lambda_.5} parent=5 // pred_check_branch
        %317 = sbr.rel (%p314) target = $region56
      $region55: #{_lambda_.5} parent=5 // pred_region
        %s318 = ssub.s32 %s16, 1
        %p319 = pneg %p37
        %p320 = pneg %p34
        %p321 = scmp.lt.s32.totalorder %s21, 7
        %s322 = scalar_select %p321, %s21, 7
        %s323 = smul.addr %s322, 2
        %s324 = smul.addr %s323, 8
        %s325 = scalar_lea.vmem %s1, %s324
        %p326 = pneg %p63
        %p327 = pneg %p60
        %p328 = pneg %p84
        %p329 = pneg %p81
        %p330 = scmp.lt.s32.totalorder %s21, 7
        %s331 = scalar_select %p330, %s21, 7
        %s332 = smul.addr %s331, 8
        %s333 = smul.addr %s332, 4
        %s334 = scalar_lea.vmem %s3, %s333
        %p335 = pneg %p110
        %p336 = pneg %p107
        %p337 = scmp.lt.s32.totalorder %s21, 7
        %s338 = scalar_select %p337, %s21, 7
        %s339 = smul.addr %s338, 8
        %s340 = smul.addr %s339, 4
        %s341 = scalar_lea.vmem %s4, %s340
        %p342 = pneg %p136
        %p343 = pneg %p133
        %p344 = scmp.lt.s32.totalorder %s21, 7
        %s345 = scalar_select %p344, %s21, 7
        %s346 = smul.addr %s345, 8
        %s347 = smul.addr %s346, 4
        %s348 = scalar_lea.vmem %s5, %s347
        %p349 = pneg %p162
        %p350 = pneg %p159
        %p351 = pneg %p183
        %p352 = pneg %p180
        %p353 = pneg %p204
        %p354 = pneg %p201
        %p355 = pneg %p225
        %p356 = pneg %p222
        %p357 = pneg %p246
        %p358 = pneg %p243
        %p359 = scmp.lt.s32.totalorder %s21, 7
        %s360 = scalar_select %p359, %s21, 7
        %s361 = smul.addr %s360, 2
        %s362 = smul.addr %s361, 8
        %s363 = scalar_lea.vmem %s1, %s362
        %p364 = scmp.lt.s32.totalorder %s21, 7
        %s365 = scalar_select %p364, %s21, 7
        %s366 = smul.addr %s365, 8
        %s367 = smul.addr %s366, 4
        %s368 = scalar_lea.vmem %s3, %s367
        %p369 = scmp.lt.s32.totalorder %s21, 7
        %s370 = scalar_select %p369, %s21, 7
        %s371 = smul.addr %s370, 8
        %s372 = smul.addr %s371, 4
        %s373 = scalar_lea.vmem %s4, %s372
        %p374 = scmp.lt.s32.totalorder %s21, 7
        %s375 = scalar_select %p374, %s21, 7
        %s376 = smul.addr %s375, 8
        %s377 = smul.addr %s376, 4
        %s378 = scalar_lea.vmem %s5, %s377
        %v380 = vld [vmem:[%s0] sm:$0xf]
        %v381 = vld [vmem:[%s0 + $0x4] sm:$0xf]
        %p382 = scmp.eq.s32.totalorder %s21, 0
        // Predicated region
        $region57: #{_lambda_.5} parent=55 // pred_check
          %p383 = pneg %p382
        $region58: #{_lambda_.5} parent=55 // pred_check_branch
          %385 = sbr.rel (%p383) target = $region60
        $region59: #{_lambda_.5} parent=55 // pred_region
          %v386 = vld [vmem:[%s6] sm:$0xf]
          %v387 = vld [vmem:[%s6 + $0x4] sm:$0xf]
          %v388 = vld [vmem:[%s6 + $0x8] sm:$0xf]
          %v389 = vld [vmem:[%s6 + $0xc] sm:$0xf]
          %v390 = vld [vmem:[%s6 + $0x10] sm:$0xf]
          %v391 = vld [vmem:[%s6 + $0x14] sm:$0xf]
          %v392 = vld [vmem:[%s6 + $0x18] sm:$0xf]
          %v393 = vld [vmem:[%s6 + $0x1c] sm:$0xf]
          %v396 = vunpack.c.l.b16 %v380
          %v397 = vunpack.c.l.b16 %v381
          %v398 = vpack.c.b16 %v397, %v396
          %v407 = vunpack.c.l.b16 %v386
          %v408 = vunpack.c.l.b16 %v387
          %v409 = vunpack.c.l.b16 %v388
          %v410 = vunpack.c.l.b16 %v389
          %v411 = vunpack.c.l.b16 %v390
          %v412 = vunpack.c.l.b16 %v391
          %v413 = vunpack.c.l.b16 %v392
          %v414 = vunpack.c.l.b16 %v393
          %v415 = vpack.c.b16 %v408, %v407
          %v416 = vpack.c.b16 %v410, %v409
          %v417 = vpack.c.b16 %v412, %v411
          %v418 = vpack.c.b16 %v414, %v413
          %vm423 = vcmask 523264
          %v425 = vsel %vm423, %v398, 0
          %427 = vmatprep.subr.bf16.mxu0 0
          %428 = vmatpush1.bf16.msra.mxu0 %v415
          %429 = vmatprep.subr.bf16.mxu0 0
          %430 = vmatpush1.bf16.msra.mxu0 %v416
          %431 = vmatprep.subr.bf16.mxu0 0
          %432 = vmatpush1.bf16.msra.mxu0 %v417
          %433 = vmatprep.subr.bf16.mxu0 0
          %434 = vmatpush1.bf16.msra.mxu0 %v418
          %435 = vmatprep.subr.bf16.mxu0 0
          %436 = vmatpush1.bf16.msra.mxu0 0
          %437 = vmatprep.subr.bf16.mxu0 0
          %438 = vmatpush1.bf16.msra.mxu0 0
          %439 = vmatprep.subr.bf16.mxu0 0
          %440 = vmatpush1.bf16.msra.mxu0 0
          %441 = vmatprep.subr.bf16.mxu0 0
          %442 = vmatpush1.bf16.msra.mxu0 0
          %443 = vmatprep.subr.bf16.mxu0 0
          %444 = vmatpush1.bf16.msra.mxu0 0
          %445 = vmatprep.subr.bf16.mxu0 0
          %446 = vmatpush1.bf16.msra.mxu0 0
          %447 = vmatprep.subr.bf16.mxu0 0
          %448 = vmatpush1.bf16.msra.mxu0 0
          %449 = vmatprep.subr.bf16.mxu0 0
          %450 = vmatpush1.bf16.msra.mxu0 0
          %451 = vmatprep.subr.bf16.mxu0 0
          %452 = vmatpush1.bf16.msra.mxu0 0
          %453 = vmatprep.subr.bf16.mxu0 0
          %454 = vmatpush1.bf16.msra.mxu0 0
          %455 = vmatprep.subr.bf16.mxu0 0
          %456 = vmatpush1.bf16.msra.mxu0 0
          %457 = vmatprep.subr.bf16.mxu0 0
          %458 = vmatpush1.bf16.msra.mxu0 0
          %459 = vmatprep.mubr.bf16.mxu0 0
          %460 = vmatmul.mubr.bf16.gmra.mrb[0].mxu0 %v425
          %v461 = vpop.f32.mrb[0].mxu0
          %v462 = vadd.f32 0.0, %v461
          %v463 = vpop.f32.mrb[0].mxu0
          %v464 = vpop.f32.mrb[0].mxu0
          %v465 = vadd.f32 0.0, %v464
          %v466 = vpop.f32.mrb[0].mxu0
          %467 = vdwg.mxu0
          %v468 = vld [vmem:[%s7] sm:$0xf]
          %v469 = vld [vmem:[%s7 + $0x4] sm:$0xf]
          %v470 = vld [vmem:[%s7 + $0x8] sm:$0xf]
          %v471 = vld [vmem:[%s7 + $0xc] sm:$0xf]
          %v472 = vld [vmem:[%s7 + $0x10] sm:$0xf]
          %v473 = vld [vmem:[%s7 + $0x14] sm:$0xf]
          %v474 = vld [vmem:[%s7 + $0x18] sm:$0xf]
          %v475 = vld [vmem:[%s7 + $0x1c] sm:$0xf]
          %v484 = vunpack.c.l.b16 %v468
          %v485 = vunpack.c.l.b16 %v469
          %v486 = vunpack.c.l.b16 %v470
          %v487 = vunpack.c.l.b16 %v471
          %v488 = vunpack.c.l.b16 %v472
          %v489 = vunpack.c.l.b16 %v473
          %v490 = vunpack.c.l.b16 %v474
          %v491 = vunpack.c.l.b16 %v475
          %v492 = vpack.c.b16 %v485, %v484
          %v493 = vpack.c.b16 %v487, %v486
          %v494 = vpack.c.b16 %v489, %v488
          %v495 = vpack.c.b16 %v491, %v490
          %500 = vmatprep.subr.bf16.mxu0 0
          %501 = vmatpush1.bf16.msra.mxu0 %v492
          %502 = vmatprep.subr.bf16.mxu0 0
          %503 = vmatpush1.bf16.msra.mxu0 %v493
          %504 = vmatprep.subr.bf16.mxu0 0
          %505 = vmatpush1.bf16.msra.mxu0 %v494
          %506 = vmatprep.subr.bf16.mxu0 0
          %507 = vmatpush1.bf16.msra.mxu0 %v495
          %508 = vmatprep.subr.bf16.mxu0 0
          %509 = vmatpush1.bf16.msra.mxu0 0
          %510 = vmatprep.subr.bf16.mxu0 0
          %511 = vmatpush1.bf16.msra.mxu0 0
          %512 = vmatprep.subr.bf16.mxu0 0
          %513 = vmatpush1.bf16.msra.mxu0 0
          %514 = vmatprep.subr.bf16.mxu0 0
          %515 = vmatpush1.bf16.msra.mxu0 0
          %516 = vmatprep.subr.bf16.mxu0 0
          %517 = vmatpush1.bf16.msra.mxu0 0
          %518 = vmatprep.subr.bf16.mxu0 0
          %519 = vmatpush1.bf16.msra.mxu0 0
          %520 = vmatprep.subr.bf16.mxu0 0
          %521 = vmatpush1.bf16.msra.mxu0 0
          %522 = vmatprep.subr.bf16.mxu0 0
          %523 = vmatpush1.bf16.msra.mxu0 0
          %524 = vmatprep.subr.bf16.mxu0 0
          %525 = vmatpush1.bf16.msra.mxu0 0
          %526 = vmatprep.subr.bf16.mxu0 0
          %527 = vmatpush1.bf16.msra.mxu0 0
          %528 = vmatprep.subr.bf16.mxu0 0
          %529 = vmatpush1.bf16.msra.mxu0 0
          %530 = vmatprep.subr.bf16.mxu0 0
          %531 = vmatpush1.bf16.msra.mxu0 0
          %532 = vmatprep.mubr.bf16.mxu0 0
          %533 = vmatmul.mubr.bf16.gmra.mrb[0].mxu0 %v425
          %v534 = vpop.f32.mrb[0].mxu0
          %v535 = vadd.f32 0.0, %v534
          %v536 = vpop.f32.mrb[0].mxu0
          %v537 = vpop.f32.mrb[0].mxu0
          %v538 = vadd.f32 0.0, %v537
          %v539 = vpop.f32.mrb[0].mxu0
          %540 = vdwg.mxu0
          %v541 = vxor.u32 %v462, 2147483648
          %v542 = vxor.u32 %v465, 2147483648
          %v543 = vmul.f32 %v541, 1.442695
          %v544 = vpow.pop %v543
          %v545 = vmul.f32 %v542, 1.442695
          %v546 = vpow.pop %v545
          %v547 = vadd.f32 %v544, 1.0
          %v548 = vadd.f32 %v546, 1.0
          %v549 = vrcp.pop %v547
          %v550 = vmul.f32 1.0, %v549
          %v551 = vrcp.pop %v548
          %v552 = vmul.f32 1.0, %v551
          %v553 = vmul.f32 %v462, %v550
          %v554 = vmul.f32 %v465, %v552
          %v555 = vmul.f32 %v553, %v535
          %v556 = vmul.f32 %v554, %v538
          %v557 = vpack.c.bf16 %v556, %v555
          %v558 = vld [vmem:[%s8] sm:$0xf]
          %v559 = vld [vmem:[%s8 + $0x4] sm:$0xf]
          %v560 = vld [vmem:[%s8 + $0x8] sm:$0xf]
          %v561 = vld [vmem:[%s8 + $0xc] sm:$0xf]
          %v562 = vld [vmem:[%s8 + $0x10] sm:$0xf]
          %v563 = vld [vmem:[%s8 + $0x14] sm:$0xf]
          %v564 = vld [vmem:[%s8 + $0x18] sm:$0xf]
          %v565 = vld [vmem:[%s8 + $0x1c] sm:$0xf]
          %v566 = vld [vmem:[%s8 + $0x20] sm:$0xf]
          %v567 = vld [vmem:[%s8 + $0x24] sm:$0xf]
          %v568 = vld [vmem:[%s8 + $0x28] sm:$0xf]
          %v569 = vld [vmem:[%s8 + $0x2c] sm:$0xf]
          %v570 = vld [vmem:[%s8 + $0x30] sm:$0xf]
          %v571 = vld [vmem:[%s8 + $0x34] sm:$0xf]
          %v572 = vld [vmem:[%s8 + $0x38] sm:$0xf]
          %v573 = vld [vmem:[%s8 + $0x3c] sm:$0xf]
          %v590 = vunpack.c.l.b16 %v558
          %v591 = vunpack.c.l.b16 %v559
          %v592 = vunpack.c.l.b16 %v560
          %v593 = vunpack.c.l.b16 %v561
          %v594 = vunpack.c.l.b16 %v562
          %v595 = vunpack.c.l.b16 %v563
          %v596 = vunpack.c.l.b16 %v564
          %v597 = vunpack.c.l.b16 %v565
          %v598 = vunpack.c.l.b16 %v566
          %v599 = vunpack.c.l.b16 %v567
          %v600 = vunpack.c.l.b16 %v568
          %v601 = vunpack.c.l.b16 %v569
          %v602 = vunpack.c.l.b16 %v570
          %v603 = vunpack.c.l.b16 %v571
          %v604 = vunpack.c.l.b16 %v572
          %v605 = vunpack.c.l.b16 %v573
          %v606 = vpack.c.b16 %v591, %v590
          %v607 = vpack.c.b16 %v593, %v592
          %v608 = vpack.c.b16 %v595, %v594
          %v609 = vpack.c.b16 %v597, %v596
          %v610 = vpack.c.b16 %v599, %v598
          %v611 = vpack.c.b16 %v601, %v600
          %v612 = vpack.c.b16 %v603, %v602
          %v613 = vpack.c.b16 %v605, %v604
          %622 = vmatprep.subr.bf16.mxu0 0
          %623 = vmatpush1.bf16.msra.mxu0 %v606
          %624 = vmatprep.subr.bf16.mxu0 0
          %625 = vmatpush1.bf16.msra.mxu0 %v607
          %626 = vmatprep.subr.bf16.mxu0 0
          %627 = vmatpush1.bf16.msra.mxu0 %v608
          %628 = vmatprep.subr.bf16.mxu0 0
          %629 = vmatpush1.bf16.msra.mxu0 %v609
          %630 = vmatprep.subr.bf16.mxu0 0
          %631 = vmatpush1.bf16.msra.mxu0 %v610
          %632 = vmatprep.subr.bf16.mxu0 0
          %633 = vmatpush1.bf16.msra.mxu0 %v611
          %634 = vmatprep.subr.bf16.mxu0 0
          %635 = vmatpush1.bf16.msra.mxu0 %v612
          %636 = vmatprep.subr.bf16.mxu0 0
          %637 = vmatpush1.bf16.msra.mxu0 %v613
          %638 = vmatprep.subr.bf16.mxu0 0
          %639 = vmatpush1.bf16.msra.mxu0 0
          %640 = vmatprep.subr.bf16.mxu0 0
          %641 = vmatpush1.bf16.msra.mxu0 0
          %642 = vmatprep.subr.bf16.mxu0 0
          %643 = vmatpush1.bf16.msra.mxu0 0
          %644 = vmatprep.subr.bf16.mxu0 0
          %645 = vmatpush1.bf16.msra.mxu0 0
          %646 = vmatprep.subr.bf16.mxu0 0
          %647 = vmatpush1.bf16.msra.mxu0 0
          %648 = vmatprep.subr.bf16.mxu0 0
          %649 = vmatpush1.bf16.msra.mxu0 0
          %650 = vmatprep.subr.bf16.mxu0 0
          %651 = vmatpush1.bf16.msra.mxu0 0
          %652 = vmatprep.subr.bf16.mxu0 0
          %653 = vmatpush1.bf16.msra.mxu0 0
          %654 = vmatprep.mubr.bf16.mxu0 0
          %655 = vmatmul.mubr.bf16.gmra.mrb[0].mxu0 %v557
          %v656 = vpop.f32.mrb[0].mxu0
          %v657 = vadd.f32 0.0, %v656
          %v658 = vpop.f32.mrb[0].mxu0
          %v659 = vpop.f32.mrb[0].mxu0
          %v660 = vadd.f32 0.0, %v659
          %v661 = vpop.f32.mrb[0].mxu0
          %662 = vdwg.mxu0
          %v663 = vld [vmem:[%s2] sm:$0xff]
          %v664 = vld [vmem:[%s2 + $0x8] sm:$0xff]
          %v665 = vadd.f32 %v663, %v657
          %v666 = vadd.f32 %v664, %v660
          %667 = vst.msk [vmem:[#allocation2] sm:$0xff] %vm423, %v665
          %668 = vst.msk [vmem:[#allocation2 + $0x8] sm:$0xff] %vm423, %v666
        $region60: #{_lambda_.5} parent=55 // pred_fallthru
          _
        %v669 = vld [vmem:[%s368] sm:$0xf]
        %v670 = vld [vmem:[%s368 + $0x4] sm:$0xf]
        %v671 = vld [vmem:[%s368 + $0x8] sm:$0xf]
        %v672 = vld [vmem:[%s368 + $0xc] sm:$0xf]
        %v673 = vld [vmem:[%s368 + $0x10] sm:$0xf]
        %v674 = vld [vmem:[%s368 + $0x14] sm:$0xf]
        %v675 = vld [vmem:[%s368 + $0x18] sm:$0xf]
        %v676 = vld [vmem:[%s368 + $0x1c] sm:$0xf]
        %v679 = vunpack.c.l.b16 %v380
        %v680 = vunpack.c.l.b16 %v381
        %v681 = vpack.c.b16 %v680, %v679
        %v690 = vunpack.c.l.b16 %v669
        %v691 = vunpack.c.l.b16 %v670
        %v692 = vunpack.c.l.b16 %v671
        %v693 = vunpack.c.l.b16 %v672
        %v694 = vunpack.c.l.b16 %v673
        %v695 = vunpack.c.l.b16 %v674
        %v696 = vunpack.c.l.b16 %v675
        %v697 = vunpack.c.l.b16 %v676
        %v698 = vpack.c.b16 %v691, %v690
        %v699 = vpack.c.b16 %v693, %v692
        %v700 = vpack.c.b16 %v695, %v694
        %v701 = vpack.c.b16 %v697, %v696
        %vm706 = vcmask 523264
        %v708 = vsel %vm706, %v681, 0
        %710 = vmatprep.subr.bf16.mxu0 0
        %711 = vmatpush1.bf16.msra.mxu0 %v698
        %712 = vmatprep.subr.bf16.mxu0 0
        %713 = vmatpush1.bf16.msra.mxu0 %v699
        %714 = vmatprep.subr.bf16.mxu0 0
        %715 = vmatpush1.bf16.msra.mxu0 %v700
        %716 = vmatprep.subr.bf16.mxu0 0
        %717 = vmatpush1.bf16.msra.mxu0 %v701
        %718 = vmatprep.subr.bf16.mxu0 0
        %719 = vmatpush1.bf16.msra.mxu0 0
        %720 = vmatprep.subr.bf16.mxu0 0
        %721 = vmatpush1.bf16.msra.mxu0 0
        %722 = vmatprep.subr.bf16.mxu0 0
        %723 = vmatpush1.bf16.msra.mxu0 0
        %724 = vmatprep.subr.bf16.mxu0 0
        %725 = vmatpush1.bf16.msra.mxu0 0
        %726 = vmatprep.subr.bf16.mxu0 0
        %727 = vmatpush1.bf16.msra.mxu0 0
        %728 = vmatprep.subr.bf16.mxu0 0
        %729 = vmatpush1.bf16.msra.mxu0 0
        %730 = vmatprep.subr.bf16.mxu0 0
        %731 = vmatpush1.bf16.msra.mxu0 0
        %732 = vmatprep.subr.bf16.mxu0 0
        %733 = vmatpush1.bf16.msra.mxu0 0
        %734 = vmatprep.subr.bf16.mxu0 0
        %735 = vmatpush1.bf16.msra.mxu0 0
        %736 = vmatprep.subr.bf16.mxu0 0
        %737 = vmatpush1.bf16.msra.mxu0 0
        %738 = vmatprep.subr.bf16.mxu0 0
        %739 = vmatpush1.bf16.msra.mxu0 0
        %740 = vmatprep.subr.bf16.mxu0 0
        %741 = vmatpush1.bf16.msra.mxu0 0
        %742 = vmatprep.mubr.bf16.mxu0 0
        %743 = vmatmul.mubr.bf16.gmra.mrb[0].mxu0 %v708
        %v744 = vpop.f32.mrb[0].mxu0
        %v745 = vadd.f32 0.0, %v744
        %v746 = vpop.f32.mrb[0].mxu0
        %v747 = vpop.f32.mrb[0].mxu0
        %v748 = vadd.f32 0.0, %v747
        %v749 = vpop.f32.mrb[0].mxu0
        %750 = vdwg.mxu0
        %v751 = vld [vmem:[%s373] sm:$0xf]
        %v752 = vld [vmem:[%s373 + $0x4] sm:$0xf]
        %v753 = vld [vmem:[%s373 + $0x8] sm:$0xf]
        %v754 = vld [vmem:[%s373 + $0xc] sm:$0xf]
        %v755 = vld [vmem:[%s373 + $0x10] sm:$0xf]
        %v756 = vld [vmem:[%s373 + $0x14] sm:$0xf]
        %v757 = vld [vmem:[%s373 + $0x18] sm:$0xf]
        %v758 = vld [vmem:[%s373 + $0x1c] sm:$0xf]
        %v767 = vunpack.c.l.b16 %v751
        %v768 = vunpack.c.l.b16 %v752
        %v769 = vunpack.c.l.b16 %v753
        %v770 = vunpack.c.l.b16 %v754
        %v771 = vunpack.c.l.b16 %v755
        %v772 = vunpack.c.l.b16 %v756
        %v773 = vunpack.c.l.b16 %v757
        %v774 = vunpack.c.l.b16 %v758
        %v775 = vpack.c.b16 %v768, %v767
        %v776 = vpack.c.b16 %v770, %v769
        %v777 = vpack.c.b16 %v772, %v771
        %v778 = vpack.c.b16 %v774, %v773
        %783 = vmatprep.subr.bf16.mxu0 0
        %784 = vmatpush1.bf16.msra.mxu0 %v775
        %785 = vmatprep.subr.bf16.mxu0 0
        %786 = vmatpush1.bf16.msra.mxu0 %v776
        %787 = vmatprep.subr.bf16.mxu0 0
        %788 = vmatpush1.bf16.msra.mxu0 %v777
        %789 = vmatprep.subr.bf16.mxu0 0
        %790 = vmatpush1.bf16.msra.mxu0 %v778
        %791 = vmatprep.subr.bf16.mxu0 0
        %792 = vmatpush1.bf16.msra.mxu0 0
        %793 = vmatprep.subr.bf16.mxu0 0
        %794 = vmatpush1.bf16.msra.mxu0 0
        %795 = vmatprep.subr.bf16.mxu0 0
        %796 = vmatpush1.bf16.msra.mxu0 0
        %797 = vmatprep.subr.bf16.mxu0 0
        %798 = vmatpush1.bf16.msra.mxu0 0
        %799 = vmatprep.subr.bf16.mxu0 0
        %800 = vmatpush1.bf16.msra.mxu0 0
        %801 = vmatprep.subr.bf16.mxu0 0
        %802 = vmatpush1.bf16.msra.mxu0 0
        %803 = vmatprep.subr.bf16.mxu0 0
        %804 = vmatpush1.bf16.msra.mxu0 0
        %805 = vmatprep.subr.bf16.mxu0 0
        %806 = vmatpush1.bf16.msra.mxu0 0
        %807 = vmatprep.subr.bf16.mxu0 0
        %808 = vmatpush1.bf16.msra.mxu0 0
        %809 = vmatprep.subr.bf16.mxu0 0
        %810 = vmatpush1.bf16.msra.mxu0 0
        %811 = vmatprep.subr.bf16.mxu0 0
        %812 = vmatpush1.bf16.msra.mxu0 0
        %813 = vmatprep.subr.bf16.mxu0 0
        %814 = vmatpush1.bf16.msra.mxu0 0
        %815 = vmatprep.mubr.bf16.mxu0 0
        %816 = vmatmul.mubr.bf16.gmra.mrb[0].mxu0 %v708
        %v817 = vpop.f32.mrb[0].mxu0
        %v818 = vadd.f32 0.0, %v817
        %v819 = vpop.f32.mrb[0].mxu0
        %v820 = vpop.f32.mrb[0].mxu0
        %v821 = vadd.f32 0.0, %v820
        %v822 = vpop.f32.mrb[0].mxu0
        %823 = vdwg.mxu0
        %v824 = vxor.u32 %v745, 2147483648
        %v825 = vxor.u32 %v748, 2147483648
        %v826 = vmul.f32 %v824, 1.442695
        %v827 = vpow.pop %v826
        %v828 = vmul.f32 %v825, 1.442695
        %v829 = vpow.pop %v828
        %v830 = vadd.f32 %v827, 1.0
        %v831 = vadd.f32 %v829, 1.0
        %v832 = vrcp.pop %v830
        %v833 = vmul.f32 1.0, %v832
        %v834 = vrcp.pop %v831
        %v835 = vmul.f32 1.0, %v834
        %v836 = vmul.f32 %v745, %v833
        %v837 = vmul.f32 %v748, %v835
        %v838 = vmul.f32 %v836, %v818
        %v839 = vmul.f32 %v837, %v821
        %v840 = vpack.c.bf16 %v839, %v838
        %v841 = vld [vmem:[%s378] sm:$0xf]
        %v842 = vld [vmem:[%s378 + $0x4] sm:$0xf]
        %v843 = vld [vmem:[%s378 + $0x8] sm:$0xf]
        %v844 = vld [vmem:[%s378 + $0xc] sm:$0xf]
        %v845 = vld [vmem:[%s378 + $0x10] sm:$0xf]
        %v846 = vld [vmem:[%s378 + $0x14] sm:$0xf]
        %v847 = vld [vmem:[%s378 + $0x18] sm:$0xf]
        %v848 = vld [vmem:[%s378 + $0x1c] sm:$0xf]
        %v857 = vunpack.c.l.b16 %v841
        %v858 = vunpack.c.l.b16 %v842
        %v859 = vunpack.c.l.b16 %v843
        %v860 = vunpack.c.l.b16 %v844
        %v861 = vunpack.c.l.b16 %v845
        %v862 = vunpack.c.l.b16 %v846
        %v863 = vunpack.c.l.b16 %v847
        %v864 = vunpack.c.l.b16 %v848
        %v865 = vpack.c.b16 %v858, %v857
        %v866 = vpack.c.b16 %v860, %v859
        %v867 = vpack.c.b16 %v862, %v861
        %v868 = vpack.c.b16 %v864, %v863
        %v874 = vsel %vm706, %v840, 0
        %876 = vmatprep.subr.bf16.mxu0 0
        %877 = vmatpush1.bf16.msra.mxu0 %v865
        %878 = vmatprep.subr.bf16.mxu0 0
        %879 = vmatpush1.bf16.msra.mxu0 %v866
        %880 = vmatprep.subr.bf16.mxu0 0
        %881 = vmatpush1.bf16.msra.mxu0 %v867
        %882 = vmatprep.subr.bf16.mxu0 0
        %883 = vmatpush1.bf16.msra.mxu0 %v868
        %884 = vmatprep.subr.bf16.mxu0 0
        %885 = vmatpush1.bf16.msra.mxu0 0
        %886 = vmatprep.subr.bf16.mxu0 0
        %887 = vmatpush1.bf16.msra.mxu0 0
        %888 = vmatprep.subr.bf16.mxu0 0
        %889 = vmatpush1.bf16.msra.mxu0 0
        %890 = vmatprep.subr.bf16.mxu0 0
        %891 = vmatpush1.bf16.msra.mxu0 0
        %892 = vmatprep.subr.bf16.mxu0 0
        %893 = vmatpush1.bf16.msra.mxu0 0
        %894 = vmatprep.subr.bf16.mxu0 0
        %895 = vmatpush1.bf16.msra.mxu0 0
        %896 = vmatprep.subr.bf16.mxu0 0
        %897 = vmatpush1.bf16.msra.mxu0 0
        %898 = vmatprep.subr.bf16.mxu0 0
        %899 = vmatpush1.bf16.msra.mxu0 0
        %900 = vmatprep.subr.bf16.mxu0 0
        %901 = vmatpush1.bf16.msra.mxu0 0
        %902 = vmatprep.subr.bf16.mxu0 0
        %903 = vmatpush1.bf16.msra.mxu0 0
        %904 = vmatprep.subr.bf16.mxu0 0
        %905 = vmatpush1.bf16.msra.mxu0 0
        %906 = vmatprep.subr.bf16.mxu0 0
        %907 = vmatpush1.bf16.msra.mxu0 0
        %908 = vmatprep.mubr.bf16.mxu0 0
        %909 = vmatmul.mubr.bf16.gmra.mrb[0].mxu0 %v874
        %v910 = vpop.f32.mrb[0].mxu0
        %v911 = vadd.f32 0.0, %v910
        %v912 = vpop.f32.mrb[0].mxu0
        %v913 = vpop.f32.mrb[0].mxu0
        %v914 = vadd.f32 0.0, %v913
        %v915 = vpop.f32.mrb[0].mxu0
        %916 = vdwg.mxu0
        %v917 = vld [vmem:[#allocation2] sm:$0xff]
        %v918 = vld [vmem:[#allocation2 + $0x8] sm:$0xff]
        %v919 = vld [vmem:[%s363] sm:$0xff]
        %v920 = vld [vmem:[%s363 + $0x8] sm:$0xff]
        %922 = vset.pattern.permute.xlu0 0
        %923 = vperm.xlu0 %922, %v919
        %v924 = vpop.permute.xlu0 %923
        %927 = vset.pattern.permute.xlu0 0
        %928 = vperm.xlu0 %927, %v920
        %v929 = vpop.permute.xlu0 %928
        %v931 = vmul.f32 %v924, %v911
        %v932 = vmul.f32 %v929, %v914
        %v933 = vadd.f32 %v917, %v931
        %v934 = vadd.f32 %v918, %v932
        %935 = vst.msk [vmem:[#allocation2] sm:$0xff] %vm706, %v933
        %936 = vst.msk [vmem:[#allocation2 + $0x8] sm:$0xff] %vm706, %v934
        %p937 = scmp.eq.s32.totalorder %s21, 7
        // Predicated region
        $region61: #{_lambda_.5} parent=55 // pred_check
          %p938 = pneg %p937
        $region62: #{_lambda_.5} parent=55 // pred_check_branch
          %940 = sbr.rel (%p938) target = $region64
        $region63: #{_lambda_.5} parent=55 // pred_region
          %v941 = vld [vmem:[#allocation2] sm:$0xff]
          %v942 = vld [vmem:[#allocation2 + $0x8] sm:$0xff]
          %943 = vst.msk [vmem:[#allocation3] sm:$0xff] %vm706, %v941
          %944 = vst.msk [vmem:[#allocation3 + $0x8] sm:$0xff] %vm706, %v942
        $region64: #{_lambda_.5} parent=55 // pred_fallthru
          _
        // Predicated region
        $region65: #{_lambda_.5} parent=55 // pred_check
          %p945 = pneg %p243
        $region66: #{_lambda_.5} parent=55 // pred_check_branch
          %947 = sbr.rel (%p945) target = $region68
        $region67: #{_lambda_.5} parent=55 // pred_region
          %s949 = ssub.s32 256, 256
          %950 = vsyncadd [#allocation4], %s949
          %s951 = sshll.u32 [#allocation3], 4
          %s952 = int_to_ptr.vmem [resolvable:$true] %s951
          %957 = dma.vmem_to_hbm [thread:$0]  %s952, 256, %s9, [#allocation4], 128, 128, 8
        $region68: #{_lambda_.5} parent=55 // pred_fallthru
          _
        // Predicated region
        $region69: #{_lambda_.5} parent=55 // pred_check
          %p958 = pneg %p243
        $region70: #{_lambda_.5} parent=55 // pred_check_branch
          %960 = sbr.rel (%p958) target = $region72
        $region71: #{_lambda_.5} parent=55 // pred_region
          %961 = dma.done [#allocation4], 256
        $region72: #{_lambda_.5} parent=55 // pred_fallthru
          _
      $region56: #{_lambda_.5} parent=5 // pred_fallthru
        _
      %p962 = scmp.le.s32.totalorder 2, %s16
      // Predicated region
      $region73: #{_lambda_.5} parent=5 // pred_check
        %p963 = pneg %p962
      $region74: #{_lambda_.5} parent=5 // pred_check_branch
        %965 = sbr.rel (%p963) target = $region76
      $region75: #{_lambda_.5} parent=5 // pred_region
        %s966 = ssub.s32 %s16, 2
      $region76: #{_lambda_.5} parent=5 // pred_fallthru
        _
    $region6: #{_lambda_.5} parent=1 // loop_footer
      %s20 = sadd.s32 1, %s16
    $region7: #{_lambda_.5} parent=1 // loop_footer_branch
      %15 = sbr.rel target = $region3
    $region8: #{_lambda_.5} parent=1 // loop_exit
      _
    %967 = vsyncpa [#allocation4], 1
    %s968 = scalar_lea.sflag [#allocation4], 1
    %969 = vsyncpa %s968, 1

</llo_original>
